<compile_context>
chip_gen: v6e
topology: v6e:2x2x1
jax: 0.10.0
libtpu: 0.0.40
codegen_flags: <defaults>
</compile_context>

<pallas_src>
import functools

import numpy as np
import jax
import jax.numpy as jnp
from jax import lax
from jax.experimental import pallas as pl
from jax.experimental.pallas import tpu as pltpu

LN_EPS = 1e-5


# ----------------------------------------------------------------------------- fused kernel

def _cell_kernel(
    x_ref, h_ref, c_ref, m_ref, mask_ref,
    wx_ref, bx_ref, gx_ref, ax_ref,
    wh_ref, bh_ref, gh_ref, ah_ref,
    wm_ref, bm_ref, gm_ref, am_ref,
    wc_ref, bc_ref, gc_ref, ac_ref,
    wn_ref, bn_ref, gn_ref, an_ref,
    woc_ref, wom_ref, bo_ref, go_ref, ao_ref,
    wlc_ref, wlm_ref, bl_ref,
    h_out_ref, c_out_ref, m_out_ref,
    *, nh, hw, nb, tap_offsets, center_tap, mm_dtype):
    """Whole cell, whole batch, one invocation; every intermediate stays in VMEM.

    Activations are (C, nb*hw): the batch is folded into the lane axis.
    """
    total = nb * hw
    kk = len(tap_offsets)
    masks = mask_ref[...]                      # (kk, total) 0/1, loaded once

    def sigmoid(z):
        # One EUP op (tanh) instead of exp + reciprocal; exactly equal to sigmoid.
        return 0.5 * jnp.tanh(0.5 * z) + 0.5

    def stack_taps(xv):
        # (Cin, total) -> (kk*Cin, total): im2col stack built with XLU lane
        # rolls + 0/1 boundary masks (no MXU shift matmuls, no O(HW^2) table).
        # A tap whose source pixel is outside the image is masked to zero,
        # which also makes rolls across the flattened batch axis safe: any
        # roll that crosses a sample boundary is, by construction, an
        # out-of-image tap and therefore masked.
        parts = []
        for t in range(kk):
            if t == center_tap:
                parts.append(xv)               # (0,0) tap: no shift, always valid
            else:
                off = tap_offsets[t]
                rolled = pltpu.roll(xv, (-off) % total, axis=1)
                parts.append(rolled * masks[t:t + 1, :])
        return jnp.concatenate(parts, axis=0).astype(mm_dtype)

    def layer_norm(y, g_ref, beta_ref):
        # Per-sample LayerNorm over the (C, hw) slab (PyTorch
        # nn.LayerNorm([C, W, W]) semantics, biased variance), single-pass
        # sum / sum-of-squares statistics.  Sample slices are lane-aligned
        # (multiples of hw = 256 lanes) static slices.
        inv_n = 1.0 / (y.shape[0] * hw)
        pieces = []
        for b in range(nb):
            yb = y[:, b * hw:(b + 1) * hw]
            s = jnp.sum(yb)
            ss = jnp.sum(yb * yb)
            mu = s * inv_n
            var = ss * inv_n - mu * mu
            rstd = lax.rsqrt(var + LN_EPS)
            pieces.append((yb - mu) * rstd)
        yn = pieces[0] if nb == 1 else jnp.concatenate(pieces, axis=1)
        return yn * g_ref[...] + beta_ref[...]

    def conv_ln(stacks, b_ref, g_ref, beta_ref):
        # stacks: list of ((K, total) stack, (Cout, K) weight ref) pairs.
        y = None
        for stk, w_ref in stacks:
            t = jnp.dot(w_ref[...], stk, preferred_element_type=jnp.float32)
            y = t if y is None else y + t
        return layer_norm(y + b_ref[...], g_ref, beta_ref)

    x = x_ref[...]
    h = h_ref[...]
    c = c_ref[...]
    m = m_ref[...]

    x_cc = conv_ln([(stack_taps(x), wx_ref)], bx_ref, gx_ref, ax_ref)   # (7nh, T)
    h_cc = conv_ln([(stack_taps(h), wh_ref)], bh_ref, gh_ref, ah_ref)   # (3nh, T)
    m_cc = conv_ln([(stack_taps(m), wm_ref)], bm_ref, gm_ref, am_ref)   # (4nh, T)
    c_cc = conv_ln([(stack_taps(c), wc_ref)], bc_ref, gc_ref, ac_ref)   # (3nh, T)

    def ch(a, i):                       # sublane-aligned static channel slice
        return a[i * nh:(i + 1) * nh]

    # ---- stage 1: i_t, f_t, g_t -> c_new
    i_t = sigmoid(ch(x_cc, 0) + ch(h_cc, 0) + ch(c_cc, 0))
    f_t = sigmoid(ch(x_cc, 1) + ch(h_cc, 1) + ch(c_cc, 1))
    g_t = jnp.tanh(ch(x_cc, 2) + ch(h_cc, 2) + ch(c_cc, 2))
    c_new = f_t * c + i_t * g_t

    # ---- conv_c_new on the in-kernel intermediate; its tap stack is reused
    # by conv_o below.
    cn_stk = stack_taps(c_new)
    cn_cc = conv_ln([(cn_stk, wn_ref)], bn_ref, gn_ref, an_ref)          # (3nh, T)

    # ---- stage 2: i_t', f_t', g_t' -> m_new
    i_tp = sigmoid(ch(x_cc, 3) + ch(m_cc, 0) + ch(cn_cc, 0))
    f_tp = sigmoid(ch(x_cc, 4) + ch(m_cc, 1) + ch(cn_cc, 1))
    g_tp = jnp.tanh(ch(x_cc, 5) + ch(m_cc, 2) + ch(cn_cc, 2))
    m_new = f_tp * jnp.tanh(ch(m_cc, 3)) + i_tp * g_tp

    # ---- conv_o acts on mem = concat(c_new, m_new); the channel concat is
    # folded into split weights (woc / wom) and the c_new stack is reused.
    o_cc = conv_ln([(cn_stk, woc_ref), (stack_taps(m_new), wom_ref)],
                   bo_ref, go_ref, ao_ref)
    o_t = jnp.tanh(ch(x_cc, 6) + o_cc)

    # ---- conv_last (1x1), kept in f32 (K = nh only; negligible MXU work).
    last = (jnp.dot(wlc_ref[...], c_new, preferred_element_type=jnp.float32)
            + jnp.dot(wlm_ref[...], m_new, preferred_element_type=jnp.float32)
            + bl_ref[...])

    h_out_ref[...] = o_t * jnp.tanh(last)
    c_out_ref[...] = c_new
    m_out_ref[...] = m_new


# ----------------------------------------------------------------------------- module

class CasualLSTMCellPallas:
    def __init__(self, in_channel, num_hidden, width, filter_size, stride, key,
                 matmul_dtype=jnp.bfloat16):
        assert stride == 1, "LayerNorm([C, width, width]) implies stride == 1"
        assert filter_size % 2 == 1, "'same' padding assumes an odd filter size"
        self.in_channel = in_channel
        self.num_hidden = num_hidden
        self.width = width
        self.filter_size = filter_size
        self.padding = filter_size // 2
        self.matmul_dtype = matmul_dtype

        pad = self.padding
        # static per-tap flat offsets (di-pad)*W + (dj-pad), tap-major order
        self.tap_offsets = tuple((di - pad) * width + (dj - pad)
                                 for di in range(filter_size)
                                 for dj in range(filter_size))
        self.center_tap = pad * filter_size + pad

        def conv_params(k_, cout, cin, ksize):
            kw, kb = jax.random.split(k_)
            fan_in = cin * ksize * ksize
            w = jax.random.normal(kw, (cout, cin, ksize, ksize), jnp.float32) / jnp.sqrt(
                jnp.float32(fan_in))
            b = 0.05 * jax.random.normal(kb, (cout,), jnp.float32)
            return w, b

        def ln_params(k_, c):
            kg, kb = jax.random.split(k_)
            g = 1.0 + 0.1 * jax.random.normal(kg, (c, width, width), jnp.float32)
            b = 0.1 * jax.random.normal(kb, (c, width, width), jnp.float32)
            return g, b

        keys = jax.random.split(key, 13)
        nh = num_hidden
        self.px = conv_params(keys[0], nh * 7, in_channel, filter_size) + ln_params(keys[1], nh * 7)
        self.ph = conv_params(keys[2], nh * 3, nh, filter_size) + ln_params(keys[3], nh * 3)
        self.pm = conv_params(keys[4], nh * 4, nh, filter_size) + ln_params(keys[5], nh * 4)
        self.pc = conv_params(keys[6], nh * 3, nh, filter_size) + ln_params(keys[7], nh * 3)
        self.pcn = conv_params(keys[8], nh * 3, nh, filter_size) + ln_params(keys[9], nh * 3)
        self.po = conv_params(keys[10], nh, nh * 2, filter_size) + ln_params(keys[11], nh)
        self.plast = conv_params(keys[12], nh, nh * 2, 1)

        # Weight packing / LN-param tiling / boundary masks are hoisted out of
        # forward() and cached per batch size (an RNN calls the cell every step).
        self._packed_cache = {}

    # ---- packing hoisted out of forward() -------------------------------------
    def _packed(self, batch):
        if batch in self._packed_cache:
            return self._packed_cache[batch]
        nh = self.num_hidden
        W = self.width
        HW = W * W
        fs = self.filter_size
        pad = self.padding
        kk = fs * fs
        mmdt = self.matmul_dtype

        # 0/1 validity mask per conv tap over the flattened (batch, H, W) lane axis.
        idx = np.arange(HW)
        ii, jj = idx // W, idx % W
        mask = np.ones((kk, batch * HW), np.float32)
        for di in range(fs):
            for dj in range(fs):
                si, sj = di - pad, dj - pad
                valid = ((ii + si >= 0) & (ii + si < W) &
                         (jj + sj >= 0) & (jj + sj < W)).astype(np.float32)
                mask[di * fs + dj] = np.tile(valid, batch)

        def pack_w(w):       # (Cout, Cin, fs, fs) -> (Cout, kk*Cin), tap-major
            return jnp.transpose(w, (0, 2, 3, 1)).reshape(w.shape[0], -1).astype(mmdt)

        def col(b):          # (Cout,) -> (Cout, 1) f32 (lane-broadcast bias)
            return b[:, None].astype(jnp.float32)

        def tile_ln(p):      # (C, W, W) -> (C, batch*HW) f32
            return jnp.tile(p.reshape(p.shape[0], HW), (1, batch))

        wx, bx, gx, ax = self.px
        wh, bh, gh, ah = self.ph
        wm, bm, gm, am = self.pm
        wc, bc, gc, ac = self.pc
        wn, bn, gn, an = self.pcn
        wo, bo, go, ao = self.po
        wl, bl = self.plast
        wl2 = wl.reshape(nh, 2 * nh)

        packed = (
            jnp.asarray(mask),
            pack_w(wx), col(bx), tile_ln(gx), tile_ln(ax),
            pack_w(wh), col(bh), tile_ln(gh), tile_ln(ah),
            pack_w(wm), col(bm), tile_ln(gm), tile_ln(am),
            pack_w(wc), col(bc), tile_ln(gc), tile_ln(ac),
            pack_w(wn), col(bn), tile_ln(gn), tile_ln(an),
            pack_w(wo[:, :nh]), pack_w(wo[:, nh:]), col(bo), tile_ln(go), tile_ln(ao),
            wl2[:, :nh], wl2[:, nh:], col(bl),      # 1x1 conv_last kept f32
        )
        self._packed_cache[batch] = packed
        return packed

    # ---- fused Pallas forward (inputs/outputs NCHW like the PyTorch module) ----
    def forward(self, x_t, h_t, c_t, m_t):
        nh = self.num_hidden
        B, Cin, H, W = x_t.shape
        assert H == self.width and W == self.width
        HW = H * W

        def to_flat(a):      # (B, C, H, W) -> (C, B*HW): batch folded into lanes
            return jnp.transpose(a, (1, 0, 2, 3)).reshape(a.shape[1], B * HW)

        args = (to_flat(x_t), to_flat(h_t), to_flat(c_t), to_flat(m_t)) + self._packed(B)

        kernel = functools.partial(
            _cell_kernel, nh=nh, hw=HW, nb=B,
            tap_offsets=self.tap_offsets, center_tap=self.center_tap,
            mm_dtype=self.matmul_dtype)

        out_sds = jax.ShapeDtypeStruct((nh, B * HW), jnp.float32)
        # Single invocation (no grid): the whole batch is processed in one step,
        # so there is no serial per-sample grid loop on v5e/v6e and no per-step
        # DMA/bookkeeping overhead.  Total resident VMEM is ~2 MiB.
        h_new, c_new, m_new = pl.pallas_call(
            kernel,
            out_shape=(out_sds, out_sds, out_sds),
            compiler_params=pltpu.CompilerParams(
                vmem_limit_bytes=32 * 1024 * 1024),
        )(*args)

        def from_flat(a):    # (nh, B*HW) -> (B, nh, H, W)
            return jnp.transpose(a.reshape(nh, B, H, W), (1, 0, 2, 3))

        return from_flat(h_new), from_flat(c_new), from_flat(m_new)

    # ---- plain-JAX reference (mirrors the PyTorch forward) ----
    def reference(self, x_t, h_t, c_t, m_t):
        nh, pad = self.num_hidden, self.padding

        def convln(x, params):
            w, b, g, beta = params
            y = lax.conv_general_dilated(x, w, (1, 1), [(pad, pad), (pad, pad)],
                                         dimension_numbers=('NCHW', 'OIHW', 'NCHW'))
            y = y + b[None, :, None, None]
            mean = y.mean(axis=(1, 2, 3), keepdims=True)
            var = ((y - mean) ** 2).mean(axis=(1, 2, 3), keepdims=True)
            return (y - mean) * lax.rsqrt(var + LN_EPS) * g[None] + beta[None]

        x_c = convln(x_t, self.px)
        h_c = convln(h_t, self.ph)
        m_c = convln(m_t, self.pm)
        c_c = convln(c_t, self.pc)
        sl = lambda a, i: a[:, i * nh:(i + 1) * nh]
        i_t = jax.nn.sigmoid(sl(x_c, 0) + sl(h_c, 0) + sl(c_c, 0))
        f_t = jax.nn.sigmoid(sl(x_c, 1) + sl(h_c, 1) + sl(c_c, 1))
        g_t = jnp.tanh(sl(x_c, 2) + sl(h_c, 2) + sl(c_c, 2))
        c_new = f_t * c_t + i_t * g_t
        cn_c = convln(c_new, self.pcn)
        i_tp = jax.nn.sigmoid(sl(x_c, 3) + sl(m_c, 0) + sl(cn_c, 0))
        f_tp = jax.nn.sigmoid(sl(x_c, 4) + sl(m_c, 1) + sl(cn_c, 1))
        g_tp = jnp.tanh(sl(x_c, 5) + sl(m_c, 2) + sl(cn_c, 2))
        m_new = f_tp * jnp.tanh(sl(m_c, 3)) + i_tp * g_tp
        mem = jnp.concatenate([c_new, m_new], axis=1)
        o_t = jnp.tanh(sl(x_c, 6) + convln(mem, self.po))
        wl, bl = self.plast
        last = lax.conv_general_dilated(mem, wl, (1, 1), [(0, 0), (0, 0)],
                                        dimension_numbers=('NCHW', 'OIHW', 'NCHW'))
        last = last + bl[None, :, None, None]
        h_new = o_t * jnp.tanh(last)
        return h_new, c_new, m_new


# ----------------------------------------------------------------------------- main

if __name__ == "__main__":
    B, in_channel, num_hidden, width, filter_size, stride = 2, 4, 8, 16, 3, 1

    cell = CasualLSTMCellPallas(in_channel, num_hidden, width, filter_size, stride,
                                jax.random.PRNGKey(0))

    k1, k2, k3, k4 = jax.random.split(jax.random.PRNGKey(0), 4)
    x_t = jax.random.normal(k1, (B, in_channel, width, width), jnp.float32)
    h_t = jax.random.normal(k2, (B, num_hidden, width, width), jnp.float32)
    c_t = jax.random.normal(k3, (B, num_hidden, width, width), jnp.float32)
    m_t = jax.random.normal(k4, (B, num_hidden, width, width), jnp.float32)

    h_new, c_new, m_new = jax.jit(cell.forward)(x_t, h_t, c_t, m_t)
    jax.block_until_ready((h_new, c_new, m_new))

    h_ref, c_ref, m_ref = cell.reference(x_t, h_t, c_t, m_t)
    # bf16 matmul operands (f32 accumulation) per the perf review; tolerance
    # loosened to 2e-2 accordingly (matmul_dtype=jnp.float32 passes at 1e-2).
    for got, ref in ((h_new, h_ref), (c_new, c_ref), (m_new, m_ref)):
        assert got.shape == ref.shape and got.dtype == ref.dtype
        err = float(jnp.max(jnp.abs(got - ref)))
        assert jnp.allclose(got, ref, atol=2e-2, rtol=2e-2), err

    print("KERNEL_OK")
</pallas_src>

<mosaic_0001>
module attributes {stable_mosaic.version = 11 : i64} {
  func.func @_cell_kernel(%arg0: memref<4x512xf32, #tpu.memory_space<vmem>>, %arg1: memref<8x512xf32, #tpu.memory_space<vmem>>, %arg2: memref<8x512xf32, #tpu.memory_space<vmem>>, %arg3: memref<8x512xf32, #tpu.memory_space<vmem>>, %arg4: memref<9x512xf32, #tpu.memory_space<vmem>>, %arg5: memref<56x36xbf16, #tpu.memory_space<vmem>>, %arg6: memref<56x1xf32, #tpu.memory_space<vmem>>, %arg7: memref<56x512xf32, #tpu.memory_space<vmem>>, %arg8: memref<56x512xf32, #tpu.memory_space<vmem>>, %arg9: memref<24x72xbf16, #tpu.memory_space<vmem>>, %arg10: memref<24x1xf32, #tpu.memory_space<vmem>>, %arg11: memref<24x512xf32, #tpu.memory_space<vmem>>, %arg12: memref<24x512xf32, #tpu.memory_space<vmem>>, %arg13: memref<32x72xbf16, #tpu.memory_space<vmem>>, %arg14: memref<32x1xf32, #tpu.memory_space<vmem>>, %arg15: memref<32x512xf32, #tpu.memory_space<vmem>>, %arg16: memref<32x512xf32, #tpu.memory_space<vmem>>, %arg17: memref<24x72xbf16, #tpu.memory_space<vmem>>, %arg18: memref<24x1xf32, #tpu.memory_space<vmem>>, %arg19: memref<24x512xf32, #tpu.memory_space<vmem>>, %arg20: memref<24x512xf32, #tpu.memory_space<vmem>>, %arg21: memref<24x72xbf16, #tpu.memory_space<vmem>>, %arg22: memref<24x1xf32, #tpu.memory_space<vmem>>, %arg23: memref<24x512xf32, #tpu.memory_space<vmem>>, %arg24: memref<24x512xf32, #tpu.memory_space<vmem>>, %arg25: memref<8x72xbf16, #tpu.memory_space<vmem>>, %arg26: memref<8x72xbf16, #tpu.memory_space<vmem>>, %arg27: memref<8x1xf32, #tpu.memory_space<vmem>>, %arg28: memref<8x512xf32, #tpu.memory_space<vmem>>, %arg29: memref<8x512xf32, #tpu.memory_space<vmem>>, %arg30: memref<8x8xf32, #tpu.memory_space<vmem>>, %arg31: memref<8x8xf32, #tpu.memory_space<vmem>>, %arg32: memref<8x1xf32, #tpu.memory_space<vmem>>, %arg33: memref<8x512xf32, #tpu.memory_space<vmem>>, %arg34: memref<8x512xf32, #tpu.memory_space<vmem>>, %arg35: memref<8x512xf32, #tpu.memory_space<vmem>>) attributes {dimension_semantics = [], scalar_prefetch = 0 : i64, scratch_operands = 0 : i64, tpu.core_type = #tpu.core_type<tc>} {
    %c0 = arith.constant 0 : index
    %c0_0 = arith.constant 0 : index
    %0 = vector.load %arg4[%c0, %c0_0] : memref<9x512xf32, #tpu.memory_space<vmem>>, vector<9x512xf32>
    %c0_1 = arith.constant 0 : index
    %c0_2 = arith.constant 0 : index
    %1 = vector.load %arg0[%c0_1, %c0_2] : memref<4x512xf32, #tpu.memory_space<vmem>>, vector<4x512xf32>
    %c0_3 = arith.constant 0 : index
    %c0_4 = arith.constant 0 : index
    %2 = vector.load %arg1[%c0_3, %c0_4] : memref<8x512xf32, #tpu.memory_space<vmem>>, vector<8x512xf32>
    %c0_5 = arith.constant 0 : index
    %c0_6 = arith.constant 0 : index
    %3 = vector.load %arg2[%c0_5, %c0_6] : memref<8x512xf32, #tpu.memory_space<vmem>>, vector<8x512xf32>
    %c0_7 = arith.constant 0 : index
    %c0_8 = arith.constant 0 : index
    %4 = vector.load %arg3[%c0_7, %c0_8] : memref<8x512xf32, #tpu.memory_space<vmem>>, vector<8x512xf32>
    %c17_i32 = arith.constant 17 : i32
    %5 = tpu.dynamic_rotate %1 by %c17_i32 dim 1 : vector<4x512xf32>, i32 -> vector<4x512xf32>
    %6 = vector.extract_strided_slice %0 {offsets = [0, 0], sizes = [1, 512], strides = [1, 1]} : vector<9x512xf32> to vector<1x512xf32>
    %7 = vector.broadcast %6 : vector<1x512xf32> to vector<4x512xf32>
    %8 = arith.mulf %5, %7 : vector<4x512xf32>
    %c16_i32 = arith.constant 16 : i32
    %9 = tpu.dynamic_rotate %1 by %c16_i32 dim 1 : vector<4x512xf32>, i32 -> vector<4x512xf32>
    %10 = vector.extract_strided_slice %0 {offsets = [1, 0], sizes = [1, 512], strides = [1, 1]} : vector<9x512xf32> to vector<1x512xf32>
    %11 = vector.broadcast %10 : vector<1x512xf32> to vector<4x512xf32>
    %12 = arith.mulf %9, %11 : vector<4x512xf32>
    %c15_i32 = arith.constant 15 : i32
    %13 = tpu.dynamic_rotate %1 by %c15_i32 dim 1 : vector<4x512xf32>, i32 -> vector<4x512xf32>
    %14 = vector.extract_strided_slice %0 {offsets = [2, 0], sizes = [1, 512], strides = [1, 1]} : vector<9x512xf32> to vector<1x512xf32>
    %15 = vector.broadcast %14 : vector<1x512xf32> to vector<4x512xf32>
    %16 = arith.mulf %13, %15 : vector<4x512xf32>
    %c1_i32 = arith.constant 1 : i32
    %17 = tpu.dynamic_rotate %1 by %c1_i32 dim 1 : vector<4x512xf32>, i32 -> vector<4x512xf32>
    %18 = vector.extract_strided_slice %0 {offsets = [3, 0], sizes = [1, 512], strides = [1, 1]} : vector<9x512xf32> to vector<1x512xf32>
    %19 = vector.broadcast %18 : vector<1x512xf32> to vector<4x512xf32>
    %20 = arith.mulf %17, %19 : vector<4x512xf32>
    %c511_i32 = arith.constant 511 : i32
    %21 = tpu.dynamic_rotate %1 by %c511_i32 dim 1 : vector<4x512xf32>, i32 -> vector<4x512xf32>
    %22 = vector.extract_strided_slice %0 {offsets = [5, 0], sizes = [1, 512], strides = [1, 1]} : vector<9x512xf32> to vector<1x512xf32>
    %23 = vector.broadcast %22 : vector<1x512xf32> to vector<4x512xf32>
    %24 = arith.mulf %21, %23 : vector<4x512xf32>
    %c497_i32 = arith.constant 497 : i32
    %25 = tpu.dynamic_rotate %1 by %c497_i32 dim 1 : vector<4x512xf32>, i32 -> vector<4x512xf32>
    %26 = vector.extract_strided_slice %0 {offsets = [6, 0], sizes = [1, 512], strides = [1, 1]} : vector<9x512xf32> to vector<1x512xf32>
    %27 = vector.broadcast %26 : vector<1x512xf32> to vector<4x512xf32>
    %28 = arith.mulf %25, %27 : vector<4x512xf32>
    %c496_i32 = arith.constant 496 : i32
    %29 = tpu.dynamic_rotate %1 by %c496_i32 dim 1 : vector<4x512xf32>, i32 -> vector<4x512xf32>
    %30 = vector.extract_strided_slice %0 {offsets = [7, 0], sizes = [1, 512], strides = [1, 1]} : vector<9x512xf32> to vector<1x512xf32>
    %31 = vector.broadcast %30 : vector<1x512xf32> to vector<4x512xf32>
    %32 = arith.mulf %29, %31 : vector<4x512xf32>
    %c495_i32 = arith.constant 495 : i32
    %33 = tpu.dynamic_rotate %1 by %c495_i32 dim 1 : vector<4x512xf32>, i32 -> vector<4x512xf32>
    %34 = vector.extract_strided_slice %0 {offsets = [8, 0], sizes = [1, 512], strides = [1, 1]} : vector<9x512xf32> to vector<1x512xf32>
    %35 = vector.broadcast %34 : vector<1x512xf32> to vector<4x512xf32>
    %36 = arith.mulf %33, %35 : vector<4x512xf32>
    %37 = tpu.concatenate %8, %12, %16, %20, %1, %24, %28, %32, %36 in 0 : vector<4x512xf32>, vector<4x512xf32>, vector<4x512xf32>, vector<4x512xf32>, vector<4x512xf32>, vector<4x512xf32>, vector<4x512xf32>, vector<4x512xf32>, vector<4x512xf32> -> vector<36x512xf32>
    %38 = arith.truncf %37 : vector<36x512xf32> to vector<36x512xbf16>
    %c0_9 = arith.constant 0 : index
    %c0_10 = arith.constant 0 : index
    %39 = vector.load %arg5[%c0_9, %c0_10] : memref<56x36xbf16, #tpu.memory_space<vmem>>, vector<56x36xbf16>
    %cst = arith.constant dense<0.000000e+00> : vector<56x512xf32>
    %40 = tpu.matmul %39, %38, %cst {dimension_numbers = #tpu.dot_dimension_numbers<[1], [0], [0], [1], [0, 0, 1, 1], [], []>} : vector<56x36xbf16>, vector<36x512xbf16>, vector<56x512xf32> -> vector<56x512xf32>
    %c0_11 = arith.constant 0 : index
    %c0_12 = arith.constant 0 : index
    %41 = vector.load %arg6[%c0_11, %c0_12] : memref<56x1xf32, #tpu.memory_space<vmem>>, vector<56x1xf32>
    %42 = vector.broadcast %41 : vector<56x1xf32> to vector<56x512xf32>
    %43 = arith.addf %40, %42 : vector<56x512xf32>
    %44 = vector.extract_strided_slice %43 {offsets = [0, 0], sizes = [56, 256], strides = [1, 1]} : vector<56x512xf32> to vector<56x256xf32>
    %45 = vector.shape_cast %44 : vector<56x256xf32> to vector<1x56x256xf32>
    %cst_13 = arith.constant dense<0.000000e+00> : vector<1xf32>
    %46 = vector.multi_reduction <add>, %45, %cst_13 [1, 2] : vector<1x56x256xf32> to vector<1xf32>
    %47 = vector.shape_cast %46 : vector<1xf32> to vector<1x1x1xf32>
    %48 = vector.extract %47[0, 0, 0] : f32 from vector<1x1x1xf32>
    %49 = arith.mulf %44, %44 : vector<56x256xf32>
    %50 = vector.shape_cast %49 : vector<56x256xf32> to vector<1x56x256xf32>
    %cst_14 = arith.constant dense<0.000000e+00> : vector<1xf32>
    %51 = vector.multi_reduction <add>, %50, %cst_14 [1, 2] : vector<1x56x256xf32> to vector<1xf32>
    %52 = vector.shape_cast %51 : vector<1xf32> to vector<1x1x1xf32>
    %53 = vector.extract %52[0, 0, 0] : f32 from vector<1x1x1xf32>
    %cst_15 = arith.constant 6.97544674E-5 : f32
    %54 = arith.mulf %48, %cst_15 : f32
    %cst_16 = arith.constant 6.97544674E-5 : f32
    %55 = arith.mulf %53, %cst_16 : f32
    %56 = arith.mulf %54, %54 : f32
    %57 = arith.subf %55, %56 : f32
    %cst_17 = arith.constant 9.99999974E-6 : f32
    %58 = arith.addf %57, %cst_17 : f32
    %59 = math.rsqrt %58 : f32
    %60 = vector.broadcast %54 : f32 to vector<56x256xf32>
    %61 = arith.subf %44, %60 : vector<56x256xf32>
    %62 = vector.broadcast %59 : f32 to vector<56x256xf32>
    %63 = arith.mulf %61, %62 : vector<56x256xf32>
    %64 = vector.extract_strided_slice %43 {offsets = [0, 256], sizes = [56, 256], strides = [1, 1]} : vector<56x512xf32> to vector<56x256xf32>
    %65 = vector.shape_cast %64 : vector<56x256xf32> to vector<1x56x256xf32>
    %cst_18 = arith.constant dense<0.000000e+00> : vector<1xf32>
    %66 = vector.multi_reduction <add>, %65, %cst_18 [1, 2] : vector<1x56x256xf32> to vector<1xf32>
    %67 = vector.shape_cast %66 : vector<1xf32> to vector<1x1x1xf32>
    %68 = vector.extract %67[0, 0, 0] : f32 from vector<1x1x1xf32>
    %69 = arith.mulf %64, %64 : vector<56x256xf32>
    %70 = vector.shape_cast %69 : vector<56x256xf32> to vector<1x56x256xf32>
    %cst_19 = arith.constant dense<0.000000e+00> : vector<1xf32>
    %71 = vector.multi_reduction <add>, %70, %cst_19 [1, 2] : vector<1x56x256xf32> to vector<1xf32>
    %72 = vector.shape_cast %71 : vector<1xf32> to vector<1x1x1xf32>
    %73 = vector.extract %72[0, 0, 0] : f32 from vector<1x1x1xf32>
    %cst_20 = arith.constant 6.97544674E-5 : f32
    %74 = arith.mulf %68, %cst_20 : f32
    %cst_21 = arith.constant 6.97544674E-5 : f32
    %75 = arith.mulf %73, %cst_21 : f32
    %76 = arith.mulf %74, %74 : f32
    %77 = arith.subf %75, %76 : f32
    %cst_22 = arith.constant 9.99999974E-6 : f32
    %78 = arith.addf %77, %cst_22 : f32
    %79 = math.rsqrt %78 : f32
    %80 = vector.broadcast %74 : f32 to vector<56x256xf32>
    %81 = arith.subf %64, %80 : vector<56x256xf32>
    %82 = vector.broadcast %79 : f32 to vector<56x256xf32>
    %83 = arith.mulf %81, %82 : vector<56x256xf32>
    %84 = tpu.concatenate %63, %83 in 1 : vector<56x256xf32>, vector<56x256xf32> -> vector<56x512xf32>
    %c0_23 = arith.constant 0 : index
    %c0_24 = arith.constant 0 : index
    %85 = vector.load %arg7[%c0_23, %c0_24] : memref<56x512xf32, #tpu.memory_space<vmem>>, vector<56x512xf32>
    %86 = arith.mulf %84, %85 : vector<56x512xf32>
    %c0_25 = arith.constant 0 : index
    %c0_26 = arith.constant 0 : index
    %87 = vector.load %arg8[%c0_25, %c0_26] : memref<56x512xf32, #tpu.memory_space<vmem>>, vector<56x512xf32>
    %88 = arith.addf %86, %87 : vector<56x512xf32>
    %c17_i32_27 = arith.constant 17 : i32
    %89 = tpu.dynamic_rotate %2 by %c17_i32_27 dim 1 : vector<8x512xf32>, i32 -> vector<8x512xf32>
    %90 = vector.extract_strided_slice %0 {offsets = [0, 0], sizes = [1, 512], strides = [1, 1]} : vector<9x512xf32> to vector<1x512xf32>
    %91 = vector.broadcast %90 : vector<1x512xf32> to vector<8x512xf32>
    %92 = arith.mulf %89, %91 : vector<8x512xf32>
    %c16_i32_28 = arith.constant 16 : i32
    %93 = tpu.dynamic_rotate %2 by %c16_i32_28 dim 1 : vector<8x512xf32>, i32 -> vector<8x512xf32>
    %94 = vector.extract_strided_slice %0 {offsets = [1, 0], sizes = [1, 512], strides = [1, 1]} : vector<9x512xf32> to vector<1x512xf32>
    %95 = vector.broadcast %94 : vector<1x512xf32> to vector<8x512xf32>
    %96 = arith.mulf %93, %95 : vector<8x512xf32>
    %c15_i32_29 = arith.constant 15 : i32
    %97 = tpu.dynamic_rotate %2 by %c15_i32_29 dim 1 : vector<8x512xf32>, i32 -> vector<8x512xf32>
    %98 = vector.extract_strided_slice %0 {offsets = [2, 0], sizes = [1, 512], strides = [1, 1]} : vector<9x512xf32> to vector<1x512xf32>
    %99 = vector.broadcast %98 : vector<1x512xf32> to vector<8x512xf32>
    %100 = arith.mulf %97, %99 : vector<8x512xf32>
    %c1_i32_30 = arith.constant 1 : i32
    %101 = tpu.dynamic_rotate %2 by %c1_i32_30 dim 1 : vector<8x512xf32>, i32 -> vector<8x512xf32>
    %102 = vector.extract_strided_slice %0 {offsets = [3, 0], sizes = [1, 512], strides = [1, 1]} : vector<9x512xf32> to vector<1x512xf32>
    %103 = vector.broadcast %102 : vector<1x512xf32> to vector<8x512xf32>
    %104 = arith.mulf %101, %103 : vector<8x512xf32>
    %c511_i32_31 = arith.constant 511 : i32
    %105 = tpu.dynamic_rotate %2 by %c511_i32_31 dim 1 : vector<8x512xf32>, i32 -> vector<8x512xf32>
    %106 = vector.extract_strided_slice %0 {offsets = [5, 0], sizes = [1, 512], strides = [1, 1]} : vector<9x512xf32> to vector<1x512xf32>
    %107 = vector.broadcast %106 : vector<1x512xf32> to vector<8x512xf32>
    %108 = arith.mulf %105, %107 : vector<8x512xf32>
    %c497_i32_32 = arith.constant 497 : i32
    %109 = tpu.dynamic_rotate %2 by %c497_i32_32 dim 1 : vector<8x512xf32>, i32 -> vector<8x512xf32>
    %110 = vector.extract_strided_slice %0 {offsets = [6, 0], sizes = [1, 512], strides = [1, 1]} : vector<9x512xf32> to vector<1x512xf32>
    %111 = vector.broadcast %110 : vector<1x512xf32> to vector<8x512xf32>
    %112 = arith.mulf %109, %111 : vector<8x512xf32>
    %c496_i32_33 = arith.constant 496 : i32
    %113 = tpu.dynamic_rotate %2 by %c496_i32_33 dim 1 : vector<8x512xf32>, i32 -> vector<8x512xf32>
    %114 = vector.extract_strided_slice %0 {offsets = [7, 0], sizes = [1, 512], strides = [1, 1]} : vector<9x512xf32> to vector<1x512xf32>
    %115 = vector.broadcast %114 : vector<1x512xf32> to vector<8x512xf32>
    %116 = arith.mulf %113, %115 : vector<8x512xf32>
    %c495_i32_34 = arith.constant 495 : i32
    %117 = tpu.dynamic_rotate %2 by %c495_i32_34 dim 1 : vector<8x512xf32>, i32 -> vector<8x512xf32>
    %118 = vector.extract_strided_slice %0 {offsets = [8, 0], sizes = [1, 512], strides = [1, 1]} : vector<9x512xf32> to vector<1x512xf32>
    %119 = vector.broadcast %118 : vector<1x512xf32> to vector<8x512xf32>
    %120 = arith.mulf %117, %119 : vector<8x512xf32>
    %121 = tpu.concatenate %92, %96, %100, %104, %2, %108, %112, %116, %120 in 0 : vector<8x512xf32>, vector<8x512xf32>, vector<8x512xf32>, vector<8x512xf32>, vector<8x512xf32>, vector<8x512xf32>, vector<8x512xf32>, vector<8x512xf32>, vector<8x512xf32> -> vector<72x512xf32>
    %122 = arith.truncf %121 : vector<72x512xf32> to vector<72x512xbf16>
    %c0_35 = arith.constant 0 : index
    %c0_36 = arith.constant 0 : index
    %123 = vector.load %arg9[%c0_35, %c0_36] : memref<24x72xbf16, #tpu.memory_space<vmem>>, vector<24x72xbf16>
    %cst_37 = arith.constant dense<0.000000e+00> : vector<24x512xf32>
    %124 = tpu.matmul %123, %122, %cst_37 {dimension_numbers = #tpu.dot_dimension_numbers<[1], [0], [0], [1], [0, 0, 1, 1], [], []>} : vector<24x72xbf16>, vector<72x512xbf16>, vector<24x512xf32> -> vector<24x512xf32>
    %c0_38 = arith.constant 0 : index
    %c0_39 = arith.constant 0 : index
    %125 = vector.load %arg10[%c0_38, %c0_39] : memref<24x1xf32, #tpu.memory_space<vmem>>, vector<24x1xf32>
    %126 = vector.broadcast %125 : vector<24x1xf32> to vector<24x512xf32>
    %127 = arith.addf %124, %126 : vector<24x512xf32>
    %128 = vector.extract_strided_slice %127 {offsets = [0, 0], sizes = [24, 256], strides = [1, 1]} : vector<24x512xf32> to vector<24x256xf32>
    %129 = vector.shape_cast %128 : vector<24x256xf32> to vector<1x24x256xf32>
    %cst_40 = arith.constant dense<0.000000e+00> : vector<1xf32>
    %130 = vector.multi_reduction <add>, %129, %cst_40 [1, 2] : vector<1x24x256xf32> to vector<1xf32>
    %131 = vector.shape_cast %130 : vector<1xf32> to vector<1x1x1xf32>
    %132 = vector.extract %131[0, 0, 0] : f32 from vector<1x1x1xf32>
    %133 = arith.mulf %128, %128 : vector<24x256xf32>
    %134 = vector.shape_cast %133 : vector<24x256xf32> to vector<1x24x256xf32>
    %cst_41 = arith.constant dense<0.000000e+00> : vector<1xf32>
    %135 = vector.multi_reduction <add>, %134, %cst_41 [1, 2] : vector<1x24x256xf32> to vector<1xf32>
    %136 = vector.shape_cast %135 : vector<1xf32> to vector<1x1x1xf32>
    %137 = vector.extract %136[0, 0, 0] : f32 from vector<1x1x1xf32>
    %cst_42 = arith.constant 1.62760422E-4 : f32
    %138 = arith.mulf %132, %cst_42 : f32
    %cst_43 = arith.constant 1.62760422E-4 : f32
    %139 = arith.mulf %137, %cst_43 : f32
    %140 = arith.mulf %138, %138 : f32
    %141 = arith.subf %139, %140 : f32
    %cst_44 = arith.constant 9.99999974E-6 : f32
    %142 = arith.addf %141, %cst_44 : f32
    %143 = math.rsqrt %142 : f32
    %144 = vector.broadcast %138 : f32 to vector<24x256xf32>
    %145 = arith.subf %128, %144 : vector<24x256xf32>
    %146 = vector.broadcast %143 : f32 to vector<24x256xf32>
    %147 = arith.mulf %145, %146 : vector<24x256xf32>
    %148 = vector.extract_strided_slice %127 {offsets = [0, 256], sizes = [24, 256], strides = [1, 1]} : vector<24x512xf32> to vector<24x256xf32>
    %149 = vector.shape_cast %148 : vector<24x256xf32> to vector<1x24x256xf32>
    %cst_45 = arith.constant dense<0.000000e+00> : vector<1xf32>
    %150 = vector.multi_reduction <add>, %149, %cst_45 [1, 2] : vector<1x24x256xf32> to vector<1xf32>
    %151 = vector.shape_cast %150 : vector<1xf32> to vector<1x1x1xf32>
    %152 = vector.extract %151[0, 0, 0] : f32 from vector<1x1x1xf32>
    %153 = arith.mulf %148, %148 : vector<24x256xf32>
    %154 = vector.shape_cast %153 : vector<24x256xf32> to vector<1x24x256xf32>
    %cst_46 = arith.constant dense<0.000000e+00> : vector<1xf32>
    %155 = vector.multi_reduction <add>, %154, %cst_46 [1, 2] : vector<1x24x256xf32> to vector<1xf32>
    %156 = vector.shape_cast %155 : vector<1xf32> to vector<1x1x1xf32>
    %157 = vector.extract %156[0, 0, 0] : f32 from vector<1x1x1xf32>
    %cst_47 = arith.constant 1.62760422E-4 : f32
    %158 = arith.mulf %152, %cst_47 : f32
    %cst_48 = arith.constant 1.62760422E-4 : f32
    %159 = arith.mulf %157, %cst_48 : f32
    %160 = arith.mulf %158, %158 : f32
    %161 = arith.subf %159, %160 : f32
    %cst_49 = arith.constant 9.99999974E-6 : f32
    %162 = arith.addf %161, %cst_49 : f32
    %163 = math.rsqrt %162 : f32
    %164 = vector.broadcast %158 : f32 to vector<24x256xf32>
    %165 = arith.subf %148, %164 : vector<24x256xf32>
    %166 = vector.broadcast %163 : f32 to vector<24x256xf32>
    %167 = arith.mulf %165, %166 : vector<24x256xf32>
    %168 = tpu.concatenate %147, %167 in 1 : vector<24x256xf32>, vector<24x256xf32> -> vector<24x512xf32>
    %c0_50 = arith.constant 0 : index
    %c0_51 = arith.constant 0 : index
    %169 = vector.load %arg11[%c0_50, %c0_51] : memref<24x512xf32, #tpu.memory_space<vmem>>, vector<24x512xf32>
    %170 = arith.mulf %168, %169 : vector<24x512xf32>
    %c0_52 = arith.constant 0 : index
    %c0_53 = arith.constant 0 : index
    %171 = vector.load %arg12[%c0_52, %c0_53] : memref<24x512xf32, #tpu.memory_space<vmem>>, vector<24x512xf32>
    %172 = arith.addf %170, %171 : vector<24x512xf32>
    %c17_i32_54 = arith.constant 17 : i32
    %173 = tpu.dynamic_rotate %4 by %c17_i32_54 dim 1 : vector<8x512xf32>, i32 -> vector<8x512xf32>
    %174 = vector.extract_strided_slice %0 {offsets = [0, 0], sizes = [1, 512], strides = [1, 1]} : vector<9x512xf32> to vector<1x512xf32>
    %175 = vector.broadcast %174 : vector<1x512xf32> to vector<8x512xf32>
    %176 = arith.mulf %173, %175 : vector<8x512xf32>
    %c16_i32_55 = arith.constant 16 : i32
    %177 = tpu.dynamic_rotate %4 by %c16_i32_55 dim 1 : vector<8x512xf32>, i32 -> vector<8x512xf32>
    %178 = vector.extract_strided_slice %0 {offsets = [1, 0], sizes = [1, 512], strides = [1, 1]} : vector<9x512xf32> to vector<1x512xf32>
    %179 = vector.broadcast %178 : vector<1x512xf32> to vector<8x512xf32>
    %180 = arith.mulf %177, %179 : vector<8x512xf32>
    %c15_i32_56 = arith.constant 15 : i32
    %181 = tpu.dynamic_rotate %4 by %c15_i32_56 dim 1 : vector<8x512xf32>, i32 -> vector<8x512xf32>
    %182 = vector.extract_strided_slice %0 {offsets = [2, 0], sizes = [1, 512], strides = [1, 1]} : vector<9x512xf32> to vector<1x512xf32>
    %183 = vector.broadcast %182 : vector<1x512xf32> to vector<8x512xf32>
    %184 = arith.mulf %181, %183 : vector<8x512xf32>
    %c1_i32_57 = arith.constant 1 : i32
    %185 = tpu.dynamic_rotate %4 by %c1_i32_57 dim 1 : vector<8x512xf32>, i32 -> vector<8x512xf32>
    %186 = vector.extract_strided_slice %0 {offsets = [3, 0], sizes = [1, 512], strides = [1, 1]} : vector<9x512xf32> to vector<1x512xf32>
    %187 = vector.broadcast %186 : vector<1x512xf32> to vector<8x512xf32>
    %188 = arith.mulf %185, %187 : vector<8x512xf32>
    %c511_i32_58 = arith.constant 511 : i32
    %189 = tpu.dynamic_rotate %4 by %c511_i32_58 dim 1 : vector<8x512xf32>, i32 -> vector<8x512xf32>
    %190 = vector.extract_strided_slice %0 {offsets = [5, 0], sizes = [1, 512], strides = [1, 1]} : vector<9x512xf32> to vector<1x512xf32>
    %191 = vector.broadcast %190 : vector<1x512xf32> to vector<8x512xf32>
    %192 = arith.mulf %189, %191 : vector<8x512xf32>
    %c497_i32_59 = arith.constant 497 : i32
    %193 = tpu.dynamic_rotate %4 by %c497_i32_59 dim 1 : vector<8x512xf32>, i32 -> vector<8x512xf32>
    %194 = vector.extract_strided_slice %0 {offsets = [6, 0], sizes = [1, 512], strides = [1, 1]} : vector<9x512xf32> to vector<1x512xf32>
    %195 = vector.broadcast %194 : vector<1x512xf32> to vector<8x512xf32>
    %196 = arith.mulf %193, %195 : vector<8x512xf32>
    %c496_i32_60 = arith.constant 496 : i32
    %197 = tpu.dynamic_rotate %4 by %c496_i32_60 dim 1 : vector<8x512xf32>, i32 -> vector<8x512xf32>
    %198 = vector.extract_strided_slice %0 {offsets = [7, 0], sizes = [1, 512], strides = [1, 1]} : vector<9x512xf32> to vector<1x512xf32>
    %199 = vector.broadcast %198 : vector<1x512xf32> to vector<8x512xf32>
    %200 = arith.mulf %197, %199 : vector<8x512xf32>
    %c495_i32_61 = arith.constant 495 : i32
    %201 = tpu.dynamic_rotate %4 by %c495_i32_61 dim 1 : vector<8x512xf32>, i32 -> vector<8x512xf32>
    %202 = vector.extract_strided_slice %0 {offsets = [8, 0], sizes = [1, 512], strides = [1, 1]} : vector<9x512xf32> to vector<1x512xf32>
    %203 = vector.broadcast %202 : vector<1x512xf32> to vector<8x512xf32>
    %204 = arith.mulf %201, %203 : vector<8x512xf32>
    %205 = tpu.concatenate %176, %180, %184, %188, %4, %192, %196, %200, %204 in 0 : vector<8x512xf32>, vector<8x512xf32>, vector<8x512xf32>, vector<8x512xf32>, vector<8x512xf32>, vector<8x512xf32>, vector<8x512xf32>, vector<8x512xf32>, vector<8x512xf32> -> vector<72x512xf32>
    %206 = arith.truncf %205 : vector<72x512xf32> to vector<72x512xbf16>
    %c0_62 = arith.constant 0 : index
    %c0_63 = arith.constant 0 : index
    %207 = vector.load %arg13[%c0_62, %c0_63] : memref<32x72xbf16, #tpu.memory_space<vmem>>, vector<32x72xbf16>
    %cst_64 = arith.constant dense<0.000000e+00> : vector<32x512xf32>
    %208 = tpu.matmul %207, %206, %cst_64 {dimension_numbers = #tpu.dot_dimension_numbers<[1], [0], [0], [1], [0, 0, 1, 1], [], []>} : vector<32x72xbf16>, vector<72x512xbf16>, vector<32x512xf32> -> vector<32x512xf32>
    %c0_65 = arith.constant 0 : index
    %c0_66 = arith.constant 0 : index
    %209 = vector.load %arg14[%c0_65, %c0_66] : memref<32x1xf32, #tpu.memory_space<vmem>>, vector<32x1xf32>
    %210 = vector.broadcast %209 : vector<32x1xf32> to vector<32x512xf32>
    %211 = arith.addf %208, %210 : vector<32x512xf32>
    %212 = vector.extract_strided_slice %211 {offsets = [0, 0], sizes = [32, 256], strides = [1, 1]} : vector<32x512xf32> to vector<32x256xf32>
    %213 = vector.shape_cast %212 : vector<32x256xf32> to vector<1x32x256xf32>
    %cst_67 = arith.constant dense<0.000000e+00> : vector<1xf32>
    %214 = vector.multi_reduction <add>, %213, %cst_67 [1, 2] : vector<1x32x256xf32> to vector<1xf32>
    %215 = vector.shape_cast %214 : vector<1xf32> to vector<1x1x1xf32>
    %216 = vector.extract %215[0, 0, 0] : f32 from vector<1x1x1xf32>
    %217 = arith.mulf %212, %212 : vector<32x256xf32>
    %218 = vector.shape_cast %217 : vector<32x256xf32> to vector<1x32x256xf32>
    %cst_68 = arith.constant dense<0.000000e+00> : vector<1xf32>
    %219 = vector.multi_reduction <add>, %218, %cst_68 [1, 2] : vector<1x32x256xf32> to vector<1xf32>
    %220 = vector.shape_cast %219 : vector<1xf32> to vector<1x1x1xf32>
    %221 = vector.extract %220[0, 0, 0] : f32 from vector<1x1x1xf32>
    %cst_69 = arith.constant 1.22070313E-4 : f32
    %222 = arith.mulf %216, %cst_69 : f32
    %cst_70 = arith.constant 1.22070313E-4 : f32
    %223 = arith.mulf %221, %cst_70 : f32
    %224 = arith.mulf %222, %222 : f32
    %225 = arith.subf %223, %224 : f32
    %cst_71 = arith.constant 9.99999974E-6 : f32
    %226 = arith.addf %225, %cst_71 : f32
    %227 = math.rsqrt %226 : f32
    %228 = vector.broadcast %222 : f32 to vector<32x256xf32>
    %229 = arith.subf %212, %228 : vector<32x256xf32>
    %230 = vector.broadcast %227 : f32 to vector<32x256xf32>
    %231 = arith.mulf %229, %230 : vector<32x256xf32>
    %232 = vector.extract_strided_slice %211 {offsets = [0, 256], sizes = [32, 256], strides = [1, 1]} : vector<32x512xf32> to vector<32x256xf32>
    %233 = vector.shape_cast %232 : vector<32x256xf32> to vector<1x32x256xf32>
    %cst_72 = arith.constant dense<0.000000e+00> : vector<1xf32>
    %234 = vector.multi_reduction <add>, %233, %cst_72 [1, 2] : vector<1x32x256xf32> to vector<1xf32>
    %235 = vector.shape_cast %234 : vector<1xf32> to vector<1x1x1xf32>
    %236 = vector.extract %235[0, 0, 0] : f32 from vector<1x1x1xf32>
    %237 = arith.mulf %232, %232 : vector<32x256xf32>
    %238 = vector.shape_cast %237 : vector<32x256xf32> to vector<1x32x256xf32>
    %cst_73 = arith.constant dense<0.000000e+00> : vector<1xf32>
    %239 = vector.multi_reduction <add>, %238, %cst_73 [1, 2] : vector<1x32x256xf32> to vector<1xf32>
    %240 = vector.shape_cast %239 : vector<1xf32> to vector<1x1x1xf32>
    %241 = vector.extract %240[0, 0, 0] : f32 from vector<1x1x1xf32>
    %cst_74 = arith.constant 1.22070313E-4 : f32
    %242 = arith.mulf %236, %cst_74 : f32
    %cst_75 = arith.constant 1.22070313E-4 : f32
    %243 = arith.mulf %241, %cst_75 : f32
    %244 = arith.mulf %242, %242 : f32
    %245 = arith.subf %243, %244 : f32
    %cst_76 = arith.constant 9.99999974E-6 : f32
    %246 = arith.addf %245, %cst_76 : f32
    %247 = math.rsqrt %246 : f32
    %248 = vector.broadcast %242 : f32 to vector<32x256xf32>
    %249 = arith.subf %232, %248 : vector<32x256xf32>
    %250 = vector.broadcast %247 : f32 to vector<32x256xf32>
    %251 = arith.mulf %249, %250 : vector<32x256xf32>
    %252 = tpu.concatenate %231, %251 in 1 : vector<32x256xf32>, vector<32x256xf32> -> vector<32x512xf32>
    %c0_77 = arith.constant 0 : index
    %c0_78 = arith.constant 0 : index
    %253 = vector.load %arg15[%c0_77, %c0_78] : memref<32x512xf32, #tpu.memory_space<vmem>>, vector<32x512xf32>
    %254 = arith.mulf %252, %253 : vector<32x512xf32>
    %c0_79 = arith.constant 0 : index
    %c0_80 = arith.constant 0 : index
    %255 = vector.load %arg16[%c0_79, %c0_80] : memref<32x512xf32, #tpu.memory_space<vmem>>, vector<32x512xf32>
    %256 = arith.addf %254, %255 : vector<32x512xf32>
    %c17_i32_81 = arith.constant 17 : i32
    %257 = tpu.dynamic_rotate %3 by %c17_i32_81 dim 1 : vector<8x512xf32>, i32 -> vector<8x512xf32>
    %258 = vector.extract_strided_slice %0 {offsets = [0, 0], sizes = [1, 512], strides = [1, 1]} : vector<9x512xf32> to vector<1x512xf32>
    %259 = vector.broadcast %258 : vector<1x512xf32> to vector<8x512xf32>
    %260 = arith.mulf %257, %259 : vector<8x512xf32>
    %c16_i32_82 = arith.constant 16 : i32
    %261 = tpu.dynamic_rotate %3 by %c16_i32_82 dim 1 : vector<8x512xf32>, i32 -> vector<8x512xf32>
    %262 = vector.extract_strided_slice %0 {offsets = [1, 0], sizes = [1, 512], strides = [1, 1]} : vector<9x512xf32> to vector<1x512xf32>
    %263 = vector.broadcast %262 : vector<1x512xf32> to vector<8x512xf32>
    %264 = arith.mulf %261, %263 : vector<8x512xf32>
    %c15_i32_83 = arith.constant 15 : i32
    %265 = tpu.dynamic_rotate %3 by %c15_i32_83 dim 1 : vector<8x512xf32>, i32 -> vector<8x512xf32>
    %266 = vector.extract_strided_slice %0 {offsets = [2, 0], sizes = [1, 512], strides = [1, 1]} : vector<9x512xf32> to vector<1x512xf32>
    %267 = vector.broadcast %266 : vector<1x512xf32> to vector<8x512xf32>
    %268 = arith.mulf %265, %267 : vector<8x512xf32>
    %c1_i32_84 = arith.constant 1 : i32
    %269 = tpu.dynamic_rotate %3 by %c1_i32_84 dim 1 : vector<8x512xf32>, i32 -> vector<8x512xf32>
    %270 = vector.extract_strided_slice %0 {offsets = [3, 0], sizes = [1, 512], strides = [1, 1]} : vector<9x512xf32> to vector<1x512xf32>
    %271 = vector.broadcast %270 : vector<1x512xf32> to vector<8x512xf32>
    %272 = arith.mulf %269, %271 : vector<8x512xf32>
    %c511_i32_85 = arith.constant 511 : i32
    %273 = tpu.dynamic_rotate %3 by %c511_i32_85 dim 1 : vector<8x512xf32>, i32 -> vector<8x512xf32>
    %274 = vector.extract_strided_slice %0 {offsets = [5, 0], sizes = [1, 512], strides = [1, 1]} : vector<9x512xf32> to vector<1x512xf32>
    %275 = vector.broadcast %274 : vector<1x512xf32> to vector<8x512xf32>
    %276 = arith.mulf %273, %275 : vector<8x512xf32>
    %c497_i32_86 = arith.constant 497 : i32
    %277 = tpu.dynamic_rotate %3 by %c497_i32_86 dim 1 : vector<8x512xf32>, i32 -> vector<8x512xf32>
    %278 = vector.extract_strided_slice %0 {offsets = [6, 0], sizes = [1, 512], strides = [1, 1]} : vector<9x512xf32> to vector<1x512xf32>
    %279 = vector.broadcast %278 : vector<1x512xf32> to vector<8x512xf32>
    %280 = arith.mulf %277, %279 : vector<8x512xf32>
    %c496_i32_87 = arith.constant 496 : i32
    %281 = tpu.dynamic_rotate %3 by %c496_i32_87 dim 1 : vector<8x512xf32>, i32 -> vector<8x512xf32>
    %282 = vector.extract_strided_slice %0 {offsets = [7, 0], sizes = [1, 512], strides = [1, 1]} : vector<9x512xf32> to vector<1x512xf32>
    %283 = vector.broadcast %282 : vector<1x512xf32> to vector<8x512xf32>
    %284 = arith.mulf %281, %283 : vector<8x512xf32>
    %c495_i32_88 = arith.constant 495 : i32
    %285 = tpu.dynamic_rotate %3 by %c495_i32_88 dim 1 : vector<8x512xf32>, i32 -> vector<8x512xf32>
    %286 = vector.extract_strided_slice %0 {offsets = [8, 0], sizes = [1, 512], strides = [1, 1]} : vector<9x512xf32> to vector<1x512xf32>
    %287 = vector.broadcast %286 : vector<1x512xf32> to vector<8x512xf32>
    %288 = arith.mulf %285, %287 : vector<8x512xf32>
    %289 = tpu.concatenate %260, %264, %268, %272, %3, %276, %280, %284, %288 in 0 : vector<8x512xf32>, vector<8x512xf32>, vector<8x512xf32>, vector<8x512xf32>, vector<8x512xf32>, vector<8x512xf32>, vector<8x512xf32>, vector<8x512xf32>, vector<8x512xf32> -> vector<72x512xf32>
    %290 = arith.truncf %289 : vector<72x512xf32> to vector<72x512xbf16>
    %c0_89 = arith.constant 0 : index
    %c0_90 = arith.constant 0 : index
    %291 = vector.load %arg17[%c0_89, %c0_90] : memref<24x72xbf16, #tpu.memory_space<vmem>>, vector<24x72xbf16>
    %cst_91 = arith.constant dense<0.000000e+00> : vector<24x512xf32>
    %292 = tpu.matmul %291, %290, %cst_91 {dimension_numbers = #tpu.dot_dimension_numbers<[1], [0], [0], [1], [0, 0, 1, 1], [], []>} : vector<24x72xbf16>, vector<72x512xbf16>, vector<24x512xf32> -> vector<24x512xf32>
    %c0_92 = arith.constant 0 : index
    %c0_93 = arith.constant 0 : index
    %293 = vector.load %arg18[%c0_92, %c0_93] : memref<24x1xf32, #tpu.memory_space<vmem>>, vector<24x1xf32>
    %294 = vector.broadcast %293 : vector<24x1xf32> to vector<24x512xf32>
    %295 = arith.addf %292, %294 : vector<24x512xf32>
    %296 = vector.extract_strided_slice %295 {offsets = [0, 0], sizes = [24, 256], strides = [1, 1]} : vector<24x512xf32> to vector<24x256xf32>
    %297 = vector.shape_cast %296 : vector<24x256xf32> to vector<1x24x256xf32>
    %cst_94 = arith.constant dense<0.000000e+00> : vector<1xf32>
    %298 = vector.multi_reduction <add>, %297, %cst_94 [1, 2] : vector<1x24x256xf32> to vector<1xf32>
    %299 = vector.shape_cast %298 : vector<1xf32> to vector<1x1x1xf32>
    %300 = vector.extract %299[0, 0, 0] : f32 from vector<1x1x1xf32>
    %301 = arith.mulf %296, %296 : vector<24x256xf32>
    %302 = vector.shape_cast %301 : vector<24x256xf32> to vector<1x24x256xf32>
    %cst_95 = arith.constant dense<0.000000e+00> : vector<1xf32>
    %303 = vector.multi_reduction <add>, %302, %cst_95 [1, 2] : vector<1x24x256xf32> to vector<1xf32>
    %304 = vector.shape_cast %303 : vector<1xf32> to vector<1x1x1xf32>
    %305 = vector.extract %304[0, 0, 0] : f32 from vector<1x1x1xf32>
    %cst_96 = arith.constant 1.62760422E-4 : f32
    %306 = arith.mulf %300, %cst_96 : f32
    %cst_97 = arith.constant 1.62760422E-4 : f32
    %307 = arith.mulf %305, %cst_97 : f32
    %308 = arith.mulf %306, %306 : f32
    %309 = arith.subf %307, %308 : f32
    %cst_98 = arith.constant 9.99999974E-6 : f32
    %310 = arith.addf %309, %cst_98 : f32
    %311 = math.rsqrt %310 : f32
    %312 = vector.broadcast %306 : f32 to vector<24x256xf32>
    %313 = arith.subf %296, %312 : vector<24x256xf32>
    %314 = vector.broadcast %311 : f32 to vector<24x256xf32>
    %315 = arith.mulf %313, %314 : vector<24x256xf32>
    %316 = vector.extract_strided_slice %295 {offsets = [0, 256], sizes = [24, 256], strides = [1, 1]} : vector<24x512xf32> to vector<24x256xf32>
    %317 = vector.shape_cast %316 : vector<24x256xf32> to vector<1x24x256xf32>
    %cst_99 = arith.constant dense<0.000000e+00> : vector<1xf32>
    %318 = vector.multi_reduction <add>, %317, %cst_99 [1, 2] : vector<1x24x256xf32> to vector<1xf32>
    %319 = vector.shape_cast %318 : vector<1xf32> to vector<1x1x1xf32>
    %320 = vector.extract %319[0, 0, 0] : f32 from vector<1x1x1xf32>
    %321 = arith.mulf %316, %316 : vector<24x256xf32>
    %322 = vector.shape_cast %321 : vector<24x256xf32> to vector<1x24x256xf32>
    %cst_100 = arith.constant dense<0.000000e+00> : vector<1xf32>
    %323 = vector.multi_reduction <add>, %322, %cst_100 [1, 2] : vector<1x24x256xf32> to vector<1xf32>
    %324 = vector.shape_cast %323 : vector<1xf32> to vector<1x1x1xf32>
    %325 = vector.extract %324[0, 0, 0] : f32 from vector<1x1x1xf32>
    %cst_101 = arith.constant 1.62760422E-4 : f32
    %326 = arith.mulf %320, %cst_101 : f32
    %cst_102 = arith.constant 1.62760422E-4 : f32
    %327 = arith.mulf %325, %cst_102 : f32
    %328 = arith.mulf %326, %326 : f32
    %329 = arith.subf %327, %328 : f32
    %cst_103 = arith.constant 9.99999974E-6 : f32
    %330 = arith.addf %329, %cst_103 : f32
    %331 = math.rsqrt %330 : f32
    %332 = vector.broadcast %326 : f32 to vector<24x256xf32>
    %333 = arith.subf %316, %332 : vector<24x256xf32>
    %334 = vector.broadcast %331 : f32 to vector<24x256xf32>
    %335 = arith.mulf %333, %334 : vector<24x256xf32>
    %336 = tpu.concatenate %315, %335 in 1 : vector<24x256xf32>, vector<24x256xf32> -> vector<24x512xf32>
    %c0_104 = arith.constant 0 : index
    %c0_105 = arith.constant 0 : index
    %337 = vector.load %arg19[%c0_104, %c0_105] : memref<24x512xf32, #tpu.memory_space<vmem>>, vector<24x512xf32>
    %338 = arith.mulf %336, %337 : vector<24x512xf32>
    %c0_106 = arith.constant 0 : index
    %c0_107 = arith.constant 0 : index
    %339 = vector.load %arg20[%c0_106, %c0_107] : memref<24x512xf32, #tpu.memory_space<vmem>>, vector<24x512xf32>
    %340 = arith.addf %338, %339 : vector<24x512xf32>
    %341 = vector.extract_strided_slice %88 {offsets = [0, 0], sizes = [8, 512], strides = [1, 1]} : vector<56x512xf32> to vector<8x512xf32>
    %342 = vector.extract_strided_slice %172 {offsets = [0, 0], sizes = [8, 512], strides = [1, 1]} : vector<24x512xf32> to vector<8x512xf32>
    %343 = arith.addf %341, %342 : vector<8x512xf32>
    %344 = vector.extract_strided_slice %340 {offsets = [0, 0], sizes = [8, 512], strides = [1, 1]} : vector<24x512xf32> to vector<8x512xf32>
    %345 = arith.addf %343, %344 : vector<8x512xf32>
    %cst_108 = arith.constant 5.000000e-01 : f32
    %346 = vector.broadcast %cst_108 : f32 to vector<8x512xf32>
    %347 = arith.mulf %346, %345 : vector<8x512xf32>
    %348 = math.tanh %347 : vector<8x512xf32>
    %cst_109 = arith.constant 5.000000e-01 : f32
    %349 = vector.broadcast %cst_109 : f32 to vector<8x512xf32>
    %350 = arith.mulf %349, %348 : vector<8x512xf32>
    %cst_110 = arith.constant 5.000000e-01 : f32
    %351 = vector.broadcast %cst_110 : f32 to vector<8x512xf32>
    %352 = arith.addf %350, %351 : vector<8x512xf32>
    %353 = vector.extract_strided_slice %88 {offsets = [8, 0], sizes = [8, 512], strides = [1, 1]} : vector<56x512xf32> to vector<8x512xf32>
    %354 = vector.extract_strided_slice %172 {offsets = [8, 0], sizes = [8, 512], strides = [1, 1]} : vector<24x512xf32> to vector<8x512xf32>
    %355 = arith.addf %353, %354 : vector<8x512xf32>
    %356 = vector.extract_strided_slice %340 {offsets = [8, 0], sizes = [8, 512], strides = [1, 1]} : vector<24x512xf32> to vector<8x512xf32>
    %357 = arith.addf %355, %356 : vector<8x512xf32>
    %cst_111 = arith.constant 5.000000e-01 : f32
    %358 = vector.broadcast %cst_111 : f32 to vector<8x512xf32>
    %359 = arith.mulf %358, %357 : vector<8x512xf32>
    %360 = math.tanh %359 : vector<8x512xf32>
    %cst_112 = arith.constant 5.000000e-01 : f32
    %361 = vector.broadcast %cst_112 : f32 to vector<8x512xf32>
    %362 = arith.mulf %361, %360 : vector<8x512xf32>
    %cst_113 = arith.constant 5.000000e-01 : f32
    %363 = vector.broadcast %cst_113 : f32 to vector<8x512xf32>
    %364 = arith.addf %362, %363 : vector<8x512xf32>
    %365 = vector.extract_strided_slice %88 {offsets = [16, 0], sizes = [8, 512], strides = [1, 1]} : vector<56x512xf32> to vector<8x512xf32>
    %366 = vector.extract_strided_slice %172 {offsets = [16, 0], sizes = [8, 512], strides = [1, 1]} : vector<24x512xf32> to vector<8x512xf32>
    %367 = arith.addf %365, %366 : vector<8x512xf32>
    %368 = vector.extract_strided_slice %340 {offsets = [16, 0], sizes = [8, 512], strides = [1, 1]} : vector<24x512xf32> to vector<8x512xf32>
    %369 = arith.addf %367, %368 : vector<8x512xf32>
    %370 = math.tanh %369 : vector<8x512xf32>
    %371 = arith.mulf %364, %3 : vector<8x512xf32>
    %372 = arith.mulf %352, %370 : vector<8x512xf32>
    %373 = arith.addf %371, %372 : vector<8x512xf32>
    %c17_i32_114 = arith.constant 17 : i32
    %374 = tpu.dynamic_rotate %373 by %c17_i32_114 dim 1 : vector<8x512xf32>, i32 -> vector<8x512xf32>
    %375 = vector.extract_strided_slice %0 {offsets = [0, 0], sizes = [1, 512], strides = [1, 1]} : vector<9x512xf32> to vector<1x512xf32>
    %376 = vector.broadcast %375 : vector<1x512xf32> to vector<8x512xf32>
    %377 = arith.mulf %374, %376 : vector<8x512xf32>
    %c16_i32_115 = arith.constant 16 : i32
    %378 = tpu.dynamic_rotate %373 by %c16_i32_115 dim 1 : vector<8x512xf32>, i32 -> vector<8x512xf32>
    %379 = vector.extract_strided_slice %0 {offsets = [1, 0], sizes = [1, 512], strides = [1, 1]} : vector<9x512xf32> to vector<1x512xf32>
    %380 = vector.broadcast %379 : vector<1x512xf32> to vector<8x512xf32>
    %381 = arith.mulf %378, %380 : vector<8x512xf32>
    %c15_i32_116 = arith.constant 15 : i32
    %382 = tpu.dynamic_rotate %373 by %c15_i32_116 dim 1 : vector<8x512xf32>, i32 -> vector<8x512xf32>
    %383 = vector.extract_strided_slice %0 {offsets = [2, 0], sizes = [1, 512], strides = [1, 1]} : vector<9x512xf32> to vector<1x512xf32>
    %384 = vector.broadcast %383 : vector<1x512xf32> to vector<8x512xf32>
    %385 = arith.mulf %382, %384 : vector<8x512xf32>
    %c1_i32_117 = arith.constant 1 : i32
    %386 = tpu.dynamic_rotate %373 by %c1_i32_117 dim 1 : vector<8x512xf32>, i32 -> vector<8x512xf32>
    %387 = vector.extract_strided_slice %0 {offsets = [3, 0], sizes = [1, 512], strides = [1, 1]} : vector<9x512xf32> to vector<1x512xf32>
    %388 = vector.broadcast %387 : vector<1x512xf32> to vector<8x512xf32>
    %389 = arith.mulf %386, %388 : vector<8x512xf32>
    %c511_i32_118 = arith.constant 511 : i32
    %390 = tpu.dynamic_rotate %373 by %c511_i32_118 dim 1 : vector<8x512xf32>, i32 -> vector<8x512xf32>
    %391 = vector.extract_strided_slice %0 {offsets = [5, 0], sizes = [1, 512], strides = [1, 1]} : vector<9x512xf32> to vector<1x512xf32>
    %392 = vector.broadcast %391 : vector<1x512xf32> to vector<8x512xf32>
    %393 = arith.mulf %390, %392 : vector<8x512xf32>
    %c497_i32_119 = arith.constant 497 : i32
    %394 = tpu.dynamic_rotate %373 by %c497_i32_119 dim 1 : vector<8x512xf32>, i32 -> vector<8x512xf32>
    %395 = vector.extract_strided_slice %0 {offsets = [6, 0], sizes = [1, 512], strides = [1, 1]} : vector<9x512xf32> to vector<1x512xf32>
    %396 = vector.broadcast %395 : vector<1x512xf32> to vector<8x512xf32>
    %397 = arith.mulf %394, %396 : vector<8x512xf32>
    %c496_i32_120 = arith.constant 496 : i32
    %398 = tpu.dynamic_rotate %373 by %c496_i32_120 dim 1 : vector<8x512xf32>, i32 -> vector<8x512xf32>
    %399 = vector.extract_strided_slice %0 {offsets = [7, 0], sizes = [1, 512], strides = [1, 1]} : vector<9x512xf32> to vector<1x512xf32>
    %400 = vector.broadcast %399 : vector<1x512xf32> to vector<8x512xf32>
    %401 = arith.mulf %398, %400 : vector<8x512xf32>
    %c495_i32_121 = arith.constant 495 : i32
    %402 = tpu.dynamic_rotate %373 by %c495_i32_121 dim 1 : vector<8x512xf32>, i32 -> vector<8x512xf32>
    %403 = vector.extract_strided_slice %0 {offsets = [8, 0], sizes = [1, 512], strides = [1, 1]} : vector<9x512xf32> to vector<1x512xf32>
    %404 = vector.broadcast %403 : vector<1x512xf32> to vector<8x512xf32>
    %405 = arith.mulf %402, %404 : vector<8x512xf32>
    %406 = tpu.concatenate %377, %381, %385, %389, %373, %393, %397, %401, %405 in 0 : vector<8x512xf32>, vector<8x512xf32>, vector<8x512xf32>, vector<8x512xf32>, vector<8x512xf32>, vector<8x512xf32>, vector<8x512xf32>, vector<8x512xf32>, vector<8x512xf32> -> vector<72x512xf32>
    %407 = arith.truncf %406 : vector<72x512xf32> to vector<72x512xbf16>
    %c0_122 = arith.constant 0 : index
    %c0_123 = arith.constant 0 : index
    %408 = vector.load %arg21[%c0_122, %c0_123] : memref<24x72xbf16, #tpu.memory_space<vmem>>, vector<24x72xbf16>
    %cst_124 = arith.constant dense<0.000000e+00> : vector<24x512xf32>
    %409 = tpu.matmul %408, %407, %cst_124 {dimension_numbers = #tpu.dot_dimension_numbers<[1], [0], [0], [1], [0, 0, 1, 1], [], []>} : vector<24x72xbf16>, vector<72x512xbf16>, vector<24x512xf32> -> vector<24x512xf32>
    %c0_125 = arith.constant 0 : index
    %c0_126 = arith.constant 0 : index
    %410 = vector.load %arg22[%c0_125, %c0_126] : memref<24x1xf32, #tpu.memory_space<vmem>>, vector<24x1xf32>
    %411 = vector.broadcast %410 : vector<24x1xf32> to vector<24x512xf32>
    %412 = arith.addf %409, %411 : vector<24x512xf32>
    %413 = vector.extract_strided_slice %412 {offsets = [0, 0], sizes = [24, 256], strides = [1, 1]} : vector<24x512xf32> to vector<24x256xf32>
    %414 = vector.shape_cast %413 : vector<24x256xf32> to vector<1x24x256xf32>
    %cst_127 = arith.constant dense<0.000000e+00> : vector<1xf32>
    %415 = vector.multi_reduction <add>, %414, %cst_127 [1, 2] : vector<1x24x256xf32> to vector<1xf32>
    %416 = vector.shape_cast %415 : vector<1xf32> to vector<1x1x1xf32>
    %417 = vector.extract %416[0, 0, 0] : f32 from vector<1x1x1xf32>
    %418 = arith.mulf %413, %413 : vector<24x256xf32>
    %419 = vector.shape_cast %418 : vector<24x256xf32> to vector<1x24x256xf32>
    %cst_128 = arith.constant dense<0.000000e+00> : vector<1xf32>
    %420 = vector.multi_reduction <add>, %419, %cst_128 [1, 2] : vector<1x24x256xf32> to vector<1xf32>
    %421 = vector.shape_cast %420 : vector<1xf32> to vector<1x1x1xf32>
    %422 = vector.extract %421[0, 0, 0] : f32 from vector<1x1x1xf32>
    %cst_129 = arith.constant 1.62760422E-4 : f32
    %423 = arith.mulf %417, %cst_129 : f32
    %cst_130 = arith.constant 1.62760422E-4 : f32
    %424 = arith.mulf %422, %cst_130 : f32
    %425 = arith.mulf %423, %423 : f32
    %426 = arith.subf %424, %425 : f32
    %cst_131 = arith.constant 9.99999974E-6 : f32
    %427 = arith.addf %426, %cst_131 : f32
    %428 = math.rsqrt %427 : f32
    %429 = vector.broadcast %423 : f32 to vector<24x256xf32>
    %430 = arith.subf %413, %429 : vector<24x256xf32>
    %431 = vector.broadcast %428 : f32 to vector<24x256xf32>
    %432 = arith.mulf %430, %431 : vector<24x256xf32>
    %433 = vector.extract_strided_slice %412 {offsets = [0, 256], sizes = [24, 256], strides = [1, 1]} : vector<24x512xf32> to vector<24x256xf32>
    %434 = vector.shape_cast %433 : vector<24x256xf32> to vector<1x24x256xf32>
    %cst_132 = arith.constant dense<0.000000e+00> : vector<1xf32>
    %435 = vector.multi_reduction <add>, %434, %cst_132 [1, 2] : vector<1x24x256xf32> to vector<1xf32>
    %436 = vector.shape_cast %435 : vector<1xf32> to vector<1x1x1xf32>
    %437 = vector.extract %436[0, 0, 0] : f32 from vector<1x1x1xf32>
    %438 = arith.mulf %433, %433 : vector<24x256xf32>
    %439 = vector.shape_cast %438 : vector<24x256xf32> to vector<1x24x256xf32>
    %cst_133 = arith.constant dense<0.000000e+00> : vector<1xf32>
    %440 = vector.multi_reduction <add>, %439, %cst_133 [1, 2] : vector<1x24x256xf32> to vector<1xf32>
    %441 = vector.shape_cast %440 : vector<1xf32> to vector<1x1x1xf32>
    %442 = vector.extract %441[0, 0, 0] : f32 from vector<1x1x1xf32>
    %cst_134 = arith.constant 1.62760422E-4 : f32
    %443 = arith.mulf %437, %cst_134 : f32
    %cst_135 = arith.constant 1.62760422E-4 : f32
    %444 = arith.mulf %442, %cst_135 : f32
    %445 = arith.mulf %443, %443 : f32
    %446 = arith.subf %444, %445 : f32
    %cst_136 = arith.constant 9.99999974E-6 : f32
    %447 = arith.addf %446, %cst_136 : f32
    %448 = math.rsqrt %447 : f32
    %449 = vector.broadcast %443 : f32 to vector<24x256xf32>
    %450 = arith.subf %433, %449 : vector<24x256xf32>
    %451 = vector.broadcast %448 : f32 to vector<24x256xf32>
    %452 = arith.mulf %450, %451 : vector<24x256xf32>
    %453 = tpu.concatenate %432, %452 in 1 : vector<24x256xf32>, vector<24x256xf32> -> vector<24x512xf32>
    %c0_137 = arith.constant 0 : index
    %c0_138 = arith.constant 0 : index
    %454 = vector.load %arg23[%c0_137, %c0_138] : memref<24x512xf32, #tpu.memory_space<vmem>>, vector<24x512xf32>
    %455 = arith.mulf %453, %454 : vector<24x512xf32>
    %c0_139 = arith.constant 0 : index
    %c0_140 = arith.constant 0 : index
    %456 = vector.load %arg24[%c0_139, %c0_140] : memref<24x512xf32, #tpu.memory_space<vmem>>, vector<24x512xf32>
    %457 = arith.addf %455, %456 : vector<24x512xf32>
    %458 = vector.extract_strided_slice %88 {offsets = [24, 0], sizes = [8, 512], strides = [1, 1]} : vector<56x512xf32> to vector<8x512xf32>
    %459 = vector.extract_strided_slice %256 {offsets = [0, 0], sizes = [8, 512], strides = [1, 1]} : vector<32x512xf32> to vector<8x512xf32>
    %460 = arith.addf %458, %459 : vector<8x512xf32>
    %461 = vector.extract_strided_slice %457 {offsets = [0, 0], sizes = [8, 512], strides = [1, 1]} : vector<24x512xf32> to vector<8x512xf32>
    %462 = arith.addf %460, %461 : vector<8x512xf32>
    %cst_141 = arith.constant 5.000000e-01 : f32
    %463 = vector.broadcast %cst_141 : f32 to vector<8x512xf32>
    %464 = arith.mulf %463, %462 : vector<8x512xf32>
    %465 = math.tanh %464 : vector<8x512xf32>
    %cst_142 = arith.constant 5.000000e-01 : f32
    %466 = vector.broadcast %cst_142 : f32 to vector<8x512xf32>
    %467 = arith.mulf %466, %465 : vector<8x512xf32>
    %cst_143 = arith.constant 5.000000e-01 : f32
    %468 = vector.broadcast %cst_143 : f32 to vector<8x512xf32>
    %469 = arith.addf %467, %468 : vector<8x512xf32>
    %470 = vector.extract_strided_slice %88 {offsets = [32, 0], sizes = [8, 512], strides = [1, 1]} : vector<56x512xf32> to vector<8x512xf32>
    %471 = vector.extract_strided_slice %256 {offsets = [8, 0], sizes = [8, 512], strides = [1, 1]} : vector<32x512xf32> to vector<8x512xf32>
    %472 = arith.addf %470, %471 : vector<8x512xf32>
    %473 = vector.extract_strided_slice %457 {offsets = [8, 0], sizes = [8, 512], strides = [1, 1]} : vector<24x512xf32> to vector<8x512xf32>
    %474 = arith.addf %472, %473 : vector<8x512xf32>
    %cst_144 = arith.constant 5.000000e-01 : f32
    %475 = vector.broadcast %cst_144 : f32 to vector<8x512xf32>
    %476 = arith.mulf %475, %474 : vector<8x512xf32>
    %477 = math.tanh %476 : vector<8x512xf32>
    %cst_145 = arith.constant 5.000000e-01 : f32
    %478 = vector.broadcast %cst_145 : f32 to vector<8x512xf32>
    %479 = arith.mulf %478, %477 : vector<8x512xf32>
    %cst_146 = arith.constant 5.000000e-01 : f32
    %480 = vector.broadcast %cst_146 : f32 to vector<8x512xf32>
    %481 = arith.addf %479, %480 : vector<8x512xf32>
    %482 = vector.extract_strided_slice %88 {offsets = [40, 0], sizes = [8, 512], strides = [1, 1]} : vector<56x512xf32> to vector<8x512xf32>
    %483 = vector.extract_strided_slice %256 {offsets = [16, 0], sizes = [8, 512], strides = [1, 1]} : vector<32x512xf32> to vector<8x512xf32>
    %484 = arith.addf %482, %483 : vector<8x512xf32>
    %485 = vector.extract_strided_slice %457 {offsets = [16, 0], sizes = [8, 512], strides = [1, 1]} : vector<24x512xf32> to vector<8x512xf32>
    %486 = arith.addf %484, %485 : vector<8x512xf32>
    %487 = math.tanh %486 : vector<8x512xf32>
    %488 = vector.extract_strided_slice %256 {offsets = [24, 0], sizes = [8, 512], strides = [1, 1]} : vector<32x512xf32> to vector<8x512xf32>
    %489 = math.tanh %488 : vector<8x512xf32>
    %490 = arith.mulf %481, %489 : vector<8x512xf32>
    %491 = arith.mulf %469, %487 : vector<8x512xf32>
    %492 = arith.addf %490, %491 : vector<8x512xf32>
    %c17_i32_147 = arith.constant 17 : i32
    %493 = tpu.dynamic_rotate %492 by %c17_i32_147 dim 1 : vector<8x512xf32>, i32 -> vector<8x512xf32>
    %494 = vector.extract_strided_slice %0 {offsets = [0, 0], sizes = [1, 512], strides = [1, 1]} : vector<9x512xf32> to vector<1x512xf32>
    %495 = vector.broadcast %494 : vector<1x512xf32> to vector<8x512xf32>
    %496 = arith.mulf %493, %495 : vector<8x512xf32>
    %c16_i32_148 = arith.constant 16 : i32
    %497 = tpu.dynamic_rotate %492 by %c16_i32_148 dim 1 : vector<8x512xf32>, i32 -> vector<8x512xf32>
    %498 = vector.extract_strided_slice %0 {offsets = [1, 0], sizes = [1, 512], strides = [1, 1]} : vector<9x512xf32> to vector<1x512xf32>
    %499 = vector.broadcast %498 : vector<1x512xf32> to vector<8x512xf32>
    %500 = arith.mulf %497, %499 : vector<8x512xf32>
    %c15_i32_149 = arith.constant 15 : i32
    %501 = tpu.dynamic_rotate %492 by %c15_i32_149 dim 1 : vector<8x512xf32>, i32 -> vector<8x512xf32>
    %502 = vector.extract_strided_slice %0 {offsets = [2, 0], sizes = [1, 512], strides = [1, 1]} : vector<9x512xf32> to vector<1x512xf32>
    %503 = vector.broadcast %502 : vector<1x512xf32> to vector<8x512xf32>
    %504 = arith.mulf %501, %503 : vector<8x512xf32>
    %c1_i32_150 = arith.constant 1 : i32
    %505 = tpu.dynamic_rotate %492 by %c1_i32_150 dim 1 : vector<8x512xf32>, i32 -> vector<8x512xf32>
    %506 = vector.extract_strided_slice %0 {offsets = [3, 0], sizes = [1, 512], strides = [1, 1]} : vector<9x512xf32> to vector<1x512xf32>
    %507 = vector.broadcast %506 : vector<1x512xf32> to vector<8x512xf32>
    %508 = arith.mulf %505, %507 : vector<8x512xf32>
    %c511_i32_151 = arith.constant 511 : i32
    %509 = tpu.dynamic_rotate %492 by %c511_i32_151 dim 1 : vector<8x512xf32>, i32 -> vector<8x512xf32>
    %510 = vector.extract_strided_slice %0 {offsets = [5, 0], sizes = [1, 512], strides = [1, 1]} : vector<9x512xf32> to vector<1x512xf32>
    %511 = vector.broadcast %510 : vector<1x512xf32> to vector<8x512xf32>
    %512 = arith.mulf %509, %511 : vector<8x512xf32>
    %c497_i32_152 = arith.constant 497 : i32
    %513 = tpu.dynamic_rotate %492 by %c497_i32_152 dim 1 : vector<8x512xf32>, i32 -> vector<8x512xf32>
    %514 = vector.extract_strided_slice %0 {offsets = [6, 0], sizes = [1, 512], strides = [1, 1]} : vector<9x512xf32> to vector<1x512xf32>
    %515 = vector.broadcast %514 : vector<1x512xf32> to vector<8x512xf32>
    %516 = arith.mulf %513, %515 : vector<8x512xf32>
    %c496_i32_153 = arith.constant 496 : i32
    %517 = tpu.dynamic_rotate %492 by %c496_i32_153 dim 1 : vector<8x512xf32>, i32 -> vector<8x512xf32>
    %518 = vector.extract_strided_slice %0 {offsets = [7, 0], sizes = [1, 512], strides = [1, 1]} : vector<9x512xf32> to vector<1x512xf32>
    %519 = vector.broadcast %518 : vector<1x512xf32> to vector<8x512xf32>
    %520 = arith.mulf %517, %519 : vector<8x512xf32>
    %c495_i32_154 = arith.constant 495 : i32
    %521 = tpu.dynamic_rotate %492 by %c495_i32_154 dim 1 : vector<8x512xf32>, i32 -> vector<8x512xf32>
    %522 = vector.extract_strided_slice %0 {offsets = [8, 0], sizes = [1, 512], strides = [1, 1]} : vector<9x512xf32> to vector<1x512xf32>
    %523 = vector.broadcast %522 : vector<1x512xf32> to vector<8x512xf32>
    %524 = arith.mulf %521, %523 : vector<8x512xf32>
    %525 = tpu.concatenate %496, %500, %504, %508, %492, %512, %516, %520, %524 in 0 : vector<8x512xf32>, vector<8x512xf32>, vector<8x512xf32>, vector<8x512xf32>, vector<8x512xf32>, vector<8x512xf32>, vector<8x512xf32>, vector<8x512xf32>, vector<8x512xf32> -> vector<72x512xf32>
    %526 = arith.truncf %525 : vector<72x512xf32> to vector<72x512xbf16>
    %c0_155 = arith.constant 0 : index
    %c0_156 = arith.constant 0 : index
    %527 = vector.load %arg25[%c0_155, %c0_156] : memref<8x72xbf16, #tpu.memory_space<vmem>>, vector<8x72xbf16>
    %cst_157 = arith.constant dense<0.000000e+00> : vector<8x512xf32>
    %528 = tpu.matmul %527, %407, %cst_157 {dimension_numbers = #tpu.dot_dimension_numbers<[1], [0], [0], [1], [0, 0, 1, 1], [], []>} : vector<8x72xbf16>, vector<72x512xbf16>, vector<8x512xf32> -> vector<8x512xf32>
    %c0_158 = arith.constant 0 : index
    %c0_159 = arith.constant 0 : index
    %529 = vector.load %arg26[%c0_158, %c0_159] : memref<8x72xbf16, #tpu.memory_space<vmem>>, vector<8x72xbf16>
    %cst_160 = arith.constant dense<0.000000e+00> : vector<8x512xf32>
    %530 = tpu.matmul %529, %526, %cst_160 {dimension_numbers = #tpu.dot_dimension_numbers<[1], [0], [0], [1], [0, 0, 1, 1], [], []>} : vector<8x72xbf16>, vector<72x512xbf16>, vector<8x512xf32> -> vector<8x512xf32>
    %531 = arith.addf %528, %530 : vector<8x512xf32>
    %c0_161 = arith.constant 0 : index
    %c0_162 = arith.constant 0 : index
    %532 = vector.load %arg27[%c0_161, %c0_162] : memref<8x1xf32, #tpu.memory_space<vmem>>, vector<8x1xf32>
    %533 = vector.broadcast %532 : vector<8x1xf32> to vector<8x512xf32>
    %534 = arith.addf %531, %533 : vector<8x512xf32>
    %535 = vector.extract_strided_slice %534 {offsets = [0, 0], sizes = [8, 256], strides = [1, 1]} : vector<8x512xf32> to vector<8x256xf32>
    %536 = vector.shape_cast %535 : vector<8x256xf32> to vector<1x8x256xf32>
    %cst_163 = arith.constant dense<0.000000e+00> : vector<1xf32>
    %537 = vector.multi_reduction <add>, %536, %cst_163 [1, 2] : vector<1x8x256xf32> to vector<1xf32>
    %538 = vector.shape_cast %537 : vector<1xf32> to vector<1x1x1xf32>
    %539 = vector.extract %538[0, 0, 0] : f32 from vector<1x1x1xf32>
    %540 = arith.mulf %535, %535 : vector<8x256xf32>
    %541 = vector.shape_cast %540 : vector<8x256xf32> to vector<1x8x256xf32>
    %cst_164 = arith.constant dense<0.000000e+00> : vector<1xf32>
    %542 = vector.multi_reduction <add>, %541, %cst_164 [1, 2] : vector<1x8x256xf32> to vector<1xf32>
    %543 = vector.shape_cast %542 : vector<1xf32> to vector<1x1x1xf32>
    %544 = vector.extract %543[0, 0, 0] : f32 from vector<1x1x1xf32>
    %cst_165 = arith.constant 4.8828125E-4 : f32
    %545 = arith.mulf %539, %cst_165 : f32
    %cst_166 = arith.constant 4.8828125E-4 : f32
    %546 = arith.mulf %544, %cst_166 : f32
    %547 = arith.mulf %545, %545 : f32
    %548 = arith.subf %546, %547 : f32
    %cst_167 = arith.constant 9.99999974E-6 : f32
    %549 = arith.addf %548, %cst_167 : f32
    %550 = math.rsqrt %549 : f32
    %551 = vector.broadcast %545 : f32 to vector<8x256xf32>
    %552 = arith.subf %535, %551 : vector<8x256xf32>
    %553 = vector.broadcast %550 : f32 to vector<8x256xf32>
    %554 = arith.mulf %552, %553 : vector<8x256xf32>
    %555 = vector.extract_strided_slice %534 {offsets = [0, 256], sizes = [8, 256], strides = [1, 1]} : vector<8x512xf32> to vector<8x256xf32>
    %556 = vector.shape_cast %555 : vector<8x256xf32> to vector<1x8x256xf32>
    %cst_168 = arith.constant dense<0.000000e+00> : vector<1xf32>
    %557 = vector.multi_reduction <add>, %556, %cst_168 [1, 2] : vector<1x8x256xf32> to vector<1xf32>
    %558 = vector.shape_cast %557 : vector<1xf32> to vector<1x1x1xf32>
    %559 = vector.extract %558[0, 0, 0] : f32 from vector<1x1x1xf32>
    %560 = arith.mulf %555, %555 : vector<8x256xf32>
    %561 = vector.shape_cast %560 : vector<8x256xf32> to vector<1x8x256xf32>
    %cst_169 = arith.constant dense<0.000000e+00> : vector<1xf32>
    %562 = vector.multi_reduction <add>, %561, %cst_169 [1, 2] : vector<1x8x256xf32> to vector<1xf32>
    %563 = vector.shape_cast %562 : vector<1xf32> to vector<1x1x1xf32>
    %564 = vector.extract %563[0, 0, 0] : f32 from vector<1x1x1xf32>
    %cst_170 = arith.constant 4.8828125E-4 : f32
    %565 = arith.mulf %559, %cst_170 : f32
    %cst_171 = arith.constant 4.8828125E-4 : f32
    %566 = arith.mulf %564, %cst_171 : f32
    %567 = arith.mulf %565, %565 : f32
    %568 = arith.subf %566, %567 : f32
    %cst_172 = arith.constant 9.99999974E-6 : f32
    %569 = arith.addf %568, %cst_172 : f32
    %570 = math.rsqrt %569 : f32
    %571 = vector.broadcast %565 : f32 to vector<8x256xf32>
    %572 = arith.subf %555, %571 : vector<8x256xf32>
    %573 = vector.broadcast %570 : f32 to vector<8x256xf32>
    %574 = arith.mulf %572, %573 : vector<8x256xf32>
    %575 = tpu.concatenate %554, %574 in 1 : vector<8x256xf32>, vector<8x256xf32> -> vector<8x512xf32>
    %c0_173 = arith.constant 0 : index
    %c0_174 = arith.constant 0 : index
    %576 = vector.load %arg28[%c0_173, %c0_174] : memref<8x512xf32, #tpu.memory_space<vmem>>, vector<8x512xf32>
    %577 = arith.mulf %575, %576 : vector<8x512xf32>
    %c0_175 = arith.constant 0 : index
    %c0_176 = arith.constant 0 : index
    %578 = vector.load %arg29[%c0_175, %c0_176] : memref<8x512xf32, #tpu.memory_space<vmem>>, vector<8x512xf32>
    %579 = arith.addf %577, %578 : vector<8x512xf32>
    %580 = vector.extract_strided_slice %88 {offsets = [48, 0], sizes = [8, 512], strides = [1, 1]} : vector<56x512xf32> to vector<8x512xf32>
    %581 = arith.addf %580, %579 : vector<8x512xf32>
    %582 = math.tanh %581 : vector<8x512xf32>
    %c0_177 = arith.constant 0 : index
    %c0_178 = arith.constant 0 : index
    %583 = vector.load %arg30[%c0_177, %c0_178] : memref<8x8xf32, #tpu.memory_space<vmem>>, vector<8x8xf32>
    %cst_179 = arith.constant dense<0.000000e+00> : vector<8x512xf32>
    %584 = tpu.matmul %583, %373, %cst_179 {dimension_numbers = #tpu.dot_dimension_numbers<[1], [0], [0], [1], [0, 0, 1, 1], [], []>} : vector<8x8xf32>, vector<8x512xf32>, vector<8x512xf32> -> vector<8x512xf32>
    %c0_180 = arith.constant 0 : index
    %c0_181 = arith.constant 0 : index
    %585 = vector.load %arg31[%c0_180, %c0_181] : memref<8x8xf32, #tpu.memory_space<vmem>>, vector<8x8xf32>
    %cst_182 = arith.constant dense<0.000000e+00> : vector<8x512xf32>
    %586 = tpu.matmul %585, %492, %cst_182 {dimension_numbers = #tpu.dot_dimension_numbers<[1], [0], [0], [1], [0, 0, 1, 1], [], []>} : vector<8x8xf32>, vector<8x512xf32>, vector<8x512xf32> -> vector<8x512xf32>
    %587 = arith.addf %584, %586 : vector<8x512xf32>
    %c0_183 = arith.constant 0 : index
    %c0_184 = arith.constant 0 : index
    %588 = vector.load %arg32[%c0_183, %c0_184] : memref<8x1xf32, #tpu.memory_space<vmem>>, vector<8x1xf32>
    %589 = vector.broadcast %588 : vector<8x1xf32> to vector<8x512xf32>
    %590 = arith.addf %587, %589 : vector<8x512xf32>
    %591 = math.tanh %590 : vector<8x512xf32>
    %592 = arith.mulf %582, %591 : vector<8x512xf32>
    %c0_185 = arith.constant 0 : index
    %c0_186 = arith.constant 0 : index
    %593 = vector.load %arg33[%c0_185, %c0_186] : memref<8x512xf32, #tpu.memory_space<vmem>>, vector<8x512xf32>
    tpu.vector_store %arg33[%c0_185, %c0_186], %592 {strides = array<i32>} : memref<8x512xf32, #tpu.memory_space<vmem>>, vector<8x512xf32>,
    %c0_187 = arith.constant 0 : index
    %c0_188 = arith.constant 0 : index
    %594 = vector.load %arg34[%c0_187, %c0_188] : memref<8x512xf32, #tpu.memory_space<vmem>>, vector<8x512xf32>
    tpu.vector_store %arg34[%c0_187, %c0_188], %373 {strides = array<i32>} : memref<8x512xf32, #tpu.memory_space<vmem>>, vector<8x512xf32>,
    %c0_189 = arith.constant 0 : index
    %c0_190 = arith.constant 0 : index
    %595 = vector.load %arg35[%c0_189, %c0_190] : memref<8x512xf32, #tpu.memory_space<vmem>>, vector<8x512xf32>
    tpu.vector_store %arg35[%c0_189, %c0_190], %492 {strides = array<i32>} : memref<8x512xf32, #tpu.memory_space<vmem>>, vector<8x512xf32>,
    return
  }
}

</mosaic_0001>

<llo_original>
// kernel: forward.1
$region0: #{forward.1}
  #allocation0 [shape = 'u32[]', space=smem, size = 0x4, offset = 0x4, fixed_abs, tag = 'smem constant byte address 0x4 - core index']
  #allocation1 [shape = 'u32[144,128]{1,0:T(1,128)}', space=vmem, size = 0x12000, scoped, tag = 'internal scratch']
  %s0 = inlined_call_operand.smem [shape: u32[36], index: -1, kind: input, shape index: {}]
  %s1 = sld [smem:[%s0]]
  %s2 = scalar_lea.smem %s0, 1
  %s3 = sld [smem:[%s2]]
  %s4 = scalar_lea.smem %s0, 2
  %s5 = sld [smem:[%s4]]
  %s6 = scalar_lea.smem %s0, 3
  %s7 = sld [smem:[%s6]]
  %s8 = scalar_lea.smem %s0, 4
  %s9 = sld [smem:[%s8]]
  %s10 = scalar_lea.smem %s0, 5
  %s11 = sld [smem:[%s10]]
  %s12 = scalar_lea.smem %s0, 6
  %s13 = sld [smem:[%s12]]
  %s14 = scalar_lea.smem %s0, 7
  %s15 = sld [smem:[%s14]]
  %s16 = scalar_lea.smem %s0, 8
  %s17 = sld [smem:[%s16]]
  %s18 = scalar_lea.smem %s0, 9
  %s19 = sld [smem:[%s18]]
  %s20 = scalar_lea.smem %s0, 10
  %s21 = sld [smem:[%s20]]
  %s22 = scalar_lea.smem %s0, 11
  %s23 = sld [smem:[%s22]]
  %s24 = scalar_lea.smem %s0, 12
  %s25 = sld [smem:[%s24]]
  %s26 = scalar_lea.smem %s0, 13
  %s27 = sld [smem:[%s26]]
  %s28 = scalar_lea.smem %s0, 14
  %s29 = sld [smem:[%s28]]
  %s30 = scalar_lea.smem %s0, 15
  %s31 = sld [smem:[%s30]]
  %s32 = scalar_lea.smem %s0, 16
  %s33 = sld [smem:[%s32]]
  %s34 = scalar_lea.smem %s0, 17
  %s35 = sld [smem:[%s34]]
  %s36 = scalar_lea.smem %s0, 18
  %s37 = sld [smem:[%s36]]
  %s38 = scalar_lea.smem %s0, 19
  %s39 = sld [smem:[%s38]]
  %s40 = scalar_lea.smem %s0, 20
  %s41 = sld [smem:[%s40]]
  %s42 = scalar_lea.smem %s0, 21
  %s43 = sld [smem:[%s42]]
  %s44 = scalar_lea.smem %s0, 22
  %s45 = sld [smem:[%s44]]
  %s46 = scalar_lea.smem %s0, 23
  %s47 = sld [smem:[%s46]]
  %s48 = scalar_lea.smem %s0, 24
  %s49 = sld [smem:[%s48]]
  %s50 = scalar_lea.smem %s0, 25
  %s51 = sld [smem:[%s50]]
  %s52 = scalar_lea.smem %s0, 26
  %s53 = sld [smem:[%s52]]
  %s54 = scalar_lea.smem %s0, 27
  %s55 = sld [smem:[%s54]]
  %s56 = scalar_lea.smem %s0, 28
  %s57 = sld [smem:[%s56]]
  %s58 = scalar_lea.smem %s0, 29
  %s59 = sld [smem:[%s58]]
  %s60 = scalar_lea.smem %s0, 30
  %s61 = sld [smem:[%s60]]
  %s62 = scalar_lea.smem %s0, 31
  %s63 = sld [smem:[%s62]]
  %s64 = scalar_lea.smem %s0, 32
  %s65 = sld [smem:[%s64]]
  %s66 = scalar_lea.smem %s0, 33
  %s67 = sld [smem:[%s66]]
  %s68 = scalar_lea.smem %s0, 34
  %s69 = sld [smem:[%s68]]
  %s70 = scalar_lea.smem %s0, 35
  %s71 = sld [smem:[%s70]]
  %72 = xla_tuple %s67, %s69, %s71
  %s73 = sld [smem:[#allocation0]]
  $region158: #{forward.1} parent=0
    _
  %s75 = ssub.s32 1, %s73
  %s76 = scalar_select 0, %s75, %s73
  // Predicated region
  $region2: #{forward.1} parent=0 // pred_check
    _
  $region3: #{forward.1} parent=0 // pred_check_branch
    %78 = sbr.rel (0) target = $region5
  $region4: #{forward.1} parent=0 // pred_region
    _
  $region5: #{forward.1} parent=0 // pred_fallthru
    _
  // Predicated region
  $region6: #{forward.1} parent=0 // pred_check
    _
  $region7: #{forward.1} parent=0 // pred_check_branch
    %80 = sbr.rel (0) target = $region9
  $region8: #{forward.1} parent=0 // pred_region
    _
  $region9: #{forward.1} parent=0 // pred_fallthru
    _
  // Predicated region
  $region10: #{forward.1} parent=0 // pred_check
    _
  $region11: #{forward.1} parent=0 // pred_check_branch
    %82 = sbr.rel (0) target = $region13
  $region12: #{forward.1} parent=0 // pred_region
    _
  $region13: #{forward.1} parent=0 // pred_fallthru
    _
  // Predicated region
  $region14: #{forward.1} parent=0 // pred_check
    _
  $region15: #{forward.1} parent=0 // pred_check_branch
    %84 = sbr.rel (0) target = $region17
  $region16: #{forward.1} parent=0 // pred_region
    _
  $region17: #{forward.1} parent=0 // pred_fallthru
    _
  // Predicated region
  $region18: #{forward.1} parent=0 // pred_check
    _
  $region19: #{forward.1} parent=0 // pred_check_branch
    %86 = sbr.rel (0) target = $region21
  $region20: #{forward.1} parent=0 // pred_region
    _
  $region21: #{forward.1} parent=0 // pred_fallthru
    _
  // Predicated region
  $region22: #{forward.1} parent=0 // pred_check
    _
  $region23: #{forward.1} parent=0 // pred_check_branch
    %88 = sbr.rel (0) target = $region25
  $region24: #{forward.1} parent=0 // pred_region
    _
  $region25: #{forward.1} parent=0 // pred_fallthru
    _
  // Predicated region
  $region26: #{forward.1} parent=0 // pred_check
    _
  $region27: #{forward.1} parent=0 // pred_check_branch
    %90 = sbr.rel (0) target = $region29
  $region28: #{forward.1} parent=0 // pred_region
    _
  $region29: #{forward.1} parent=0 // pred_fallthru
    _
  // Predicated region
  $region30: #{forward.1} parent=0 // pred_check
    _
  $region31: #{forward.1} parent=0 // pred_check_branch
    %92 = sbr.rel (0) target = $region33
  $region32: #{forward.1} parent=0 // pred_region
    _
  $region33: #{forward.1} parent=0 // pred_fallthru
    _
  // Predicated region
  $region34: #{forward.1} parent=0 // pred_check
    _
  $region35: #{forward.1} parent=0 // pred_check_branch
    %94 = sbr.rel (0) target = $region37
  $region36: #{forward.1} parent=0 // pred_region
    _
  $region37: #{forward.1} parent=0 // pred_fallthru
    _
  // Predicated region
  $region38: #{forward.1} parent=0 // pred_check
    _
  $region39: #{forward.1} parent=0 // pred_check_branch
    %96 = sbr.rel (0) target = $region41
  $region40: #{forward.1} parent=0 // pred_region
    _
  $region41: #{forward.1} parent=0 // pred_fallthru
    _
  // Predicated region
  $region42: #{forward.1} parent=0 // pred_check
    _
  $region43: #{forward.1} parent=0 // pred_check_branch
    %98 = sbr.rel (0) target = $region45
  $region44: #{forward.1} parent=0 // pred_region
    _
  $region45: #{forward.1} parent=0 // pred_fallthru
    _
  // Predicated region
  $region46: #{forward.1} parent=0 // pred_check
    _
  $region47: #{forward.1} parent=0 // pred_check_branch
    %100 = sbr.rel (0) target = $region49
  $region48: #{forward.1} parent=0 // pred_region
    _
  $region49: #{forward.1} parent=0 // pred_fallthru
    _
  // Predicated region
  $region50: #{forward.1} parent=0 // pred_check
    _
  $region51: #{forward.1} parent=0 // pred_check_branch
    %102 = sbr.rel (0) target = $region53
  $region52: #{forward.1} parent=0 // pred_region
    _
  $region53: #{forward.1} parent=0 // pred_fallthru
    _
  // Predicated region
  $region54: #{forward.1} parent=0 // pred_check
    _
  $region55: #{forward.1} parent=0 // pred_check_branch
    %104 = sbr.rel (0) target = $region57
  $region56: #{forward.1} parent=0 // pred_region
    _
  $region57: #{forward.1} parent=0 // pred_fallthru
    _
  // Predicated region
  $region58: #{forward.1} parent=0 // pred_check
    _
  $region59: #{forward.1} parent=0 // pred_check_branch
    %106 = sbr.rel (0) target = $region61
  $region60: #{forward.1} parent=0 // pred_region
    _
  $region61: #{forward.1} parent=0 // pred_fallthru
    _
  // Predicated region
  $region62: #{forward.1} parent=0 // pred_check
    _
  $region63: #{forward.1} parent=0 // pred_check_branch
    %108 = sbr.rel (0) target = $region65
  $region64: #{forward.1} parent=0 // pred_region
    _
  $region65: #{forward.1} parent=0 // pred_fallthru
    _
  // Predicated region
  $region66: #{forward.1} parent=0 // pred_check
    _
  $region67: #{forward.1} parent=0 // pred_check_branch
    %110 = sbr.rel (0) target = $region69
  $region68: #{forward.1} parent=0 // pred_region
    _
  $region69: #{forward.1} parent=0 // pred_fallthru
    _
  // Predicated region
  $region70: #{forward.1} parent=0 // pred_check
    _
  $region71: #{forward.1} parent=0 // pred_check_branch
    %112 = sbr.rel (0) target = $region73
  $region72: #{forward.1} parent=0 // pred_region
    _
  $region73: #{forward.1} parent=0 // pred_fallthru
    _
  // Predicated region
  $region74: #{forward.1} parent=0 // pred_check
    _
  $region75: #{forward.1} parent=0 // pred_check_branch
    %114 = sbr.rel (0) target = $region77
  $region76: #{forward.1} parent=0 // pred_region
    _
  $region77: #{forward.1} parent=0 // pred_fallthru
    _
  // Predicated region
  $region78: #{forward.1} parent=0 // pred_check
    _
  $region79: #{forward.1} parent=0 // pred_check_branch
    %116 = sbr.rel (0) target = $region81
  $region80: #{forward.1} parent=0 // pred_region
    _
  $region81: #{forward.1} parent=0 // pred_fallthru
    _
  // Predicated region
  $region82: #{forward.1} parent=0 // pred_check
    _
  $region83: #{forward.1} parent=0 // pred_check_branch
    %118 = sbr.rel (0) target = $region85
  $region84: #{forward.1} parent=0 // pred_region
    _
  $region85: #{forward.1} parent=0 // pred_fallthru
    _
  // Predicated region
  $region86: #{forward.1} parent=0 // pred_check
    _
  $region87: #{forward.1} parent=0 // pred_check_branch
    %120 = sbr.rel (0) target = $region89
  $region88: #{forward.1} parent=0 // pred_region
    _
  $region89: #{forward.1} parent=0 // pred_fallthru
    _
  // Predicated region
  $region90: #{forward.1} parent=0 // pred_check
    _
  $region91: #{forward.1} parent=0 // pred_check_branch
    %122 = sbr.rel (0) target = $region93
  $region92: #{forward.1} parent=0 // pred_region
    _
  $region93: #{forward.1} parent=0 // pred_fallthru
    _
  // Predicated region
  $region94: #{forward.1} parent=0 // pred_check
    _
  $region95: #{forward.1} parent=0 // pred_check_branch
    %124 = sbr.rel (0) target = $region97
  $region96: #{forward.1} parent=0 // pred_region
    _
  $region97: #{forward.1} parent=0 // pred_fallthru
    _
  // Predicated region
  $region98: #{forward.1} parent=0 // pred_check
    _
  $region99: #{forward.1} parent=0 // pred_check_branch
    %126 = sbr.rel (0) target = $region101
  $region100: #{forward.1} parent=0 // pred_region
    _
  $region101: #{forward.1} parent=0 // pred_fallthru
    _
  // Predicated region
  $region102: #{forward.1} parent=0 // pred_check
    _
  $region103: #{forward.1} parent=0 // pred_check_branch
    %128 = sbr.rel (0) target = $region105
  $region104: #{forward.1} parent=0 // pred_region
    _
  $region105: #{forward.1} parent=0 // pred_fallthru
    _
  // Predicated region
  $region106: #{forward.1} parent=0 // pred_check
    _
  $region107: #{forward.1} parent=0 // pred_check_branch
    %130 = sbr.rel (0) target = $region109
  $region108: #{forward.1} parent=0 // pred_region
    _
  $region109: #{forward.1} parent=0 // pred_fallthru
    _
  // Predicated region
  $region110: #{forward.1} parent=0 // pred_check
    _
  $region111: #{forward.1} parent=0 // pred_check_branch
    %132 = sbr.rel (0) target = $region113
  $region112: #{forward.1} parent=0 // pred_region
    _
  $region113: #{forward.1} parent=0 // pred_fallthru
    _
  // Predicated region
  $region114: #{forward.1} parent=0 // pred_check
    _
  $region115: #{forward.1} parent=0 // pred_check_branch
    %134 = sbr.rel (0) target = $region117
  $region116: #{forward.1} parent=0 // pred_region
    _
  $region117: #{forward.1} parent=0 // pred_fallthru
    _
  // Predicated region
  $region118: #{forward.1} parent=0 // pred_check
    _
  $region119: #{forward.1} parent=0 // pred_check_branch
    %136 = sbr.rel (0) target = $region121
  $region120: #{forward.1} parent=0 // pred_region
    _
  $region121: #{forward.1} parent=0 // pred_fallthru
    _
  // Predicated region
  $region122: #{forward.1} parent=0 // pred_check
    _
  $region123: #{forward.1} parent=0 // pred_check_branch
    %138 = sbr.rel (0) target = $region125
  $region124: #{forward.1} parent=0 // pred_region
    _
  $region125: #{forward.1} parent=0 // pred_fallthru
    _
  // Predicated region
  $region126: #{forward.1} parent=0 // pred_check
    _
  $region127: #{forward.1} parent=0 // pred_check_branch
    %140 = sbr.rel (0) target = $region129
  $region128: #{forward.1} parent=0 // pred_region
    _
  $region129: #{forward.1} parent=0 // pred_fallthru
    _
  // Predicated region
  $region130: #{forward.1} parent=0 // pred_check
    _
  $region131: #{forward.1} parent=0 // pred_check_branch
    %142 = sbr.rel (0) target = $region133
  $region132: #{forward.1} parent=0 // pred_region
    _
  $region133: #{forward.1} parent=0 // pred_fallthru
    _
  %v144 = vld [vmem:[%s9] sm:$0xff]
  %v145 = vld [vmem:[%s9 + $0x8] sm:$0xff]
  %v146 = vld [vmem:[%s9 + $0x10] sm:$0xff]
  %v147 = vld [vmem:[%s9 + $0x18] sm:$0xff]
  %v148 = vld [vmem:[%s9 + $0x20] sm:$0x1]
  %v149 = vld [vmem:[%s9 + $0x28] sm:$0x1]
  %v150 = vld [vmem:[%s9 + $0x30] sm:$0x1]
  %v151 = vld [vmem:[%s9 + $0x38] sm:$0x1]
  %v152 = vld [vmem:[%s1] sm:$0xff]
  %v153 = vld [vmem:[%s1 + $0x8] sm:$0xff]
  %v154 = vld [vmem:[%s3] sm:$0xff]
  %v155 = vld [vmem:[%s3 + $0x8] sm:$0xff]
  %v156 = vld [vmem:[%s3 + $0x10] sm:$0xff]
  %v157 = vld [vmem:[%s3 + $0x18] sm:$0xff]
  %v158 = vld [vmem:[%s5] sm:$0xff]
  %v159 = vld [vmem:[%s5 + $0x8] sm:$0xff]
  %v160 = vld [vmem:[%s5 + $0x10] sm:$0xff]
  %v161 = vld [vmem:[%s5 + $0x18] sm:$0xff]
  %v162 = vld [vmem:[%s7] sm:$0xff]
  %v163 = vld [vmem:[%s7 + $0x8] sm:$0xff]
  %v164 = vld [vmem:[%s7 + $0x10] sm:$0xff]
  %v165 = vld [vmem:[%s7 + $0x18] sm:$0xff]
  %v168 = vcombine.high %v152, %v152
  %v169 = vcombine.high %v153, %v153
  %172 = vrot.lane.b32.xlu0 %v152, 17
  %v173 = vpop.permute.xlu0 %172
  %174 = vrot.lane.b32.xlu0 %v168, 17
  %v175 = vpop.permute.xlu0 %174
  %176 = vrot.lane.b32.xlu0 %v153, 17
  %v177 = vpop.permute.xlu0 %176
  %178 = vrot.lane.b32.xlu0 %v169, 17
  %v179 = vpop.permute.xlu0 %178
  %v180 = vlaneseq
  %v181 = vand.u32 %v180, 127
  %vm182 = vcmp.lt.s32.totalorder %v181, 17
  %v183 = vsel %vm182, %v177, %v179
  %v184 = vsel %vm182, %v175, %v177
  %v185 = vsel %vm182, %v173, %v175
  %v186 = vsel %vm182, %v179, %v173
  %v187 = vlaneseq
  %v188 = vshrl.u32 %v187, 7
  %v189 = vsub.s32 0, %v188
  %v190 = vrot.slane %v144, %v189
  %v191 = vlaneseq
  %v192 = vshrl.u32 %v191, 7
  %v193 = vsub.s32 0, %v192
  %v194 = vrot.slane %v145, %v193
  %v195 = vlaneseq
  %v196 = vshrl.u32 %v195, 7
  %v197 = vsub.s32 0, %v196
  %v198 = vrot.slane %v146, %v197
  %v199 = vlaneseq
  %v200 = vshrl.u32 %v199, 7
  %v201 = vsub.s32 0, %v200
  %v202 = vrot.slane %v147, %v201
  %v203 = vmul.f32 %v186, %v190
  %v204 = vmul.f32 %v185, %v194
  %v205 = vmul.f32 %v184, %v198
  %v206 = vmul.f32 %v183, %v202
  %207 = vrot.lane.b32.xlu0 %v152, 16
  %v208 = vpop.permute.xlu0 %207
  %209 = vrot.lane.b32.xlu0 %v168, 16
  %v210 = vpop.permute.xlu0 %209
  %211 = vrot.lane.b32.xlu0 %v153, 16
  %v212 = vpop.permute.xlu0 %211
  %213 = vrot.lane.b32.xlu0 %v169, 16
  %v214 = vpop.permute.xlu0 %213
  %vm215 = vcmp.lt.s32.totalorder %v181, 16
  %v216 = vsel %vm215, %v212, %v214
  %v217 = vsel %vm215, %v210, %v212
  %v218 = vsel %vm215, %v208, %v210
  %v219 = vsel %vm215, %v214, %v208
  %v220 = vlaneseq
  %v221 = vshrl.u32 %v220, 7
  %v222 = vsub.s32 1, %v221
  %v223 = vrot.slane %v144, %v222
  %v224 = vlaneseq
  %v225 = vshrl.u32 %v224, 7
  %v226 = vsub.s32 1, %v225
  %v227 = vrot.slane %v145, %v226
  %v228 = vlaneseq
  %v229 = vshrl.u32 %v228, 7
  %v230 = vsub.s32 1, %v229
  %v231 = vrot.slane %v146, %v230
  %v232 = vlaneseq
  %v233 = vshrl.u32 %v232, 7
  %v234 = vsub.s32 1, %v233
  %v235 = vrot.slane %v147, %v234
  %v236 = vmul.f32 %v219, %v223
  %v237 = vmul.f32 %v218, %v227
  %v238 = vmul.f32 %v217, %v231
  %v239 = vmul.f32 %v216, %v235
  %240 = vrot.lane.b32.xlu0 %v152, 15
  %v241 = vpop.permute.xlu0 %240
  %242 = vrot.lane.b32.xlu0 %v168, 15
  %v243 = vpop.permute.xlu0 %242
  %244 = vrot.lane.b32.xlu0 %v153, 15
  %v245 = vpop.permute.xlu0 %244
  %246 = vrot.lane.b32.xlu0 %v169, 15
  %v247 = vpop.permute.xlu0 %246
  %vm248 = vcmp.lt.s32.totalorder %v181, 15
  %v249 = vsel %vm248, %v245, %v247
  %v250 = vsel %vm248, %v243, %v245
  %v251 = vsel %vm248, %v241, %v243
  %v252 = vsel %vm248, %v247, %v241
  %v253 = vlaneseq
  %v254 = vshrl.u32 %v253, 7
  %v255 = vsub.s32 2, %v254
  %v256 = vrot.slane %v144, %v255
  %v257 = vlaneseq
  %v258 = vshrl.u32 %v257, 7
  %v259 = vsub.s32 2, %v258
  %v260 = vrot.slane %v145, %v259
  %v261 = vlaneseq
  %v262 = vshrl.u32 %v261, 7
  %v263 = vsub.s32 2, %v262
  %v264 = vrot.slane %v146, %v263
  %v265 = vlaneseq
  %v266 = vshrl.u32 %v265, 7
  %v267 = vsub.s32 2, %v266
  %v268 = vrot.slane %v147, %v267
  %v269 = vmul.f32 %v252, %v256
  %v270 = vmul.f32 %v251, %v260
  %v271 = vmul.f32 %v250, %v264
  %v272 = vmul.f32 %v249, %v268
  %273 = vrot.lane.b32.xlu0 %v152, 1
  %v274 = vpop.permute.xlu0 %273
  %275 = vrot.lane.b32.xlu0 %v168, 1
  %v276 = vpop.permute.xlu0 %275
  %277 = vrot.lane.b32.xlu0 %v153, 1
  %v278 = vpop.permute.xlu0 %277
  %279 = vrot.lane.b32.xlu0 %v169, 1
  %v280 = vpop.permute.xlu0 %279
  %vm281 = vcmp.lt.s32.totalorder %v181, 1
  %v282 = vsel %vm281, %v278, %v280
  %v283 = vsel %vm281, %v276, %v278
  %v284 = vsel %vm281, %v274, %v276
  %v285 = vsel %vm281, %v280, %v274
  %v286 = vlaneseq
  %v287 = vshrl.u32 %v286, 7
  %v288 = vsub.s32 3, %v287
  %v289 = vrot.slane %v144, %v288
  %v290 = vlaneseq
  %v291 = vshrl.u32 %v290, 7
  %v292 = vsub.s32 3, %v291
  %v293 = vrot.slane %v145, %v292
  %v294 = vlaneseq
  %v295 = vshrl.u32 %v294, 7
  %v296 = vsub.s32 3, %v295
  %v297 = vrot.slane %v146, %v296
  %v298 = vlaneseq
  %v299 = vshrl.u32 %v298, 7
  %v300 = vsub.s32 3, %v299
  %v301 = vrot.slane %v147, %v300
  %v302 = vmul.f32 %v285, %v289
  %v303 = vmul.f32 %v284, %v293
  %v304 = vmul.f32 %v283, %v297
  %v305 = vmul.f32 %v282, %v301
  %306 = vrot.lane.b32.xlu0 %v152, 127
  %v307 = vpop.permute.xlu0 %306
  %308 = vrot.lane.b32.xlu0 %v168, 127
  %v309 = vpop.permute.xlu0 %308
  %310 = vrot.lane.b32.xlu0 %v153, 127
  %v311 = vpop.permute.xlu0 %310
  %312 = vrot.lane.b32.xlu0 %v169, 127
  %v313 = vpop.permute.xlu0 %312
  %vm314 = vcmp.lt.s32.totalorder %v181, 127
  %v315 = vsel %vm314, %v311, %v313
  %v316 = vsel %vm314, %v309, %v311
  %v317 = vsel %vm314, %v307, %v309
  %v318 = vsel %vm314, %v313, %v307
  %v319 = vlaneseq
  %v320 = vshrl.u32 %v319, 7
  %v321 = vsub.s32 5, %v320
  %v322 = vrot.slane %v144, %v321
  %v323 = vlaneseq
  %v324 = vshrl.u32 %v323, 7
  %v325 = vsub.s32 5, %v324
  %v326 = vrot.slane %v145, %v325
  %v327 = vlaneseq
  %v328 = vshrl.u32 %v327, 7
  %v329 = vsub.s32 5, %v328
  %v330 = vrot.slane %v146, %v329
  %v331 = vlaneseq
  %v332 = vshrl.u32 %v331, 7
  %v333 = vsub.s32 5, %v332
  %v334 = vrot.slane %v147, %v333
  %v335 = vmul.f32 %v317, %v322
  %v336 = vmul.f32 %v316, %v326
  %v337 = vmul.f32 %v315, %v330
  %v338 = vmul.f32 %v318, %v334
  %339 = vrot.lane.b32.xlu0 %v152, 113
  %v340 = vpop.permute.xlu0 %339
  %341 = vrot.lane.b32.xlu0 %v168, 113
  %v342 = vpop.permute.xlu0 %341
  %343 = vrot.lane.b32.xlu0 %v153, 113
  %v344 = vpop.permute.xlu0 %343
  %345 = vrot.lane.b32.xlu0 %v169, 113
  %v346 = vpop.permute.xlu0 %345
  %vm347 = vcmp.lt.s32.totalorder %v181, 113
  %v348 = vsel %vm347, %v344, %v346
  %v349 = vsel %vm347, %v342, %v344
  %v350 = vsel %vm347, %v340, %v342
  %v351 = vsel %vm347, %v346, %v340
  %v352 = vlaneseq
  %v353 = vshrl.u32 %v352, 7
  %v354 = vsub.s32 6, %v353
  %v355 = vrot.slane %v144, %v354
  %v356 = vlaneseq
  %v357 = vshrl.u32 %v356, 7
  %v358 = vsub.s32 6, %v357
  %v359 = vrot.slane %v145, %v358
  %v360 = vlaneseq
  %v361 = vshrl.u32 %v360, 7
  %v362 = vsub.s32 6, %v361
  %v363 = vrot.slane %v146, %v362
  %v364 = vlaneseq
  %v365 = vshrl.u32 %v364, 7
  %v366 = vsub.s32 6, %v365
  %v367 = vrot.slane %v147, %v366
  %v368 = vmul.f32 %v350, %v355
  %v369 = vmul.f32 %v349, %v359
  %v370 = vmul.f32 %v348, %v363
  %v371 = vmul.f32 %v351, %v367
  %372 = vrot.lane.b32.xlu0 %v152, 112
  %v373 = vpop.permute.xlu0 %372
  %374 = vrot.lane.b32.xlu0 %v168, 112
  %v375 = vpop.permute.xlu0 %374
  %376 = vrot.lane.b32.xlu0 %v153, 112
  %v377 = vpop.permute.xlu0 %376
  %378 = vrot.lane.b32.xlu0 %v169, 112
  %v379 = vpop.permute.xlu0 %378
  %vm380 = vcmp.lt.s32.totalorder %v181, 112
  %v381 = vsel %vm380, %v377, %v379
  %v382 = vsel %vm380, %v375, %v377
  %v383 = vsel %vm380, %v373, %v375
  %v384 = vsel %vm380, %v379, %v373
  %v385 = vlaneseq
  %v386 = vshrl.u32 %v385, 7
  %v387 = vsub.s32 7, %v386
  %v388 = vrot.slane %v144, %v387
  %v389 = vlaneseq
  %v390 = vshrl.u32 %v389, 7
  %v391 = vsub.s32 7, %v390
  %v392 = vrot.slane %v145, %v391
  %v393 = vlaneseq
  %v394 = vshrl.u32 %v393, 7
  %v395 = vsub.s32 7, %v394
  %v396 = vrot.slane %v146, %v395
  %v397 = vlaneseq
  %v398 = vshrl.u32 %v397, 7
  %v399 = vsub.s32 7, %v398
  %v400 = vrot.slane %v147, %v399
  %v401 = vmul.f32 %v383, %v388
  %v402 = vmul.f32 %v382, %v392
  %v403 = vmul.f32 %v381, %v396
  %v404 = vmul.f32 %v384, %v400
  %405 = vrot.lane.b32.xlu0 %v152, 111
  %v406 = vpop.permute.xlu0 %405
  %407 = vrot.lane.b32.xlu0 %v168, 111
  %v408 = vpop.permute.xlu0 %407
  %409 = vrot.lane.b32.xlu0 %v153, 111
  %v410 = vpop.permute.xlu0 %409
  %411 = vrot.lane.b32.xlu0 %v169, 111
  %v412 = vpop.permute.xlu0 %411
  %vm413 = vcmp.lt.s32.totalorder %v181, 111
  %v414 = vsel %vm413, %v410, %v412
  %v415 = vsel %vm413, %v408, %v410
  %v416 = vsel %vm413, %v406, %v408
  %v417 = vsel %vm413, %v412, %v406
  %v418 = vlaneseq
  %v419 = vshrl.u32 %v418, 7
  %v420 = vsub.s32 0, %v419
  %v421 = vrot.slane %v148, %v420
  %v422 = vlaneseq
  %v423 = vshrl.u32 %v422, 7
  %v424 = vsub.s32 0, %v423
  %v425 = vrot.slane %v149, %v424
  %v426 = vlaneseq
  %v427 = vshrl.u32 %v426, 7
  %v428 = vsub.s32 0, %v427
  %v429 = vrot.slane %v150, %v428
  %v430 = vlaneseq
  %v431 = vshrl.u32 %v430, 7
  %v432 = vsub.s32 0, %v431
  %v433 = vrot.slane %v151, %v432
  %v434 = vmul.f32 %v416, %v421
  %v435 = vmul.f32 %v415, %v425
  %v436 = vmul.f32 %v414, %v429
  %v437 = vmul.f32 %v417, %v433
  %v442 = vrot.slane %v236, 4
  %v443 = vrot.slane %v237, 4
  %v444 = vrot.slane %v238, 4
  %v445 = vrot.slane %v239, 4
  %v454 = vrot.slane %v302, 4
  %v455 = vrot.slane %v303, 4
  %v456 = vrot.slane %v304, 4
  %v457 = vrot.slane %v305, 4
  %v466 = vrot.slane %v335, 4
  %v467 = vrot.slane %v336, 4
  %v468 = vrot.slane %v337, 4
  %v469 = vrot.slane %v338, 4
  %v478 = vrot.slane %v401, 4
  %v479 = vrot.slane %v402, 4
  %v480 = vrot.slane %v403, 4
  %v481 = vrot.slane %v404, 4
  %vm486 = vcmask 1043456
  %v487 = vsel %vm486, %v203, %v442
  %v488 = vsel %vm486, %v204, %v443
  %v489 = vsel %vm486, %v205, %v444
  %v490 = vsel %vm486, %v206, %v445
  %v491 = vsel %vm486, %v269, %v454
  %v492 = vsel %vm486, %v270, %v455
  %v493 = vsel %vm486, %v271, %v456
  %v494 = vsel %vm486, %v272, %v457
  %v495 = vsel %vm486, %v152, %v466
  %v496 = vsel %vm486, %v168, %v467
  %v497 = vsel %vm486, %v153, %v468
  %v498 = vsel %vm486, %v169, %v469
  %v499 = vsel %vm486, %v368, %v478
  %v500 = vsel %vm486, %v369, %v479
  %v501 = vsel %vm486, %v370, %v480
  %v502 = vsel %vm486, %v371, %v481
  %v503 = vpack.c.bf16 %v491, %v487
  %v504 = vpack.c.bf16 %v492, %v488
  %v505 = vpack.c.bf16 %v493, %v489
  %v506 = vpack.c.bf16 %v494, %v490
  %v507 = vpack.c.bf16 %v499, %v495
  %v508 = vpack.c.bf16 %v500, %v496
  %v509 = vpack.c.bf16 %v501, %v497
  %v510 = vpack.c.bf16 %v502, %v498
  %v511 = vpack.c.bf16 %v434, %v434
  %v512 = vpack.c.bf16 %v435, %v435
  %v513 = vpack.c.bf16 %v436, %v436
  %v514 = vpack.c.bf16 %v437, %v437
  %v515 = vld [vmem:[%s11] sm:$0xf]
  %v516 = vld [vmem:[%s11 + $0x4] sm:$0xf]
  %v517 = vld [vmem:[%s11 + $0x8] sm:$0xf]
  %v518 = vld [vmem:[%s11 + $0xc] sm:$0xf]
  %v519 = vld [vmem:[%s11 + $0x10] sm:$0xf]
  %v520 = vld [vmem:[%s11 + $0x14] sm:$0xf]
  %v521 = vld [vmem:[%s11 + $0x18] sm:$0xf]
  %v522 = vld [vmem:[%s13] sm:$0xff]
  %v523 = vld [vmem:[%s13 + $0x8] sm:$0xff]
  %v524 = vld [vmem:[%s13 + $0x10] sm:$0xff]
  %v525 = vld [vmem:[%s13 + $0x18] sm:$0xff]
  %v526 = vld [vmem:[%s13 + $0x20] sm:$0xff]
  %v527 = vld [vmem:[%s13 + $0x28] sm:$0xff]
  %v528 = vld [vmem:[%s13 + $0x30] sm:$0xff]
  %530 = vset.pattern.permute.xlu0 0
  %531 = vperm.xlu0 %530, %v522
  %v532 = vpop.permute.xlu0 %531
  %535 = vset.pattern.permute.xlu0 0
  %536 = vperm.xlu0 %535, %v523
  %v537 = vpop.permute.xlu0 %536
  %540 = vset.pattern.permute.xlu0 0
  %541 = vperm.xlu0 %540, %v524
  %v542 = vpop.permute.xlu0 %541
  %545 = vset.pattern.permute.xlu0 0
  %546 = vperm.xlu0 %545, %v525
  %v547 = vpop.permute.xlu0 %546
  %550 = vset.pattern.permute.xlu0 0
  %551 = vperm.xlu0 %550, %v526
  %v552 = vpop.permute.xlu0 %551
  %555 = vset.pattern.permute.xlu0 0
  %556 = vperm.xlu0 %555, %v527
  %v557 = vpop.permute.xlu0 %556
  %560 = vset.pattern.permute.xlu0 0
  %561 = vperm.xlu0 %560, %v528
  %v562 = vpop.permute.xlu0 %561
  %v571 = vunpack.c.l.b16 %v515
  %v572 = vunpack.c.l.b16 %v516
  %v573 = vunpack.c.l.b16 %v517
  %v574 = vunpack.c.l.b16 %v518
  %v575 = vunpack.c.l.b16 %v519
  %v576 = vunpack.c.l.b16 %v520
  %v577 = vunpack.c.l.b16 %v521
  %v578 = vpack.c.b16 %v572, %v571
  %v579 = vpack.c.b16 %v574, %v573
  %v580 = vpack.c.b16 %v576, %v575
  %v581 = vpack.c.b16 %v577, %v577
  %vm582 = vcmask 293888
  %v584 = vsel %vm582, %v578, 0
  %v587 = vsel %vm582, %v579, 0
  %v590 = vsel %vm582, %v580, 0
  %v593 = vsel %vm582, %v581, 0
  %vm595 = vcmask 1041408
  %v597 = vsel %vm595, %v511, 0
  %v600 = vsel %vm595, %v512, 0
  %v603 = vsel %vm595, %v513, 0
  %v606 = vsel %vm595, %v514, 0
  %608 = vmatprep.subr.bf16.mxu0 0
  %609 = vmatpush1.bf16.msra.mxu0 0
  %610 = vmatprep.subr.bf16.mxu0 0
  %611 = vmatpush1.bf16.msra.mxu0 0
  %612 = vmatprep.subr.bf16.mxu0 0
  %613 = vmatpush1.bf16.msra.mxu0 0
  %614 = vmatprep.subr.bf16.mxu0 0
  %615 = vmatpush1.bf16.msra.mxu0 0
  %616 = vmatprep.subr.bf16.mxu0 0
  %617 = vmatpush1.bf16.msra.mxu0 0
  %618 = vmatprep.subr.bf16.mxu0 %v600
  %619 = vmatpush1.bf16.msra.mxu0 %v597
  %620 = vmatprep.subr.bf16.mxu0 %v508
  %621 = vmatpush1.bf16.msra.mxu0 %v507
  %622 = vmatprep.subr.bf16.mxu0 %v504
  %623 = vmatpush1.bf16.msra.mxu0 %v503
  %624 = vmatprep.subr.bf16.mxu0 0
  %625 = vmatpush2.bf16.msra.mxu0 0
  %626 = vmatprep.subr.bf16.mxu0 0
  %627 = vmatpush2.bf16.msra.mxu0 0
  %628 = vmatprep.subr.bf16.mxu0 0
  %629 = vmatpush2.bf16.msra.mxu0 0
  %630 = vmatprep.subr.bf16.mxu0 0
  %631 = vmatpush2.bf16.msra.mxu0 0
  %632 = vmatprep.subr.bf16.mxu0 0
  %633 = vmatpush2.bf16.msra.mxu0 0
  %634 = vmatprep.subr.bf16.mxu0 0
  %635 = vmatpush2.bf16.msra.mxu0 0
  %636 = vmatprep.subr.bf16.mxu0 0
  %637 = vmatpush2.bf16.msra.mxu0 0
  %638 = vmatprep.subr.bf16.mxu0 0
  %639 = vmatpush2.bf16.msra.mxu0 0
  %640 = vmatprep.mubr.bf16.mxu0 0
  %641 = vmatmul.mubr.bf16.gmra.mxu0 %v584
  %v642 = vpop.f32.mrf.mxu0
  %v643 = vadd.f32 %v532, %v642
  %v644 = vpop.f32.mrf.mxu0
  %v645 = vadd.f32 %v532, %v644
  %v646 = vpop.f32.mrf.mxu0
  %v647 = vadd.f32 %v537, %v646
  %v648 = vpop.f32.mrf.mxu0
  %v649 = vadd.f32 %v537, %v648
  %650 = vmatprep.mubr.bf16.mxu0 0
  %651 = vmatmul.mubr.bf16.gmra.mxu0 %v587
  %v652 = vpop.f32.mrf.mxu0
  %v653 = vadd.f32 %v542, %v652
  %v654 = vpop.f32.mrf.mxu0
  %v655 = vadd.f32 %v542, %v654
  %v656 = vpop.f32.mrf.mxu0
  %v657 = vadd.f32 %v547, %v656
  %v658 = vpop.f32.mrf.mxu0
  %v659 = vadd.f32 %v547, %v658
  %660 = vmatprep.mubr.bf16.mxu0 0
  %661 = vmatmul.mubr.bf16.gmra.mxu0 %v590
  %v662 = vpop.f32.mrf.mxu0
  %v663 = vadd.f32 %v552, %v662
  %v664 = vpop.f32.mrf.mxu0
  %v665 = vadd.f32 %v552, %v664
  %v666 = vpop.f32.mrf.mxu0
  %v667 = vadd.f32 %v557, %v666
  %v668 = vpop.f32.mrf.mxu0
  %v669 = vadd.f32 %v557, %v668
  %670 = vmatprep.mubr.bf16.mxu0 0
  %671 = vmatmul.mubr.bf16.gmra.mxu0 %v593
  %v672 = vpop.f32.mrf.mxu0
  %v673 = vadd.f32 %v562, %v672
  %v674 = vpop.f32.mrf.mxu0
  %v675 = vadd.f32 %v562, %v674
  %v676 = vpop.f32.mrf.mxu0
  %v677 = vpop.f32.mrf.mxu0
  %678 = vdwg.mxu0
  %679 = vmatprep.subr.bf16.mxu0 0
  %680 = vmatpush1.bf16.msra.mxu0 0
  %681 = vmatprep.subr.bf16.mxu0 0
  %682 = vmatpush1.bf16.msra.mxu0 0
  %683 = vmatprep.subr.bf16.mxu0 0
  %684 = vmatpush1.bf16.msra.mxu0 0
  %685 = vmatprep.subr.bf16.mxu0 0
  %686 = vmatpush1.bf16.msra.mxu0 0
  %687 = vmatprep.subr.bf16.mxu0 0
  %688 = vmatpush1.bf16.msra.mxu0 0
  %689 = vmatprep.subr.bf16.mxu0 %v606
  %690 = vmatpush1.bf16.msra.mxu0 %v603
  %691 = vmatprep.subr.bf16.mxu0 %v510
  %692 = vmatpush1.bf16.msra.mxu0 %v509
  %693 = vmatprep.subr.bf16.mxu0 %v506
  %694 = vmatpush1.bf16.msra.mxu0 %v505
  %695 = vmatprep.subr.bf16.mxu0 0
  %696 = vmatpush2.bf16.msra.mxu0 0
  %697 = vmatprep.subr.bf16.mxu0 0
  %698 = vmatpush2.bf16.msra.mxu0 0
  %699 = vmatprep.subr.bf16.mxu0 0
  %700 = vmatpush2.bf16.msra.mxu0 0
  %701 = vmatprep.subr.bf16.mxu0 0
  %702 = vmatpush2.bf16.msra.mxu0 0
  %703 = vmatprep.subr.bf16.mxu0 0
  %704 = vmatpush2.bf16.msra.mxu0 0
  %705 = vmatprep.subr.bf16.mxu0 0
  %706 = vmatpush2.bf16.msra.mxu0 0
  %707 = vmatprep.subr.bf16.mxu0 0
  %708 = vmatpush2.bf16.msra.mxu0 0
  %709 = vmatprep.subr.bf16.mxu0 0
  %710 = vmatpush2.bf16.msra.mxu0 0
  %711 = vmatprep.mubr.bf16.mxu0 0
  %712 = vmatmul.mubr.bf16.gmra.mxu0 %v584
  %v713 = vpop.f32.mrf.mxu0
  %v714 = vadd.f32 %v532, %v713
  %v715 = vpop.f32.mrf.mxu0
  %v716 = vadd.f32 %v532, %v715
  %v717 = vpop.f32.mrf.mxu0
  %v718 = vadd.f32 %v537, %v717
  %v719 = vpop.f32.mrf.mxu0
  %v720 = vadd.f32 %v537, %v719
  %721 = vmatprep.mubr.bf16.mxu0 0
  %722 = vmatmul.mubr.bf16.gmra.mxu0 %v587
  %v723 = vpop.f32.mrf.mxu0
  %v724 = vadd.f32 %v542, %v723
  %v725 = vpop.f32.mrf.mxu0
  %v726 = vadd.f32 %v542, %v725
  %v727 = vpop.f32.mrf.mxu0
  %v728 = vadd.f32 %v547, %v727
  %v729 = vpop.f32.mrf.mxu0
  %v730 = vadd.f32 %v547, %v729
  %731 = vmatprep.mubr.bf16.mxu0 0
  %732 = vmatmul.mubr.bf16.gmra.mxu0 %v590
  %v733 = vpop.f32.mrf.mxu0
  %v734 = vadd.f32 %v552, %v733
  %v735 = vpop.f32.mrf.mxu0
  %v736 = vadd.f32 %v552, %v735
  %v737 = vpop.f32.mrf.mxu0
  %v738 = vadd.f32 %v557, %v737
  %v739 = vpop.f32.mrf.mxu0
  %v740 = vadd.f32 %v557, %v739
  %741 = vmatprep.mubr.bf16.mxu0 0
  %742 = vmatmul.mubr.bf16.gmra.mxu0 %v593
  %v743 = vpop.f32.mrf.mxu0
  %v744 = vadd.f32 %v562, %v743
  %v745 = vpop.f32.mrf.mxu0
  %v746 = vadd.f32 %v562, %v745
  %v747 = vpop.f32.mrf.mxu0
  %v748 = vpop.f32.mrf.mxu0
  %749 = vdwg.mxu0
  %v750 = vadd.f32 %v643, %v645
  %v751 = vadd.f32 %v750, %v647
  %v752 = vadd.f32 %v751, %v649
  %v753 = vadd.f32 %v752, %v653
  %v754 = vadd.f32 %v753, %v655
  %v755 = vadd.f32 %v754, %v657
  %v756 = vadd.f32 %v755, %v659
  %v757 = vadd.f32 %v756, %v663
  %v758 = vadd.f32 %v757, %v665
  %v759 = vadd.f32 %v758, %v667
  %v760 = vadd.f32 %v759, %v669
  %v761 = vadd.f32 %v760, %v673
  %v762 = vadd.f32 %v761, %v675
  %763 = vadd.xlane.f32.xlu0 %v762
  %v764 = vpop.xlane.xlu0 %763
  %v765 = vrot.slane %v764, 4
  %v766 = vadd.f32 %v764, %v765
  %v767 = vrot.slane %v766, 2
  %v768 = vadd.f32 %v766, %v767
  %v769 = vrot.slane %v768, 1
  %v770 = vadd.f32 %v768, %v769
  %s771 = vtos %v770
  %v772 = vmul.f32 %v643, %v643
  %v773 = vmul.f32 %v645, %v645
  %v774 = vmul.f32 %v647, %v647
  %v775 = vmul.f32 %v649, %v649
  %v776 = vmul.f32 %v653, %v653
  %v777 = vmul.f32 %v655, %v655
  %v778 = vmul.f32 %v657, %v657
  %v779 = vmul.f32 %v659, %v659
  %v780 = vmul.f32 %v663, %v663
  %v781 = vmul.f32 %v665, %v665
  %v782 = vmul.f32 %v667, %v667
  %v783 = vmul.f32 %v669, %v669
  %v784 = vmul.f32 %v673, %v673
  %v785 = vmul.f32 %v675, %v675
  %v786 = vadd.f32 %v772, %v773
  %v787 = vadd.f32 %v786, %v774
  %v788 = vadd.f32 %v787, %v775
  %v789 = vadd.f32 %v788, %v776
  %v790 = vadd.f32 %v789, %v777
  %v791 = vadd.f32 %v790, %v778
  %v792 = vadd.f32 %v791, %v779
  %v793 = vadd.f32 %v792, %v780
  %v794 = vadd.f32 %v793, %v781
  %v795 = vadd.f32 %v794, %v782
  %v796 = vadd.f32 %v795, %v783
  %v797 = vadd.f32 %v796, %v784
  %v798 = vadd.f32 %v797, %v785
  %799 = vadd.xlane.f32.xlu0 %v798
  %v800 = vpop.xlane.xlu0 %799
  %v801 = vrot.slane %v800, 4
  %v802 = vadd.f32 %v800, %v801
  %v803 = vrot.slane %v802, 2
  %v804 = vadd.f32 %v802, %v803
  %v805 = vrot.slane %v804, 1
  %v806 = vadd.f32 %v804, %v805
  %s807 = vtos %v806
  %s808 = smul.f32 %s771, 6.975447e-05
  %s809 = smul.f32 %s807, 6.975447e-05
  %s810 = smul.f32 %s808, %s808
  %s811 = ssub.f32 %s809, %s810
  %s812 = sadd.f32 %s811, 1e-05
  %v813 = vstv %s812
  %v814 = vrsqrt.pop %v813
  %s815 = vtos %v814
  %v816 = vstv %s808
  %v817 = vsub.f32 %v643, %v816
  %v818 = vsub.f32 %v645, %v816
  %v819 = vsub.f32 %v647, %v816
  %v820 = vsub.f32 %v649, %v816
  %v821 = vsub.f32 %v653, %v816
  %v822 = vsub.f32 %v655, %v816
  %v823 = vsub.f32 %v657, %v816
  %v824 = vsub.f32 %v659, %v816
  %v825 = vsub.f32 %v663, %v816
  %v826 = vsub.f32 %v665, %v816
  %v827 = vsub.f32 %v667, %v816
  %v828 = vsub.f32 %v669, %v816
  %v829 = vsub.f32 %v673, %v816
  %v830 = vsub.f32 %v675, %v816
  %v831 = vstv %s815
  %v832 = vmul.f32 %v817, %v831
  %v833 = vmul.f32 %v818, %v831
  %v834 = vmul.f32 %v819, %v831
  %v835 = vmul.f32 %v820, %v831
  %v836 = vmul.f32 %v821, %v831
  %v837 = vmul.f32 %v822, %v831
  %v838 = vmul.f32 %v823, %v831
  %v839 = vmul.f32 %v824, %v831
  %v840 = vmul.f32 %v825, %v831
  %v841 = vmul.f32 %v826, %v831
  %v842 = vmul.f32 %v827, %v831
  %v843 = vmul.f32 %v828, %v831
  %v844 = vmul.f32 %v829, %v831
  %v845 = vmul.f32 %v830, %v831
  %v846 = vadd.f32 %v714, %v716
  %v847 = vadd.f32 %v846, %v718
  %v848 = vadd.f32 %v847, %v720
  %v849 = vadd.f32 %v848, %v724
  %v850 = vadd.f32 %v849, %v726
  %v851 = vadd.f32 %v850, %v728
  %v852 = vadd.f32 %v851, %v730
  %v853 = vadd.f32 %v852, %v734
  %v854 = vadd.f32 %v853, %v736
  %v855 = vadd.f32 %v854, %v738
  %v856 = vadd.f32 %v855, %v740
  %v857 = vadd.f32 %v856, %v744
  %v858 = vadd.f32 %v857, %v746
  %859 = vadd.xlane.f32.xlu0 %v858
  %v860 = vpop.xlane.xlu0 %859
  %v861 = vrot.slane %v860, 4
  %v862 = vadd.f32 %v860, %v861
  %v863 = vrot.slane %v862, 2
  %v864 = vadd.f32 %v862, %v863
  %v865 = vrot.slane %v864, 1
  %v866 = vadd.f32 %v864, %v865
  %s867 = vtos %v866
  %v868 = vmul.f32 %v714, %v714
  %v869 = vmul.f32 %v716, %v716
  %v870 = vmul.f32 %v718, %v718
  %v871 = vmul.f32 %v720, %v720
  %v872 = vmul.f32 %v724, %v724
  %v873 = vmul.f32 %v726, %v726
  %v874 = vmul.f32 %v728, %v728
  %v875 = vmul.f32 %v730, %v730
  %v876 = vmul.f32 %v734, %v734
  %v877 = vmul.f32 %v736, %v736
  %v878 = vmul.f32 %v738, %v738
  %v879 = vmul.f32 %v740, %v740
  %v880 = vmul.f32 %v744, %v744
  %v881 = vmul.f32 %v746, %v746
  %v882 = vadd.f32 %v868, %v869
  %v883 = vadd.f32 %v882, %v870
  %v884 = vadd.f32 %v883, %v871
  %v885 = vadd.f32 %v884, %v872
  %v886 = vadd.f32 %v885, %v873
  %v887 = vadd.f32 %v886, %v874
  %v888 = vadd.f32 %v887, %v875
  %v889 = vadd.f32 %v888, %v876
  %v890 = vadd.f32 %v889, %v877
  %v891 = vadd.f32 %v890, %v878
  %v892 = vadd.f32 %v891, %v879
  %v893 = vadd.f32 %v892, %v880
  %v894 = vadd.f32 %v893, %v881
  %895 = vadd.xlane.f32.xlu0 %v894
  %v896 = vpop.xlane.xlu0 %895
  %v897 = vrot.slane %v896, 4
  %v898 = vadd.f32 %v896, %v897
  %v899 = vrot.slane %v898, 2
  %v900 = vadd.f32 %v898, %v899
  %v901 = vrot.slane %v900, 1
  %v902 = vadd.f32 %v900, %v901
  %s903 = vtos %v902
  %s904 = smul.f32 %s867, 6.975447e-05
  %s905 = smul.f32 %s903, 6.975447e-05
  %s906 = smul.f32 %s904, %s904
  %s907 = ssub.f32 %s905, %s906
  %s908 = sadd.f32 %s907, 1e-05
  %v909 = vstv %s908
  %v910 = vrsqrt.pop %v909
  %s911 = vtos %v910
  %v912 = vstv %s904
  %v913 = vsub.f32 %v714, %v912
  %v914 = vsub.f32 %v716, %v912
  %v915 = vsub.f32 %v718, %v912
  %v916 = vsub.f32 %v720, %v912
  %v917 = vsub.f32 %v724, %v912
  %v918 = vsub.f32 %v726, %v912
  %v919 = vsub.f32 %v728, %v912
  %v920 = vsub.f32 %v730, %v912
  %v921 = vsub.f32 %v734, %v912
  %v922 = vsub.f32 %v736, %v912
  %v923 = vsub.f32 %v738, %v912
  %v924 = vsub.f32 %v740, %v912
  %v925 = vsub.f32 %v744, %v912
  %v926 = vsub.f32 %v746, %v912
  %v927 = vstv %s911
  %v928 = vmul.f32 %v913, %v927
  %v929 = vmul.f32 %v914, %v927
  %v930 = vmul.f32 %v915, %v927
  %v931 = vmul.f32 %v916, %v927
  %v932 = vmul.f32 %v917, %v927
  %v933 = vmul.f32 %v918, %v927
  %v934 = vmul.f32 %v919, %v927
  %v935 = vmul.f32 %v920, %v927
  %v936 = vmul.f32 %v921, %v927
  %v937 = vmul.f32 %v922, %v927
  %v938 = vmul.f32 %v923, %v927
  %v939 = vmul.f32 %v924, %v927
  %v940 = vmul.f32 %v925, %v927
  %v941 = vmul.f32 %v926, %v927
  %v942 = vld [vmem:[%s15] sm:$0xff]
  %v943 = vld [vmem:[%s15 + $0x8] sm:$0xff]
  %v944 = vld [vmem:[%s15 + $0x10] sm:$0xff]
  %v945 = vld [vmem:[%s15 + $0x18] sm:$0xff]
  %v946 = vld [vmem:[%s15 + $0x20] sm:$0xff]
  %v947 = vld [vmem:[%s15 + $0x28] sm:$0xff]
  %v948 = vld [vmem:[%s15 + $0x30] sm:$0xff]
  %v949 = vld [vmem:[%s15 + $0x38] sm:$0xff]
  %v950 = vld [vmem:[%s15 + $0x40] sm:$0xff]
  %v951 = vld [vmem:[%s15 + $0x48] sm:$0xff]
  %v952 = vld [vmem:[%s15 + $0x50] sm:$0xff]
  %v953 = vld [vmem:[%s15 + $0x58] sm:$0xff]
  %v954 = vld [vmem:[%s15 + $0x60] sm:$0xff]
  %v955 = vld [vmem:[%s15 + $0x68] sm:$0xff]
  %v956 = vld [vmem:[%s15 + $0x70] sm:$0xff]
  %v957 = vld [vmem:[%s15 + $0x78] sm:$0xff]
  %v958 = vld [vmem:[%s15 + $0x80] sm:$0xff]
  %v959 = vld [vmem:[%s15 + $0x88] sm:$0xff]
  %v960 = vld [vmem:[%s15 + $0x90] sm:$0xff]
  %v961 = vld [vmem:[%s15 + $0x98] sm:$0xff]
  %v962 = vld [vmem:[%s15 + $0xa0] sm:$0xff]
  %v963 = vld [vmem:[%s15 + $0xa8] sm:$0xff]
  %v964 = vld [vmem:[%s15 + $0xb0] sm:$0xff]
  %v965 = vld [vmem:[%s15 + $0xb8] sm:$0xff]
  %v966 = vld [vmem:[%s15 + $0xc0] sm:$0xff]
  %v967 = vld [vmem:[%s15 + $0xc8] sm:$0xff]
  %v968 = vld [vmem:[%s15 + $0xd0] sm:$0xff]
  %v969 = vld [vmem:[%s15 + $0xd8] sm:$0xff]
  %v970 = vmul.f32 %v832, %v942
  %v971 = vmul.f32 %v833, %v943
  %v972 = vmul.f32 %v928, %v944
  %v973 = vmul.f32 %v929, %v945
  %v974 = vmul.f32 %v834, %v946
  %v975 = vmul.f32 %v835, %v947
  %v976 = vmul.f32 %v930, %v948
  %v977 = vmul.f32 %v931, %v949
  %v978 = vmul.f32 %v836, %v950
  %v979 = vmul.f32 %v837, %v951
  %v980 = vmul.f32 %v932, %v952
  %v981 = vmul.f32 %v933, %v953
  %v982 = vmul.f32 %v838, %v954
  %v983 = vmul.f32 %v839, %v955
  %v984 = vmul.f32 %v934, %v956
  %v985 = vmul.f32 %v935, %v957
  %v986 = vmul.f32 %v840, %v958
  %v987 = vmul.f32 %v841, %v959
  %v988 = vmul.f32 %v936, %v960
  %v989 = vmul.f32 %v937, %v961
  %v990 = vmul.f32 %v842, %v962
  %v991 = vmul.f32 %v843, %v963
  %v992 = vmul.f32 %v938, %v964
  %v993 = vmul.f32 %v939, %v965
  %v994 = vmul.f32 %v844, %v966
  %v995 = vmul.f32 %v845, %v967
  %v996 = vmul.f32 %v940, %v968
  %v997 = vmul.f32 %v941, %v969
  %v998 = vld [vmem:[%s17] sm:$0xff]
  %v999 = vld [vmem:[%s17 + $0x8] sm:$0xff]
  %v1000 = vld [vmem:[%s17 + $0x10] sm:$0xff]
  %v1001 = vld [vmem:[%s17 + $0x18] sm:$0xff]
  %v1002 = vld [vmem:[%s17 + $0x20] sm:$0xff]
  %v1003 = vld [vmem:[%s17 + $0x28] sm:$0xff]
  %v1004 = vld [vmem:[%s17 + $0x30] sm:$0xff]
  %v1005 = vld [vmem:[%s17 + $0x38] sm:$0xff]
  %v1006 = vld [vmem:[%s17 + $0x40] sm:$0xff]
  %v1007 = vld [vmem:[%s17 + $0x48] sm:$0xff]
  %v1008 = vld [vmem:[%s17 + $0x50] sm:$0xff]
  %v1009 = vld [vmem:[%s17 + $0x58] sm:$0xff]
  %v1010 = vld [vmem:[%s17 + $0x60] sm:$0xff]
  %v1011 = vld [vmem:[%s17 + $0x68] sm:$0xff]
  %v1012 = vld [vmem:[%s17 + $0x70] sm:$0xff]
  %v1013 = vld [vmem:[%s17 + $0x78] sm:$0xff]
  %v1014 = vld [vmem:[%s17 + $0x80] sm:$0xff]
  %v1015 = vld [vmem:[%s17 + $0x88] sm:$0xff]
  %v1016 = vld [vmem:[%s17 + $0x90] sm:$0xff]
  %v1017 = vld [vmem:[%s17 + $0x98] sm:$0xff]
  %v1018 = vld [vmem:[%s17 + $0xa0] sm:$0xff]
  %v1019 = vld [vmem:[%s17 + $0xa8] sm:$0xff]
  %v1020 = vld [vmem:[%s17 + $0xb0] sm:$0xff]
  %v1021 = vld [vmem:[%s17 + $0xb8] sm:$0xff]
  %v1022 = vld [vmem:[%s17 + $0xc0] sm:$0xff]
  %v1023 = vld [vmem:[%s17 + $0xc8] sm:$0xff]
  %v1024 = vld [vmem:[%s17 + $0xd0] sm:$0xff]
  %v1025 = vld [vmem:[%s17 + $0xd8] sm:$0xff]
  %v1026 = vadd.f32 %v970, %v998
  %v1027 = vadd.f32 %v971, %v999
  %v1028 = vadd.f32 %v972, %v1000
  %v1029 = vadd.f32 %v973, %v1001
  %v1030 = vadd.f32 %v974, %v1002
  %v1031 = vadd.f32 %v975, %v1003
  %v1032 = vadd.f32 %v976, %v1004
  %v1033 = vadd.f32 %v977, %v1005
  %v1034 = vadd.f32 %v978, %v1006
  %v1035 = vadd.f32 %v979, %v1007
  %v1036 = vadd.f32 %v980, %v1008
  %v1037 = vadd.f32 %v981, %v1009
  %v1038 = vadd.f32 %v982, %v1010
  %v1039 = vadd.f32 %v983, %v1011
  %v1040 = vadd.f32 %v984, %v1012
  %v1041 = vadd.f32 %v985, %v1013
  %v1042 = vadd.f32 %v986, %v1014
  %v1043 = vadd.f32 %v987, %v1015
  %v1044 = vadd.f32 %v988, %v1016
  %v1045 = vadd.f32 %v989, %v1017
  %v1046 = vadd.f32 %v990, %v1018
  %v1047 = vadd.f32 %v991, %v1019
  %v1048 = vadd.f32 %v992, %v1020
  %v1049 = vadd.f32 %v993, %v1021
  %v1050 = vadd.f32 %v994, %v1022
  %v1051 = vadd.f32 %v995, %v1023
  %v1052 = vadd.f32 %v996, %v1024
  %v1053 = vadd.f32 %v997, %v1025
  %1054 = vrot.lane.b32.xlu0 %v154, 17
  %v1055 = vpop.permute.xlu0 %1054
  %1056 = vrot.lane.b32.xlu0 %v155, 17
  %v1057 = vpop.permute.xlu0 %1056
  %1058 = vrot.lane.b32.xlu0 %v156, 17
  %v1059 = vpop.permute.xlu0 %1058
  %1060 = vrot.lane.b32.xlu0 %v157, 17
  %v1061 = vpop.permute.xlu0 %1060
  %v1062 = vsel %vm182, %v1059, %v1061
  %v1063 = vsel %vm182, %v1057, %v1059
  %v1064 = vsel %vm182, %v1055, %v1057
  %v1065 = vsel %vm182, %v1061, %v1055
  %v1066 = vmul.f32 %v1065, %v190
  %v1067 = vmul.f32 %v1064, %v194
  %v1068 = vmul.f32 %v1063, %v198
  %v1069 = vmul.f32 %v1062, %v202
  %1070 = vrot.lane.b32.xlu0 %v154, 16
  %v1071 = vpop.permute.xlu0 %1070
  %1072 = vrot.lane.b32.xlu0 %v155, 16
  %v1073 = vpop.permute.xlu0 %1072
  %1074 = vrot.lane.b32.xlu0 %v156, 16
  %v1075 = vpop.permute.xlu0 %1074
  %1076 = vrot.lane.b32.xlu0 %v157, 16
  %v1077 = vpop.permute.xlu0 %1076
  %v1078 = vsel %vm215, %v1075, %v1077
  %v1079 = vsel %vm215, %v1073, %v1075
  %v1080 = vsel %vm215, %v1071, %v1073
  %v1081 = vsel %vm215, %v1077, %v1071
  %v1082 = vmul.f32 %v1081, %v223
  %v1083 = vmul.f32 %v1080, %v227
  %v1084 = vmul.f32 %v1079, %v231
  %v1085 = vmul.f32 %v1078, %v235
  %1086 = vrot.lane.b32.xlu0 %v154, 15
  %v1087 = vpop.permute.xlu0 %1086
  %1088 = vrot.lane.b32.xlu0 %v155, 15
  %v1089 = vpop.permute.xlu0 %1088
  %1090 = vrot.lane.b32.xlu0 %v156, 15
  %v1091 = vpop.permute.xlu0 %1090
  %1092 = vrot.lane.b32.xlu0 %v157, 15
  %v1093 = vpop.permute.xlu0 %1092
  %v1094 = vsel %vm248, %v1091, %v1093
  %v1095 = vsel %vm248, %v1089, %v1091
  %v1096 = vsel %vm248, %v1087, %v1089
  %v1097 = vsel %vm248, %v1093, %v1087
  %v1098 = vmul.f32 %v1097, %v256
  %v1099 = vmul.f32 %v1096, %v260
  %v1100 = vmul.f32 %v1095, %v264
  %v1101 = vmul.f32 %v1094, %v268
  %1102 = vrot.lane.b32.xlu0 %v154, 1
  %v1103 = vpop.permute.xlu0 %1102
  %1104 = vrot.lane.b32.xlu0 %v155, 1
  %v1105 = vpop.permute.xlu0 %1104
  %1106 = vrot.lane.b32.xlu0 %v156, 1
  %v1107 = vpop.permute.xlu0 %1106
  %1108 = vrot.lane.b32.xlu0 %v157, 1
  %v1109 = vpop.permute.xlu0 %1108
  %v1110 = vsel %vm281, %v1107, %v1109
  %v1111 = vsel %vm281, %v1105, %v1107
  %v1112 = vsel %vm281, %v1103, %v1105
  %v1113 = vsel %vm281, %v1109, %v1103
  %v1114 = vmul.f32 %v1113, %v289
  %v1115 = vmul.f32 %v1112, %v293
  %v1116 = vmul.f32 %v1111, %v297
  %v1117 = vmul.f32 %v1110, %v301
  %1118 = vrot.lane.b32.xlu0 %v154, 127
  %v1119 = vpop.permute.xlu0 %1118
  %1120 = vrot.lane.b32.xlu0 %v155, 127
  %v1121 = vpop.permute.xlu0 %1120
  %1122 = vrot.lane.b32.xlu0 %v156, 127
  %v1123 = vpop.permute.xlu0 %1122
  %1124 = vrot.lane.b32.xlu0 %v157, 127
  %v1125 = vpop.permute.xlu0 %1124
  %v1126 = vsel %vm314, %v1123, %v1125
  %v1127 = vsel %vm314, %v1121, %v1123
  %v1128 = vsel %vm314, %v1119, %v1121
  %v1129 = vsel %vm314, %v1125, %v1119
  %v1130 = vmul.f32 %v1128, %v322
  %v1131 = vmul.f32 %v1127, %v326
  %v1132 = vmul.f32 %v1126, %v330
  %v1133 = vmul.f32 %v1129, %v334
  %1134 = vrot.lane.b32.xlu0 %v154, 113
  %v1135 = vpop.permute.xlu0 %1134
  %1136 = vrot.lane.b32.xlu0 %v155, 113
  %v1137 = vpop.permute.xlu0 %1136
  %1138 = vrot.lane.b32.xlu0 %v156, 113
  %v1139 = vpop.permute.xlu0 %1138
  %1140 = vrot.lane.b32.xlu0 %v157, 113
  %v1141 = vpop.permute.xlu0 %1140
  %v1142 = vsel %vm347, %v1139, %v1141
  %v1143 = vsel %vm347, %v1137, %v1139
  %v1144 = vsel %vm347, %v1135, %v1137
  %v1145 = vsel %vm347, %v1141, %v1135
  %v1146 = vmul.f32 %v1144, %v355
  %v1147 = vmul.f32 %v1143, %v359
  %v1148 = vmul.f32 %v1142, %v363
  %v1149 = vmul.f32 %v1145, %v367
  %1150 = vrot.lane.b32.xlu0 %v154, 112
  %v1151 = vpop.permute.xlu0 %1150
  %1152 = vrot.lane.b32.xlu0 %v155, 112
  %v1153 = vpop.permute.xlu0 %1152
  %1154 = vrot.lane.b32.xlu0 %v156, 112
  %v1155 = vpop.permute.xlu0 %1154
  %1156 = vrot.lane.b32.xlu0 %v157, 112
  %v1157 = vpop.permute.xlu0 %1156
  %v1158 = vsel %vm380, %v1155, %v1157
  %v1159 = vsel %vm380, %v1153, %v1155
  %v1160 = vsel %vm380, %v1151, %v1153
  %v1161 = vsel %vm380, %v1157, %v1151
  %v1162 = vmul.f32 %v1160, %v388
  %v1163 = vmul.f32 %v1159, %v392
  %v1164 = vmul.f32 %v1158, %v396
  %v1165 = vmul.f32 %v1161, %v400
  %1166 = vrot.lane.b32.xlu0 %v154, 111
  %v1167 = vpop.permute.xlu0 %1166
  %1168 = vrot.lane.b32.xlu0 %v155, 111
  %v1169 = vpop.permute.xlu0 %1168
  %1170 = vrot.lane.b32.xlu0 %v156, 111
  %v1171 = vpop.permute.xlu0 %1170
  %1172 = vrot.lane.b32.xlu0 %v157, 111
  %v1173 = vpop.permute.xlu0 %1172
  %v1174 = vsel %vm413, %v1171, %v1173
  %v1175 = vsel %vm413, %v1169, %v1171
  %v1176 = vsel %vm413, %v1167, %v1169
  %v1177 = vsel %vm413, %v1173, %v1167
  %v1178 = vmul.f32 %v1176, %v421
  %v1179 = vmul.f32 %v1175, %v425
  %v1180 = vmul.f32 %v1174, %v429
  %v1181 = vmul.f32 %v1177, %v433
  %v1182 = vpack.c.bf16 %v1082, %v1066
  %v1183 = vpack.c.bf16 %v1083, %v1067
  %v1184 = vpack.c.bf16 %v1084, %v1068
  %v1185 = vpack.c.bf16 %v1085, %v1069
  %v1186 = vpack.c.bf16 %v1114, %v1098
  %v1187 = vpack.c.bf16 %v1115, %v1099
  %v1188 = vpack.c.bf16 %v1116, %v1100
  %v1189 = vpack.c.bf16 %v1117, %v1101
  %v1190 = vpack.c.bf16 %v1130, %v154
  %v1191 = vpack.c.bf16 %v1131, %v155
  %v1192 = vpack.c.bf16 %v1132, %v156
  %v1193 = vpack.c.bf16 %v1133, %v157
  %v1194 = vpack.c.bf16 %v1162, %v1146
  %v1195 = vpack.c.bf16 %v1163, %v1147
  %v1196 = vpack.c.bf16 %v1164, %v1148
  %v1197 = vpack.c.bf16 %v1165, %v1149
  %v1198 = vpack.c.bf16 %v1178, %v1178
  %v1199 = vpack.c.bf16 %v1179, %v1179
  %v1200 = vpack.c.bf16 %v1180, %v1180
  %v1201 = vpack.c.bf16 %v1181, %v1181
  %v1202 = vld [vmem:[%s19] sm:$0xf]
  %v1203 = vld [vmem:[%s19 + $0x4] sm:$0xf]
  %v1204 = vld [vmem:[%s19 + $0x8] sm:$0xf]
  %v1205 = vld [vmem:[%s21] sm:$0xff]
  %v1206 = vld [vmem:[%s21 + $0x8] sm:$0xff]
  %v1207 = vld [vmem:[%s21 + $0x10] sm:$0xff]
  %1209 = vset.pattern.permute.xlu0 0
  %1210 = vperm.xlu0 %1209, %v1205
  %v1211 = vpop.permute.xlu0 %1210
  %1214 = vset.pattern.permute.xlu0 0
  %1215 = vperm.xlu0 %1214, %v1206
  %v1216 = vpop.permute.xlu0 %1215
  %1219 = vset.pattern.permute.xlu0 0
  %1220 = vperm.xlu0 %1219, %v1207
  %v1221 = vpop.permute.xlu0 %1220
  %v1226 = vunpack.c.l.b16 %v1202
  %v1227 = vunpack.c.l.b16 %v1203
  %v1228 = vunpack.c.l.b16 %v1204
  %v1229 = vpack.c.b16 %v1227, %v1226
  %v1230 = vpack.c.b16 %v1228, %v1228
  %vm1231 = vcmask 588800
  %v1233 = vsel %vm1231, %v1229, 0
  %v1236 = vsel %vm1231, %v1230, 0
  %v1239 = vsel %vm486, %v1198, 0
  %v1242 = vsel %vm486, %v1199, 0
  %v1245 = vsel %vm486, %v1200, 0
  %v1248 = vsel %vm486, %v1201, 0
  %1250 = vmatprep.subr.bf16.mxu0 0
  %1251 = vmatpush1.bf16.msra.mxu0 0
  %1252 = vmatprep.subr.bf16.mxu0 0
  %1253 = vmatpush1.bf16.msra.mxu0 0
  %1254 = vmatprep.subr.bf16.mxu0 0
  %1255 = vmatpush1.bf16.msra.mxu0 0
  %1256 = vmatprep.subr.bf16.mxu0 %v1242
  %1257 = vmatpush1.bf16.msra.mxu0 %v1239
  %1258 = vmatprep.subr.bf16.mxu0 %v1195
  %1259 = vmatpush1.bf16.msra.mxu0 %v1194
  %1260 = vmatprep.subr.bf16.mxu0 %v1191
  %1261 = vmatpush1.bf16.msra.mxu0 %v1190
  %1262 = vmatprep.subr.bf16.mxu0 %v1187
  %1263 = vmatpush1.bf16.msra.mxu0 %v1186
  %1264 = vmatprep.subr.bf16.mxu0 %v1183
  %1265 = vmatpush1.bf16.msra.mxu0 %v1182
  %1266 = vmatprep.subr.bf16.mxu0 0
  %1267 = vmatpush2.bf16.msra.mxu0 0
  %1268 = vmatprep.subr.bf16.mxu0 0
  %1269 = vmatpush2.bf16.msra.mxu0 0
  %1270 = vmatprep.subr.bf16.mxu0 0
  %1271 = vmatpush2.bf16.msra.mxu0 0
  %1272 = vmatprep.subr.bf16.mxu0 0
  %1273 = vmatpush2.bf16.msra.mxu0 0
  %1274 = vmatprep.subr.bf16.mxu0 0
  %1275 = vmatpush2.bf16.msra.mxu0 0
  %1276 = vmatprep.subr.bf16.mxu0 0
  %1277 = vmatpush2.bf16.msra.mxu0 0
  %1278 = vmatprep.subr.bf16.mxu0 0
  %1279 = vmatpush2.bf16.msra.mxu0 0
  %1280 = vmatprep.subr.bf16.mxu0 0
  %1281 = vmatpush2.bf16.msra.mxu0 0
  %1282 = vmatprep.mubr.bf16.mxu0 0
  %1283 = vmatmul.mubr.bf16.gmra.mxu0 %v1233
  %v1284 = vpop.f32.mrf.mxu0
  %v1285 = vadd.f32 %v1211, %v1284
  %v1286 = vpop.f32.mrf.mxu0
  %v1287 = vadd.f32 %v1211, %v1286
  %v1288 = vpop.f32.mrf.mxu0
  %v1289 = vadd.f32 %v1216, %v1288
  %v1290 = vpop.f32.mrf.mxu0
  %v1291 = vadd.f32 %v1216, %v1290
  %1292 = vmatprep.mubr.bf16.mxu0 0
  %1293 = vmatmul.mubr.bf16.gmra.mxu0 %v1236
  %v1294 = vpop.f32.mrf.mxu0
  %v1295 = vadd.f32 %v1221, %v1294
  %v1296 = vpop.f32.mrf.mxu0
  %v1297 = vadd.f32 %v1221, %v1296
  %v1298 = vpop.f32.mrf.mxu0
  %v1299 = vpop.f32.mrf.mxu0
  %1300 = vdwg.mxu0
  %1301 = vmatprep.subr.bf16.mxu0 0
  %1302 = vmatpush1.bf16.msra.mxu0 0
  %1303 = vmatprep.subr.bf16.mxu0 0
  %1304 = vmatpush1.bf16.msra.mxu0 0
  %1305 = vmatprep.subr.bf16.mxu0 0
  %1306 = vmatpush1.bf16.msra.mxu0 0
  %1307 = vmatprep.subr.bf16.mxu0 %v1248
  %1308 = vmatpush1.bf16.msra.mxu0 %v1245
  %1309 = vmatprep.subr.bf16.mxu0 %v1197
  %1310 = vmatpush1.bf16.msra.mxu0 %v1196
  %1311 = vmatprep.subr.bf16.mxu0 %v1193
  %1312 = vmatpush1.bf16.msra.mxu0 %v1192
  %1313 = vmatprep.subr.bf16.mxu0 %v1189
  %1314 = vmatpush1.bf16.msra.mxu0 %v1188
  %1315 = vmatprep.subr.bf16.mxu0 %v1185
  %1316 = vmatpush1.bf16.msra.mxu0 %v1184
  %1317 = vmatprep.subr.bf16.mxu0 0
  %1318 = vmatpush2.bf16.msra.mxu0 0
  %1319 = vmatprep.subr.bf16.mxu0 0
  %1320 = vmatpush2.bf16.msra.mxu0 0
  %1321 = vmatprep.subr.bf16.mxu0 0
  %1322 = vmatpush2.bf16.msra.mxu0 0
  %1323 = vmatprep.subr.bf16.mxu0 0
  %1324 = vmatpush2.bf16.msra.mxu0 0
  %1325 = vmatprep.subr.bf16.mxu0 0
  %1326 = vmatpush2.bf16.msra.mxu0 0
  %1327 = vmatprep.subr.bf16.mxu0 0
  %1328 = vmatpush2.bf16.msra.mxu0 0
  %1329 = vmatprep.subr.bf16.mxu0 0
  %1330 = vmatpush2.bf16.msra.mxu0 0
  %1331 = vmatprep.subr.bf16.mxu0 0
  %1332 = vmatpush2.bf16.msra.mxu0 0
  %1333 = vmatprep.mubr.bf16.mxu0 0
  %1334 = vmatmul.mubr.bf16.gmra.mxu0 %v1233
  %v1335 = vpop.f32.mrf.mxu0
  %v1336 = vadd.f32 %v1211, %v1335
  %v1337 = vpop.f32.mrf.mxu0
  %v1338 = vadd.f32 %v1211, %v1337
  %v1339 = vpop.f32.mrf.mxu0
  %v1340 = vadd.f32 %v1216, %v1339
  %v1341 = vpop.f32.mrf.mxu0
  %v1342 = vadd.f32 %v1216, %v1341
  %1343 = vmatprep.mubr.bf16.mxu0 0
  %1344 = vmatmul.mubr.bf16.gmra.mxu0 %v1236
  %v1345 = vpop.f32.mrf.mxu0
  %v1346 = vadd.f32 %v1221, %v1345
  %v1347 = vpop.f32.mrf.mxu0
  %v1348 = vadd.f32 %v1221, %v1347
  %v1349 = vpop.f32.mrf.mxu0
  %v1350 = vpop.f32.mrf.mxu0
  %1351 = vdwg.mxu0
  %v1352 = vadd.f32 %v1285, %v1287
  %v1353 = vadd.f32 %v1352, %v1289
  %v1354 = vadd.f32 %v1353, %v1291
  %v1355 = vadd.f32 %v1354, %v1295
  %v1356 = vadd.f32 %v1355, %v1297
  %1357 = vadd.xlane.f32.xlu0 %v1356
  %v1358 = vpop.xlane.xlu0 %1357
  %v1359 = vrot.slane %v1358, 4
  %v1360 = vadd.f32 %v1358, %v1359
  %v1361 = vrot.slane %v1360, 2
  %v1362 = vadd.f32 %v1360, %v1361
  %v1363 = vrot.slane %v1362, 1
  %v1364 = vadd.f32 %v1362, %v1363
  %s1365 = vtos %v1364
  %v1366 = vmul.f32 %v1285, %v1285
  %v1367 = vmul.f32 %v1287, %v1287
  %v1368 = vmul.f32 %v1289, %v1289
  %v1369 = vmul.f32 %v1291, %v1291
  %v1370 = vmul.f32 %v1295, %v1295
  %v1371 = vmul.f32 %v1297, %v1297
  %v1372 = vadd.f32 %v1366, %v1367
  %v1373 = vadd.f32 %v1372, %v1368
  %v1374 = vadd.f32 %v1373, %v1369
  %v1375 = vadd.f32 %v1374, %v1370
  %v1376 = vadd.f32 %v1375, %v1371
  %1377 = vadd.xlane.f32.xlu0 %v1376
  %v1378 = vpop.xlane.xlu0 %1377
  %v1379 = vrot.slane %v1378, 4
  %v1380 = vadd.f32 %v1378, %v1379
  %v1381 = vrot.slane %v1380, 2
  %v1382 = vadd.f32 %v1380, %v1381
  %v1383 = vrot.slane %v1382, 1
  %v1384 = vadd.f32 %v1382, %v1383
  %s1385 = vtos %v1384
  %s1386 = smul.f32 %s1365, 0.00016276042
  %s1387 = smul.f32 %s1385, 0.00016276042
  %s1388 = smul.f32 %s1386, %s1386
  %s1389 = ssub.f32 %s1387, %s1388
  %s1390 = sadd.f32 %s1389, 1e-05
  %v1391 = vstv %s1390
  %v1392 = vrsqrt.pop %v1391
  %s1393 = vtos %v1392
  %v1394 = vstv %s1386
  %v1395 = vsub.f32 %v1285, %v1394
  %v1396 = vsub.f32 %v1287, %v1394
  %v1397 = vsub.f32 %v1289, %v1394
  %v1398 = vsub.f32 %v1291, %v1394
  %v1399 = vsub.f32 %v1295, %v1394
  %v1400 = vsub.f32 %v1297, %v1394
  %v1401 = vstv %s1393
  %v1402 = vmul.f32 %v1395, %v1401
  %v1403 = vmul.f32 %v1396, %v1401
  %v1404 = vmul.f32 %v1397, %v1401
  %v1405 = vmul.f32 %v1398, %v1401
  %v1406 = vmul.f32 %v1399, %v1401
  %v1407 = vmul.f32 %v1400, %v1401
  %v1408 = vadd.f32 %v1336, %v1338
  %v1409 = vadd.f32 %v1408, %v1340
  %v1410 = vadd.f32 %v1409, %v1342
  %v1411 = vadd.f32 %v1410, %v1346
  %v1412 = vadd.f32 %v1411, %v1348
  %1413 = vadd.xlane.f32.xlu0 %v1412
  %v1414 = vpop.xlane.xlu0 %1413
  %v1415 = vrot.slane %v1414, 4
  %v1416 = vadd.f32 %v1414, %v1415
  %v1417 = vrot.slane %v1416, 2
  %v1418 = vadd.f32 %v1416, %v1417
  %v1419 = vrot.slane %v1418, 1
  %v1420 = vadd.f32 %v1418, %v1419
  %s1421 = vtos %v1420
  %v1422 = vmul.f32 %v1336, %v1336
  %v1423 = vmul.f32 %v1338, %v1338
  %v1424 = vmul.f32 %v1340, %v1340
  %v1425 = vmul.f32 %v1342, %v1342
  %v1426 = vmul.f32 %v1346, %v1346
  %v1427 = vmul.f32 %v1348, %v1348
  %v1428 = vadd.f32 %v1422, %v1423
  %v1429 = vadd.f32 %v1428, %v1424
  %v1430 = vadd.f32 %v1429, %v1425
  %v1431 = vadd.f32 %v1430, %v1426
  %v1432 = vadd.f32 %v1431, %v1427
  %1433 = vadd.xlane.f32.xlu0 %v1432
  %v1434 = vpop.xlane.xlu0 %1433
  %v1435 = vrot.slane %v1434, 4
  %v1436 = vadd.f32 %v1434, %v1435
  %v1437 = vrot.slane %v1436, 2
  %v1438 = vadd.f32 %v1436, %v1437
  %v1439 = vrot.slane %v1438, 1
  %v1440 = vadd.f32 %v1438, %v1439
  %s1441 = vtos %v1440
  %s1442 = smul.f32 %s1421, 0.00016276042
  %s1443 = smul.f32 %s1441, 0.00016276042
  %s1444 = smul.f32 %s1442, %s1442
  %s1445 = ssub.f32 %s1443, %s1444
  %s1446 = sadd.f32 %s1445, 1e-05
  %v1447 = vstv %s1446
  %v1448 = vrsqrt.pop %v1447
  %s1449 = vtos %v1448
  %v1450 = vstv %s1442
  %v1451 = vsub.f32 %v1336, %v1450
  %v1452 = vsub.f32 %v1338, %v1450
  %v1453 = vsub.f32 %v1340, %v1450
  %v1454 = vsub.f32 %v1342, %v1450
  %v1455 = vsub.f32 %v1346, %v1450
  %v1456 = vsub.f32 %v1348, %v1450
  %v1457 = vstv %s1449
  %v1458 = vmul.f32 %v1451, %v1457
  %v1459 = vmul.f32 %v1452, %v1457
  %v1460 = vmul.f32 %v1453, %v1457
  %v1461 = vmul.f32 %v1454, %v1457
  %v1462 = vmul.f32 %v1455, %v1457
  %v1463 = vmul.f32 %v1456, %v1457
  %v1464 = vld [vmem:[%s23] sm:$0xff]
  %v1465 = vld [vmem:[%s23 + $0x8] sm:$0xff]
  %v1466 = vld [vmem:[%s23 + $0x10] sm:$0xff]
  %v1467 = vld [vmem:[%s23 + $0x18] sm:$0xff]
  %v1468 = vld [vmem:[%s23 + $0x20] sm:$0xff]
  %v1469 = vld [vmem:[%s23 + $0x28] sm:$0xff]
  %v1470 = vld [vmem:[%s23 + $0x30] sm:$0xff]
  %v1471 = vld [vmem:[%s23 + $0x38] sm:$0xff]
  %v1472 = vld [vmem:[%s23 + $0x40] sm:$0xff]
  %v1473 = vld [vmem:[%s23 + $0x48] sm:$0xff]
  %v1474 = vld [vmem:[%s23 + $0x50] sm:$0xff]
  %v1475 = vld [vmem:[%s23 + $0x58] sm:$0xff]
  %v1476 = vmul.f32 %v1402, %v1464
  %v1477 = vmul.f32 %v1403, %v1465
  %v1478 = vmul.f32 %v1458, %v1466
  %v1479 = vmul.f32 %v1459, %v1467
  %v1480 = vmul.f32 %v1404, %v1468
  %v1481 = vmul.f32 %v1405, %v1469
  %v1482 = vmul.f32 %v1460, %v1470
  %v1483 = vmul.f32 %v1461, %v1471
  %v1484 = vmul.f32 %v1406, %v1472
  %v1485 = vmul.f32 %v1407, %v1473
  %v1486 = vmul.f32 %v1462, %v1474
  %v1487 = vmul.f32 %v1463, %v1475
  %v1488 = vld [vmem:[%s25] sm:$0xff]
  %v1489 = vld [vmem:[%s25 + $0x8] sm:$0xff]
  %v1490 = vld [vmem:[%s25 + $0x10] sm:$0xff]
  %v1491 = vld [vmem:[%s25 + $0x18] sm:$0xff]
  %v1492 = vld [vmem:[%s25 + $0x20] sm:$0xff]
  %v1493 = vld [vmem:[%s25 + $0x28] sm:$0xff]
  %v1494 = vld [vmem:[%s25 + $0x30] sm:$0xff]
  %v1495 = vld [vmem:[%s25 + $0x38] sm:$0xff]
  %v1496 = vld [vmem:[%s25 + $0x40] sm:$0xff]
  %v1497 = vld [vmem:[%s25 + $0x48] sm:$0xff]
  %v1498 = vld [vmem:[%s25 + $0x50] sm:$0xff]
  %v1499 = vld [vmem:[%s25 + $0x58] sm:$0xff]
  %v1500 = vadd.f32 %v1476, %v1488
  %v1501 = vadd.f32 %v1477, %v1489
  %v1502 = vadd.f32 %v1478, %v1490
  %v1503 = vadd.f32 %v1479, %v1491
  %v1504 = vadd.f32 %v1480, %v1492
  %v1505 = vadd.f32 %v1481, %v1493
  %v1506 = vadd.f32 %v1482, %v1494
  %v1507 = vadd.f32 %v1483, %v1495
  %v1508 = vadd.f32 %v1484, %v1496
  %v1509 = vadd.f32 %v1485, %v1497
  %v1510 = vadd.f32 %v1486, %v1498
  %v1511 = vadd.f32 %v1487, %v1499
  %1512 = vrot.lane.b32.xlu0 %v162, 17
  %v1513 = vpop.permute.xlu0 %1512
  %1514 = vrot.lane.b32.xlu0 %v163, 17
  %v1515 = vpop.permute.xlu0 %1514
  %1516 = vrot.lane.b32.xlu0 %v164, 17
  %v1517 = vpop.permute.xlu0 %1516
  %1518 = vrot.lane.b32.xlu0 %v165, 17
  %v1519 = vpop.permute.xlu0 %1518
  %v1520 = vsel %vm182, %v1517, %v1519
  %v1521 = vsel %vm182, %v1515, %v1517
  %v1522 = vsel %vm182, %v1513, %v1515
  %v1523 = vsel %vm182, %v1519, %v1513
  %v1524 = vmul.f32 %v1523, %v190
  %v1525 = vmul.f32 %v1522, %v194
  %v1526 = vmul.f32 %v1521, %v198
  %v1527 = vmul.f32 %v1520, %v202
  %1528 = vrot.lane.b32.xlu0 %v162, 16
  %v1529 = vpop.permute.xlu0 %1528
  %1530 = vrot.lane.b32.xlu0 %v163, 16
  %v1531 = vpop.permute.xlu0 %1530
  %1532 = vrot.lane.b32.xlu0 %v164, 16
  %v1533 = vpop.permute.xlu0 %1532
  %1534 = vrot.lane.b32.xlu0 %v165, 16
  %v1535 = vpop.permute.xlu0 %1534
  %v1536 = vsel %vm215, %v1533, %v1535
  %v1537 = vsel %vm215, %v1531, %v1533
  %v1538 = vsel %vm215, %v1529, %v1531
  %v1539 = vsel %vm215, %v1535, %v1529
  %v1540 = vmul.f32 %v1539, %v223
  %v1541 = vmul.f32 %v1538, %v227
  %v1542 = vmul.f32 %v1537, %v231
  %v1543 = vmul.f32 %v1536, %v235
  %1544 = vrot.lane.b32.xlu0 %v162, 15
  %v1545 = vpop.permute.xlu0 %1544
  %1546 = vrot.lane.b32.xlu0 %v163, 15
  %v1547 = vpop.permute.xlu0 %1546
  %1548 = vrot.lane.b32.xlu0 %v164, 15
  %v1549 = vpop.permute.xlu0 %1548
  %1550 = vrot.lane.b32.xlu0 %v165, 15
  %v1551 = vpop.permute.xlu0 %1550
  %v1552 = vsel %vm248, %v1549, %v1551
  %v1553 = vsel %vm248, %v1547, %v1549
  %v1554 = vsel %vm248, %v1545, %v1547
  %v1555 = vsel %vm248, %v1551, %v1545
  %v1556 = vmul.f32 %v1555, %v256
  %v1557 = vmul.f32 %v1554, %v260
  %v1558 = vmul.f32 %v1553, %v264
  %v1559 = vmul.f32 %v1552, %v268
  %1560 = vrot.lane.b32.xlu0 %v162, 1
  %v1561 = vpop.permute.xlu0 %1560
  %1562 = vrot.lane.b32.xlu0 %v163, 1
  %v1563 = vpop.permute.xlu0 %1562
  %1564 = vrot.lane.b32.xlu0 %v164, 1
  %v1565 = vpop.permute.xlu0 %1564
  %1566 = vrot.lane.b32.xlu0 %v165, 1
  %v1567 = vpop.permute.xlu0 %1566
  %v1568 = vsel %vm281, %v1565, %v1567
  %v1569 = vsel %vm281, %v1563, %v1565
  %v1570 = vsel %vm281, %v1561, %v1563
  %v1571 = vsel %vm281, %v1567, %v1561
  %v1572 = vmul.f32 %v1571, %v289
  %v1573 = vmul.f32 %v1570, %v293
  %v1574 = vmul.f32 %v1569, %v297
  %v1575 = vmul.f32 %v1568, %v301
  %1576 = vrot.lane.b32.xlu0 %v162, 127
  %v1577 = vpop.permute.xlu0 %1576
  %1578 = vrot.lane.b32.xlu0 %v163, 127
  %v1579 = vpop.permute.xlu0 %1578
  %1580 = vrot.lane.b32.xlu0 %v164, 127
  %v1581 = vpop.permute.xlu0 %1580
  %1582 = vrot.lane.b32.xlu0 %v165, 127
  %v1583 = vpop.permute.xlu0 %1582
  %v1584 = vsel %vm314, %v1581, %v1583
  %v1585 = vsel %vm314, %v1579, %v1581
  %v1586 = vsel %vm314, %v1577, %v1579
  %v1587 = vsel %vm314, %v1583, %v1577
  %v1588 = vmul.f32 %v1586, %v322
  %v1589 = vmul.f32 %v1585, %v326
  %v1590 = vmul.f32 %v1584, %v330
  %v1591 = vmul.f32 %v1587, %v334
  %1592 = vrot.lane.b32.xlu0 %v162, 113
  %v1593 = vpop.permute.xlu0 %1592
  %1594 = vrot.lane.b32.xlu0 %v163, 113
  %v1595 = vpop.permute.xlu0 %1594
  %1596 = vrot.lane.b32.xlu0 %v164, 113
  %v1597 = vpop.permute.xlu0 %1596
  %1598 = vrot.lane.b32.xlu0 %v165, 113
  %v1599 = vpop.permute.xlu0 %1598
  %v1600 = vsel %vm347, %v1597, %v1599
  %v1601 = vsel %vm347, %v1595, %v1597
  %v1602 = vsel %vm347, %v1593, %v1595
  %v1603 = vsel %vm347, %v1599, %v1593
  %v1604 = vmul.f32 %v1602, %v355
  %v1605 = vmul.f32 %v1601, %v359
  %v1606 = vmul.f32 %v1600, %v363
  %v1607 = vmul.f32 %v1603, %v367
  %1608 = vrot.lane.b32.xlu0 %v162, 112
  %v1609 = vpop.permute.xlu0 %1608
  %1610 = vrot.lane.b32.xlu0 %v163, 112
  %v1611 = vpop.permute.xlu0 %1610
  %1612 = vrot.lane.b32.xlu0 %v164, 112
  %v1613 = vpop.permute.xlu0 %1612
  %1614 = vrot.lane.b32.xlu0 %v165, 112
  %v1615 = vpop.permute.xlu0 %1614
  %v1616 = vsel %vm380, %v1613, %v1615
  %v1617 = vsel %vm380, %v1611, %v1613
  %v1618 = vsel %vm380, %v1609, %v1611
  %v1619 = vsel %vm380, %v1615, %v1609
  %v1620 = vmul.f32 %v1618, %v388
  %v1621 = vmul.f32 %v1617, %v392
  %v1622 = vmul.f32 %v1616, %v396
  %v1623 = vmul.f32 %v1619, %v400
  %1624 = vrot.lane.b32.xlu0 %v162, 111
  %v1625 = vpop.permute.xlu0 %1624
  %1626 = vrot.lane.b32.xlu0 %v163, 111
  %v1627 = vpop.permute.xlu0 %1626
  %1628 = vrot.lane.b32.xlu0 %v164, 111
  %v1629 = vpop.permute.xlu0 %1628
  %1630 = vrot.lane.b32.xlu0 %v165, 111
  %v1631 = vpop.permute.xlu0 %1630
  %v1632 = vsel %vm413, %v1629, %v1631
  %v1633 = vsel %vm413, %v1627, %v1629
  %v1634 = vsel %vm413, %v1625, %v1627
  %v1635 = vsel %vm413, %v1631, %v1625
  %v1636 = vmul.f32 %v1634, %v421
  %v1637 = vmul.f32 %v1633, %v425
  %v1638 = vmul.f32 %v1632, %v429
  %v1639 = vmul.f32 %v1635, %v433
  %v1640 = vpack.c.bf16 %v1540, %v1524
  %v1641 = vpack.c.bf16 %v1541, %v1525
  %v1642 = vpack.c.bf16 %v1542, %v1526
  %v1643 = vpack.c.bf16 %v1543, %v1527
  %v1644 = vpack.c.bf16 %v1572, %v1556
  %v1645 = vpack.c.bf16 %v1573, %v1557
  %v1646 = vpack.c.bf16 %v1574, %v1558
  %v1647 = vpack.c.bf16 %v1575, %v1559
  %v1648 = vpack.c.bf16 %v1588, %v162
  %v1649 = vpack.c.bf16 %v1589, %v163
  %v1650 = vpack.c.bf16 %v1590, %v164
  %v1651 = vpack.c.bf16 %v1591, %v165
  %v1652 = vpack.c.bf16 %v1620, %v1604
  %v1653 = vpack.c.bf16 %v1621, %v1605
  %v1654 = vpack.c.bf16 %v1622, %v1606
  %v1655 = vpack.c.bf16 %v1623, %v1607
  %v1656 = vpack.c.bf16 %v1636, %v1636
  %v1657 = vpack.c.bf16 %v1637, %v1637
  %v1658 = vpack.c.bf16 %v1638, %v1638
  %v1659 = vpack.c.bf16 %v1639, %v1639
  %v1660 = vld [vmem:[%s27] sm:$0xf]
  %v1661 = vld [vmem:[%s27 + $0x4] sm:$0xf]
  %v1662 = vld [vmem:[%s27 + $0x8] sm:$0xf]
  %v1663 = vld [vmem:[%s27 + $0xc] sm:$0xf]
  %v1664 = vld [vmem:[%s29] sm:$0xff]
  %v1665 = vld [vmem:[%s29 + $0x8] sm:$0xff]
  %v1666 = vld [vmem:[%s29 + $0x10] sm:$0xff]
  %v1667 = vld [vmem:[%s29 + $0x18] sm:$0xff]
  %1669 = vset.pattern.permute.xlu0 0
  %1670 = vperm.xlu0 %1669, %v1664
  %v1671 = vpop.permute.xlu0 %1670
  %1674 = vset.pattern.permute.xlu0 0
  %1675 = vperm.xlu0 %1674, %v1665
  %v1676 = vpop.permute.xlu0 %1675
  %1679 = vset.pattern.permute.xlu0 0
  %1680 = vperm.xlu0 %1679, %v1666
  %v1681 = vpop.permute.xlu0 %1680
  %1684 = vset.pattern.permute.xlu0 0
  %1685 = vperm.xlu0 %1684, %v1667
  %v1686 = vpop.permute.xlu0 %1685
  %v1692 = vunpack.c.l.b16 %v1660
  %v1693 = vunpack.c.l.b16 %v1661
  %v1694 = vunpack.c.l.b16 %v1662
  %v1695 = vunpack.c.l.b16 %v1663
  %v1696 = vpack.c.b16 %v1693, %v1692
  %v1697 = vpack.c.b16 %v1695, %v1694
  %v1699 = vsel %vm1231, %v1696, 0
  %v1702 = vsel %vm1231, %v1697, 0
  %v1705 = vsel %vm486, %v1656, 0
  %v1708 = vsel %vm486, %v1657, 0
  %v1711 = vsel %vm486, %v1658, 0
  %v1714 = vsel %vm486, %v1659, 0
  %1716 = vmatprep.subr.bf16.mxu0 0
  %1717 = vmatpush1.bf16.msra.mxu0 0
  %1718 = vmatprep.subr.bf16.mxu0 0
  %1719 = vmatpush1.bf16.msra.mxu0 0
  %1720 = vmatprep.subr.bf16.mxu0 0
  %1721 = vmatpush1.bf16.msra.mxu0 0
  %1722 = vmatprep.subr.bf16.mxu0 %v1708
  %1723 = vmatpush1.bf16.msra.mxu0 %v1705
  %1724 = vmatprep.subr.bf16.mxu0 %v1653
  %1725 = vmatpush1.bf16.msra.mxu0 %v1652
  %1726 = vmatprep.subr.bf16.mxu0 %v1649
  %1727 = vmatpush1.bf16.msra.mxu0 %v1648
  %1728 = vmatprep.subr.bf16.mxu0 %v1645
  %1729 = vmatpush1.bf16.msra.mxu0 %v1644
  %1730 = vmatprep.subr.bf16.mxu0 %v1641
  %1731 = vmatpush1.bf16.msra.mxu0 %v1640
  %1732 = vmatprep.subr.bf16.mxu0 0
  %1733 = vmatpush2.bf16.msra.mxu0 0
  %1734 = vmatprep.subr.bf16.mxu0 0
  %1735 = vmatpush2.bf16.msra.mxu0 0
  %1736 = vmatprep.subr.bf16.mxu0 0
  %1737 = vmatpush2.bf16.msra.mxu0 0
  %1738 = vmatprep.subr.bf16.mxu0 0
  %1739 = vmatpush2.bf16.msra.mxu0 0
  %1740 = vmatprep.subr.bf16.mxu0 0
  %1741 = vmatpush2.bf16.msra.mxu0 0
  %1742 = vmatprep.subr.bf16.mxu0 0
  %1743 = vmatpush2.bf16.msra.mxu0 0
  %1744 = vmatprep.subr.bf16.mxu0 0
  %1745 = vmatpush2.bf16.msra.mxu0 0
  %1746 = vmatprep.subr.bf16.mxu0 0
  %1747 = vmatpush2.bf16.msra.mxu0 0
  %1748 = vmatprep.mubr.bf16.mxu0 0
  %1749 = vmatmul.mubr.bf16.gmra.mxu0 %v1699
  %v1750 = vpop.f32.mrf.mxu0
  %v1751 = vadd.f32 %v1671, %v1750
  %v1752 = vpop.f32.mrf.mxu0
  %v1753 = vadd.f32 %v1671, %v1752
  %v1754 = vpop.f32.mrf.mxu0
  %v1755 = vadd.f32 %v1676, %v1754
  %v1756 = vpop.f32.mrf.mxu0
  %v1757 = vadd.f32 %v1676, %v1756
  %1758 = vmatprep.mubr.bf16.mxu0 0
  %1759 = vmatmul.mubr.bf16.gmra.mxu0 %v1702
  %v1760 = vpop.f32.mrf.mxu0
  %v1761 = vadd.f32 %v1681, %v1760
  %v1762 = vpop.f32.mrf.mxu0
  %v1763 = vadd.f32 %v1681, %v1762
  %v1764 = vpop.f32.mrf.mxu0
  %v1765 = vadd.f32 %v1686, %v1764
  %v1766 = vpop.f32.mrf.mxu0
  %v1767 = vadd.f32 %v1686, %v1766
  %1768 = vdwg.mxu0
  %1769 = vmatprep.subr.bf16.mxu0 0
  %1770 = vmatpush1.bf16.msra.mxu0 0
  %1771 = vmatprep.subr.bf16.mxu0 0
  %1772 = vmatpush1.bf16.msra.mxu0 0
  %1773 = vmatprep.subr.bf16.mxu0 0
  %1774 = vmatpush1.bf16.msra.mxu0 0
  %1775 = vmatprep.subr.bf16.mxu0 %v1714
  %1776 = vmatpush1.bf16.msra.mxu0 %v1711
  %1777 = vmatprep.subr.bf16.mxu0 %v1655
  %1778 = vmatpush1.bf16.msra.mxu0 %v1654
  %1779 = vmatprep.subr.bf16.mxu0 %v1651
  %1780 = vmatpush1.bf16.msra.mxu0 %v1650
  %1781 = vmatprep.subr.bf16.mxu0 %v1647
  %1782 = vmatpush1.bf16.msra.mxu0 %v1646
  %1783 = vmatprep.subr.bf16.mxu0 %v1643
  %1784 = vmatpush1.bf16.msra.mxu0 %v1642
  %1785 = vmatprep.subr.bf16.mxu0 0
  %1786 = vmatpush2.bf16.msra.mxu0 0
  %1787 = vmatprep.subr.bf16.mxu0 0
  %1788 = vmatpush2.bf16.msra.mxu0 0
  %1789 = vmatprep.subr.bf16.mxu0 0
  %1790 = vmatpush2.bf16.msra.mxu0 0
  %1791 = vmatprep.subr.bf16.mxu0 0
  %1792 = vmatpush2.bf16.msra.mxu0 0
  %1793 = vmatprep.subr.bf16.mxu0 0
  %1794 = vmatpush2.bf16.msra.mxu0 0
  %1795 = vmatprep.subr.bf16.mxu0 0
  %1796 = vmatpush2.bf16.msra.mxu0 0
  %1797 = vmatprep.subr.bf16.mxu0 0
  %1798 = vmatpush2.bf16.msra.mxu0 0
  %1799 = vmatprep.subr.bf16.mxu0 0
  %1800 = vmatpush2.bf16.msra.mxu0 0
  %1801 = vmatprep.mubr.bf16.mxu0 0
  %1802 = vmatmul.mubr.bf16.gmra.mxu0 %v1699
  %v1803 = vpop.f32.mrf.mxu0
  %v1804 = vadd.f32 %v1671, %v1803
  %v1805 = vpop.f32.mrf.mxu0
  %v1806 = vadd.f32 %v1671, %v1805
  %v1807 = vpop.f32.mrf.mxu0
  %v1808 = vadd.f32 %v1676, %v1807
  %v1809 = vpop.f32.mrf.mxu0
  %v1810 = vadd.f32 %v1676, %v1809
  %1811 = vmatprep.mubr.bf16.mxu0 0
  %1812 = vmatmul.mubr.bf16.gmra.mxu0 %v1702
  %v1813 = vpop.f32.mrf.mxu0
  %v1814 = vadd.f32 %v1681, %v1813
  %v1815 = vpop.f32.mrf.mxu0
  %v1816 = vadd.f32 %v1681, %v1815
  %v1817 = vpop.f32.mrf.mxu0
  %v1818 = vadd.f32 %v1686, %v1817
  %v1819 = vpop.f32.mrf.mxu0
  %v1820 = vadd.f32 %v1686, %v1819
  %1821 = vdwg.mxu0
  %v1822 = vadd.f32 %v1751, %v1753
  %v1823 = vadd.f32 %v1822, %v1755
  %v1824 = vadd.f32 %v1823, %v1757
  %v1825 = vadd.f32 %v1824, %v1761
  %v1826 = vadd.f32 %v1825, %v1763
  %v1827 = vadd.f32 %v1826, %v1765
  %v1828 = vadd.f32 %v1827, %v1767
  %1829 = vadd.xlane.f32.xlu0 %v1828
  %v1830 = vpop.xlane.xlu0 %1829
  %v1831 = vrot.slane %v1830, 4
  %v1832 = vadd.f32 %v1830, %v1831
  %v1833 = vrot.slane %v1832, 2
  %v1834 = vadd.f32 %v1832, %v1833
  %v1835 = vrot.slane %v1834, 1
  %v1836 = vadd.f32 %v1834, %v1835
  %s1837 = vtos %v1836
  %v1838 = vmul.f32 %v1751, %v1751
  %v1839 = vmul.f32 %v1753, %v1753
  %v1840 = vmul.f32 %v1755, %v1755
  %v1841 = vmul.f32 %v1757, %v1757
  %v1842 = vmul.f32 %v1761, %v1761
  %v1843 = vmul.f32 %v1763, %v1763
  %v1844 = vmul.f32 %v1765, %v1765
  %v1845 = vmul.f32 %v1767, %v1767
  %v1846 = vadd.f32 %v1838, %v1839
  %v1847 = vadd.f32 %v1846, %v1840
  %v1848 = vadd.f32 %v1847, %v1841
  %v1849 = vadd.f32 %v1848, %v1842
  %v1850 = vadd.f32 %v1849, %v1843
  %v1851 = vadd.f32 %v1850, %v1844
  %v1852 = vadd.f32 %v1851, %v1845
  %1853 = vadd.xlane.f32.xlu0 %v1852
  %v1854 = vpop.xlane.xlu0 %1853
  %v1855 = vrot.slane %v1854, 4
  %v1856 = vadd.f32 %v1854, %v1855
  %v1857 = vrot.slane %v1856, 2
  %v1858 = vadd.f32 %v1856, %v1857
  %v1859 = vrot.slane %v1858, 1
  %v1860 = vadd.f32 %v1858, %v1859
  %s1861 = vtos %v1860
  %s1862 = smul.f32 %s1837, 0.00012207031
  %s1863 = smul.f32 %s1861, 0.00012207031
  %s1864 = smul.f32 %s1862, %s1862
  %s1865 = ssub.f32 %s1863, %s1864
  %s1866 = sadd.f32 %s1865, 1e-05
  %v1867 = vstv %s1866
  %v1868 = vrsqrt.pop %v1867
  %s1869 = vtos %v1868
  %v1870 = vstv %s1862
  %v1871 = vsub.f32 %v1751, %v1870
  %v1872 = vsub.f32 %v1753, %v1870
  %v1873 = vsub.f32 %v1755, %v1870
  %v1874 = vsub.f32 %v1757, %v1870
  %v1875 = vsub.f32 %v1761, %v1870
  %v1876 = vsub.f32 %v1763, %v1870
  %v1877 = vsub.f32 %v1765, %v1870
  %v1878 = vsub.f32 %v1767, %v1870
  %v1879 = vstv %s1869
  %v1880 = vmul.f32 %v1871, %v1879
  %v1881 = vmul.f32 %v1872, %v1879
  %v1882 = vmul.f32 %v1873, %v1879
  %v1883 = vmul.f32 %v1874, %v1879
  %v1884 = vmul.f32 %v1875, %v1879
  %v1885 = vmul.f32 %v1876, %v1879
  %v1886 = vmul.f32 %v1877, %v1879
  %v1887 = vmul.f32 %v1878, %v1879
  %v1888 = vadd.f32 %v1804, %v1806
  %v1889 = vadd.f32 %v1888, %v1808
  %v1890 = vadd.f32 %v1889, %v1810
  %v1891 = vadd.f32 %v1890, %v1814
  %v1892 = vadd.f32 %v1891, %v1816
  %v1893 = vadd.f32 %v1892, %v1818
  %v1894 = vadd.f32 %v1893, %v1820
  %1895 = vadd.xlane.f32.xlu0 %v1894
  %v1896 = vpop.xlane.xlu0 %1895
  %v1897 = vrot.slane %v1896, 4
  %v1898 = vadd.f32 %v1896, %v1897
  %v1899 = vrot.slane %v1898, 2
  %v1900 = vadd.f32 %v1898, %v1899
  %v1901 = vrot.slane %v1900, 1
  %v1902 = vadd.f32 %v1900, %v1901
  %s1903 = vtos %v1902
  %v1904 = vmul.f32 %v1804, %v1804
  %v1905 = vmul.f32 %v1806, %v1806
  %v1906 = vmul.f32 %v1808, %v1808
  %v1907 = vmul.f32 %v1810, %v1810
  %v1908 = vmul.f32 %v1814, %v1814
  %v1909 = vmul.f32 %v1816, %v1816
  %v1910 = vmul.f32 %v1818, %v1818
  %v1911 = vmul.f32 %v1820, %v1820
  %v1912 = vadd.f32 %v1904, %v1905
  %v1913 = vadd.f32 %v1912, %v1906
  %v1914 = vadd.f32 %v1913, %v1907
  %v1915 = vadd.f32 %v1914, %v1908
  %v1916 = vadd.f32 %v1915, %v1909
  %v1917 = vadd.f32 %v1916, %v1910
  %v1918 = vadd.f32 %v1917, %v1911
  %1919 = vadd.xlane.f32.xlu0 %v1918
  %v1920 = vpop.xlane.xlu0 %1919
  %v1921 = vrot.slane %v1920, 4
  %v1922 = vadd.f32 %v1920, %v1921
  %v1923 = vrot.slane %v1922, 2
  %v1924 = vadd.f32 %v1922, %v1923
  %v1925 = vrot.slane %v1924, 1
  %v1926 = vadd.f32 %v1924, %v1925
  %s1927 = vtos %v1926
  %s1928 = smul.f32 %s1903, 0.00012207031
  %s1929 = smul.f32 %s1927, 0.00012207031
  %s1930 = smul.f32 %s1928, %s1928
  %s1931 = ssub.f32 %s1929, %s1930
  %s1932 = sadd.f32 %s1931, 1e-05
  %v1933 = vstv %s1932
  %v1934 = vrsqrt.pop %v1933
  %s1935 = vtos %v1934
  %v1936 = vstv %s1928
  %v1937 = vsub.f32 %v1804, %v1936
  %v1938 = vsub.f32 %v1806, %v1936
  %v1939 = vsub.f32 %v1808, %v1936
  %v1940 = vsub.f32 %v1810, %v1936
  %v1941 = vsub.f32 %v1814, %v1936
  %v1942 = vsub.f32 %v1816, %v1936
  %v1943 = vsub.f32 %v1818, %v1936
  %v1944 = vsub.f32 %v1820, %v1936
  %v1945 = vstv %s1935
  %v1946 = vmul.f32 %v1937, %v1945
  %v1947 = vmul.f32 %v1938, %v1945
  %v1948 = vmul.f32 %v1939, %v1945
  %v1949 = vmul.f32 %v1940, %v1945
  %v1950 = vmul.f32 %v1941, %v1945
  %v1951 = vmul.f32 %v1942, %v1945
  %v1952 = vmul.f32 %v1943, %v1945
  %v1953 = vmul.f32 %v1944, %v1945
  %v1954 = vld [vmem:[%s31] sm:$0xff]
  %v1955 = vld [vmem:[%s31 + $0x8] sm:$0xff]
  %v1956 = vld [vmem:[%s31 + $0x10] sm:$0xff]
  %v1957 = vld [vmem:[%s31 + $0x18] sm:$0xff]
  %v1958 = vld [vmem:[%s31 + $0x20] sm:$0xff]
  %v1959 = vld [vmem:[%s31 + $0x28] sm:$0xff]
  %v1960 = vld [vmem:[%s31 + $0x30] sm:$0xff]
  %v1961 = vld [vmem:[%s31 + $0x38] sm:$0xff]
  %v1962 = vld [vmem:[%s31 + $0x40] sm:$0xff]
  %v1963 = vld [vmem:[%s31 + $0x48] sm:$0xff]
  %v1964 = vld [vmem:[%s31 + $0x50] sm:$0xff]
  %v1965 = vld [vmem:[%s31 + $0x58] sm:$0xff]
  %v1966 = vld [vmem:[%s31 + $0x60] sm:$0xff]
  %v1967 = vld [vmem:[%s31 + $0x68] sm:$0xff]
  %v1968 = vld [vmem:[%s31 + $0x70] sm:$0xff]
  %v1969 = vld [vmem:[%s31 + $0x78] sm:$0xff]
  %v1970 = vmul.f32 %v1880, %v1954
  %v1971 = vmul.f32 %v1881, %v1955
  %v1972 = vmul.f32 %v1946, %v1956
  %v1973 = vmul.f32 %v1947, %v1957
  %v1974 = vmul.f32 %v1882, %v1958
  %v1975 = vmul.f32 %v1883, %v1959
  %v1976 = vmul.f32 %v1948, %v1960
  %v1977 = vmul.f32 %v1949, %v1961
  %v1978 = vmul.f32 %v1884, %v1962
  %v1979 = vmul.f32 %v1885, %v1963
  %v1980 = vmul.f32 %v1950, %v1964
  %v1981 = vmul.f32 %v1951, %v1965
  %v1982 = vmul.f32 %v1886, %v1966
  %v1983 = vmul.f32 %v1887, %v1967
  %v1984 = vmul.f32 %v1952, %v1968
  %v1985 = vmul.f32 %v1953, %v1969
  %v1986 = vld [vmem:[%s33] sm:$0xff]
  %v1987 = vld [vmem:[%s33 + $0x8] sm:$0xff]
  %v1988 = vld [vmem:[%s33 + $0x10] sm:$0xff]
  %v1989 = vld [vmem:[%s33 + $0x18] sm:$0xff]
  %v1990 = vld [vmem:[%s33 + $0x20] sm:$0xff]
  %v1991 = vld [vmem:[%s33 + $0x28] sm:$0xff]
  %v1992 = vld [vmem:[%s33 + $0x30] sm:$0xff]
  %v1993 = vld [vmem:[%s33 + $0x38] sm:$0xff]
  %v1994 = vld [vmem:[%s33 + $0x40] sm:$0xff]
  %v1995 = vld [vmem:[%s33 + $0x48] sm:$0xff]
  %v1996 = vld [vmem:[%s33 + $0x50] sm:$0xff]
  %v1997 = vld [vmem:[%s33 + $0x58] sm:$0xff]
  %v1998 = vld [vmem:[%s33 + $0x60] sm:$0xff]
  %v1999 = vld [vmem:[%s33 + $0x68] sm:$0xff]
  %v2000 = vld [vmem:[%s33 + $0x70] sm:$0xff]
  %v2001 = vld [vmem:[%s33 + $0x78] sm:$0xff]
  %v2002 = vadd.f32 %v1970, %v1986
  %v2003 = vadd.f32 %v1971, %v1987
  %v2004 = vadd.f32 %v1972, %v1988
  %v2005 = vadd.f32 %v1973, %v1989
  %v2006 = vadd.f32 %v1974, %v1990
  %v2007 = vadd.f32 %v1975, %v1991
  %v2008 = vadd.f32 %v1976, %v1992
  %v2009 = vadd.f32 %v1977, %v1993
  %v2010 = vadd.f32 %v1978, %v1994
  %v2011 = vadd.f32 %v1979, %v1995
  %v2012 = vadd.f32 %v1980, %v1996
  %v2013 = vadd.f32 %v1981, %v1997
  %v2014 = vadd.f32 %v1982, %v1998
  %v2015 = vadd.f32 %v1983, %v1999
  %v2016 = vadd.f32 %v1984, %v2000
  %v2017 = vadd.f32 %v1985, %v2001
  %2018 = vrot.lane.b32.xlu0 %v158, 17
  %v2019 = vpop.permute.xlu0 %2018
  %2020 = vrot.lane.b32.xlu0 %v159, 17
  %v2021 = vpop.permute.xlu0 %2020
  %2022 = vrot.lane.b32.xlu0 %v160, 17
  %v2023 = vpop.permute.xlu0 %2022
  %2024 = vrot.lane.b32.xlu0 %v161, 17
  %v2025 = vpop.permute.xlu0 %2024
  %v2026 = vsel %vm182, %v2023, %v2025
  %v2027 = vsel %vm182, %v2021, %v2023
  %v2028 = vsel %vm182, %v2019, %v2021
  %v2029 = vsel %vm182, %v2025, %v2019
  %v2030 = vmul.f32 %v2029, %v190
  %v2031 = vmul.f32 %v2028, %v194
  %v2032 = vmul.f32 %v2027, %v198
  %v2033 = vmul.f32 %v2026, %v202
  %2034 = vrot.lane.b32.xlu0 %v158, 16
  %v2035 = vpop.permute.xlu0 %2034
  %2036 = vrot.lane.b32.xlu0 %v159, 16
  %v2037 = vpop.permute.xlu0 %2036
  %2038 = vrot.lane.b32.xlu0 %v160, 16
  %v2039 = vpop.permute.xlu0 %2038
  %2040 = vrot.lane.b32.xlu0 %v161, 16
  %v2041 = vpop.permute.xlu0 %2040
  %v2042 = vsel %vm215, %v2039, %v2041
  %v2043 = vsel %vm215, %v2037, %v2039
  %v2044 = vsel %vm215, %v2035, %v2037
  %v2045 = vsel %vm215, %v2041, %v2035
  %v2046 = vmul.f32 %v2045, %v223
  %v2047 = vmul.f32 %v2044, %v227
  %v2048 = vmul.f32 %v2043, %v231
  %v2049 = vmul.f32 %v2042, %v235
  %2050 = vrot.lane.b32.xlu0 %v158, 15
  %v2051 = vpop.permute.xlu0 %2050
  %2052 = vrot.lane.b32.xlu0 %v159, 15
  %v2053 = vpop.permute.xlu0 %2052
  %2054 = vrot.lane.b32.xlu0 %v160, 15
  %v2055 = vpop.permute.xlu0 %2054
  %2056 = vrot.lane.b32.xlu0 %v161, 15
  %v2057 = vpop.permute.xlu0 %2056
  %v2058 = vsel %vm248, %v2055, %v2057
  %v2059 = vsel %vm248, %v2053, %v2055
  %v2060 = vsel %vm248, %v2051, %v2053
  %v2061 = vsel %vm248, %v2057, %v2051
  %v2062 = vmul.f32 %v2061, %v256
  %v2063 = vmul.f32 %v2060, %v260
  %v2064 = vmul.f32 %v2059, %v264
  %v2065 = vmul.f32 %v2058, %v268
  %2066 = vrot.lane.b32.xlu0 %v158, 1
  %v2067 = vpop.permute.xlu0 %2066
  %2068 = vrot.lane.b32.xlu0 %v159, 1
  %v2069 = vpop.permute.xlu0 %2068
  %2070 = vrot.lane.b32.xlu0 %v160, 1
  %v2071 = vpop.permute.xlu0 %2070
  %2072 = vrot.lane.b32.xlu0 %v161, 1
  %v2073 = vpop.permute.xlu0 %2072
  %v2074 = vsel %vm281, %v2071, %v2073
  %v2075 = vsel %vm281, %v2069, %v2071
  %v2076 = vsel %vm281, %v2067, %v2069
  %v2077 = vsel %vm281, %v2073, %v2067
  %v2078 = vmul.f32 %v2077, %v289
  %v2079 = vmul.f32 %v2076, %v293
  %v2080 = vmul.f32 %v2075, %v297
  %v2081 = vmul.f32 %v2074, %v301
  %2082 = vrot.lane.b32.xlu0 %v158, 127
  %v2083 = vpop.permute.xlu0 %2082
  %2084 = vrot.lane.b32.xlu0 %v159, 127
  %v2085 = vpop.permute.xlu0 %2084
  %2086 = vrot.lane.b32.xlu0 %v160, 127
  %v2087 = vpop.permute.xlu0 %2086
  %2088 = vrot.lane.b32.xlu0 %v161, 127
  %v2089 = vpop.permute.xlu0 %2088
  %v2090 = vsel %vm314, %v2087, %v2089
  %v2091 = vsel %vm314, %v2085, %v2087
  %v2092 = vsel %vm314, %v2083, %v2085
  %v2093 = vsel %vm314, %v2089, %v2083
  %v2094 = vmul.f32 %v2092, %v322
  %v2095 = vmul.f32 %v2091, %v326
  %v2096 = vmul.f32 %v2090, %v330
  %v2097 = vmul.f32 %v2093, %v334
  %2098 = vrot.lane.b32.xlu0 %v158, 113
  %v2099 = vpop.permute.xlu0 %2098
  %2100 = vrot.lane.b32.xlu0 %v159, 113
  %v2101 = vpop.permute.xlu0 %2100
  %2102 = vrot.lane.b32.xlu0 %v160, 113
  %v2103 = vpop.permute.xlu0 %2102
  %2104 = vrot.lane.b32.xlu0 %v161, 113
  %v2105 = vpop.permute.xlu0 %2104
  %v2106 = vsel %vm347, %v2103, %v2105
  %v2107 = vsel %vm347, %v2101, %v2103
  %v2108 = vsel %vm347, %v2099, %v2101
  %v2109 = vsel %vm347, %v2105, %v2099
  %v2110 = vmul.f32 %v2108, %v355
  %v2111 = vmul.f32 %v2107, %v359
  %v2112 = vmul.f32 %v2106, %v363
  %v2113 = vmul.f32 %v2109, %v367
  %2114 = vrot.lane.b32.xlu0 %v158, 112
  %v2115 = vpop.permute.xlu0 %2114
  %2116 = vrot.lane.b32.xlu0 %v159, 112
  %v2117 = vpop.permute.xlu0 %2116
  %2118 = vrot.lane.b32.xlu0 %v160, 112
  %v2119 = vpop.permute.xlu0 %2118
  %2120 = vrot.lane.b32.xlu0 %v161, 112
  %v2121 = vpop.permute.xlu0 %2120
  %v2122 = vsel %vm380, %v2119, %v2121
  %v2123 = vsel %vm380, %v2117, %v2119
  %v2124 = vsel %vm380, %v2115, %v2117
  %v2125 = vsel %vm380, %v2121, %v2115
  %v2126 = vmul.f32 %v2124, %v388
  %v2127 = vmul.f32 %v2123, %v392
  %v2128 = vmul.f32 %v2122, %v396
  %v2129 = vmul.f32 %v2125, %v400
  %2130 = vrot.lane.b32.xlu0 %v158, 111
  %v2131 = vpop.permute.xlu0 %2130
  %2132 = vrot.lane.b32.xlu0 %v159, 111
  %v2133 = vpop.permute.xlu0 %2132
  %2134 = vrot.lane.b32.xlu0 %v160, 111
  %v2135 = vpop.permute.xlu0 %2134
  %2136 = vrot.lane.b32.xlu0 %v161, 111
  %v2137 = vpop.permute.xlu0 %2136
  %v2138 = vsel %vm413, %v2135, %v2137
  %v2139 = vsel %vm413, %v2133, %v2135
  %v2140 = vsel %vm413, %v2131, %v2133
  %v2141 = vsel %vm413, %v2137, %v2131
  %v2142 = vmul.f32 %v2140, %v421
  %v2143 = vmul.f32 %v2139, %v425
  %v2144 = vmul.f32 %v2138, %v429
  %v2145 = vmul.f32 %v2141, %v433
  %v2146 = vpack.c.bf16 %v2046, %v2030
  %v2147 = vpack.c.bf16 %v2047, %v2031
  %v2148 = vpack.c.bf16 %v2048, %v2032
  %v2149 = vpack.c.bf16 %v2049, %v2033
  %v2150 = vpack.c.bf16 %v2078, %v2062
  %v2151 = vpack.c.bf16 %v2079, %v2063
  %v2152 = vpack.c.bf16 %v2080, %v2064
  %v2153 = vpack.c.bf16 %v2081, %v2065
  %v2154 = vpack.c.bf16 %v2094, %v158
  %v2155 = vpack.c.bf16 %v2095, %v159
  %v2156 = vpack.c.bf16 %v2096, %v160
  %v2157 = vpack.c.bf16 %v2097, %v161
  %v2158 = vpack.c.bf16 %v2126, %v2110
  %v2159 = vpack.c.bf16 %v2127, %v2111
  %v2160 = vpack.c.bf16 %v2128, %v2112
  %v2161 = vpack.c.bf16 %v2129, %v2113
  %v2162 = vpack.c.bf16 %v2142, %v2142
  %v2163 = vpack.c.bf16 %v2143, %v2143
  %v2164 = vpack.c.bf16 %v2144, %v2144
  %v2165 = vpack.c.bf16 %v2145, %v2145
  %v2166 = vld [vmem:[%s35] sm:$0xf]
  %v2167 = vld [vmem:[%s35 + $0x4] sm:$0xf]
  %v2168 = vld [vmem:[%s35 + $0x8] sm:$0xf]
  %v2169 = vld [vmem:[%s37] sm:$0xff]
  %v2170 = vld [vmem:[%s37 + $0x8] sm:$0xff]
  %v2171 = vld [vmem:[%s37 + $0x10] sm:$0xff]
  %2173 = vset.pattern.permute.xlu0 0
  %2174 = vperm.xlu0 %2173, %v2169
  %v2175 = vpop.permute.xlu0 %2174
  %2178 = vset.pattern.permute.xlu0 0
  %2179 = vperm.xlu0 %2178, %v2170
  %v2180 = vpop.permute.xlu0 %2179
  %2183 = vset.pattern.permute.xlu0 0
  %2184 = vperm.xlu0 %2183, %v2171
  %v2185 = vpop.permute.xlu0 %2184
  %v2190 = vunpack.c.l.b16 %v2166
  %v2191 = vunpack.c.l.b16 %v2167
  %v2192 = vunpack.c.l.b16 %v2168
  %v2193 = vpack.c.b16 %v2191, %v2190
  %v2194 = vpack.c.b16 %v2192, %v2192
  %v2196 = vsel %vm1231, %v2193, 0
  %v2199 = vsel %vm1231, %v2194, 0
  %v2202 = vsel %vm486, %v2162, 0
  %v2205 = vsel %vm486, %v2163, 0
  %v2208 = vsel %vm486, %v2164, 0
  %v2211 = vsel %vm486, %v2165, 0
  %2213 = vmatprep.subr.bf16.mxu0 0
  %2214 = vmatpush1.bf16.msra.mxu0 0
  %2215 = vmatprep.subr.bf16.mxu0 0
  %2216 = vmatpush1.bf16.msra.mxu0 0
  %2217 = vmatprep.subr.bf16.mxu0 0
  %2218 = vmatpush1.bf16.msra.mxu0 0
  %2219 = vmatprep.subr.bf16.mxu0 %v2205
  %2220 = vmatpush1.bf16.msra.mxu0 %v2202
  %2221 = vmatprep.subr.bf16.mxu0 %v2159
  %2222 = vmatpush1.bf16.msra.mxu0 %v2158
  %2223 = vmatprep.subr.bf16.mxu0 %v2155
  %2224 = vmatpush1.bf16.msra.mxu0 %v2154
  %2225 = vmatprep.subr.bf16.mxu0 %v2151
  %2226 = vmatpush1.bf16.msra.mxu0 %v2150
  %2227 = vmatprep.subr.bf16.mxu0 %v2147
  %2228 = vmatpush1.bf16.msra.mxu0 %v2146
  %2229 = vmatprep.subr.bf16.mxu0 0
  %2230 = vmatpush2.bf16.msra.mxu0 0
  %2231 = vmatprep.subr.bf16.mxu0 0
  %2232 = vmatpush2.bf16.msra.mxu0 0
  %2233 = vmatprep.subr.bf16.mxu0 0
  %2234 = vmatpush2.bf16.msra.mxu0 0
  %2235 = vmatprep.subr.bf16.mxu0 0
  %2236 = vmatpush2.bf16.msra.mxu0 0
  %2237 = vmatprep.subr.bf16.mxu0 0
  %2238 = vmatpush2.bf16.msra.mxu0 0
  %2239 = vmatprep.subr.bf16.mxu0 0
  %2240 = vmatpush2.bf16.msra.mxu0 0
  %2241 = vmatprep.subr.bf16.mxu0 0
  %2242 = vmatpush2.bf16.msra.mxu0 0
  %2243 = vmatprep.subr.bf16.mxu0 0
  %2244 = vmatpush2.bf16.msra.mxu0 0
  %2245 = vmatprep.mubr.bf16.mxu0 0
  %2246 = vmatmul.mubr.bf16.gmra.mxu0 %v2196
  %v2247 = vpop.f32.mrf.mxu0
  %v2248 = vadd.f32 %v2175, %v2247
  %v2249 = vpop.f32.mrf.mxu0
  %v2250 = vadd.f32 %v2175, %v2249
  %v2251 = vpop.f32.mrf.mxu0
  %v2252 = vadd.f32 %v2180, %v2251
  %v2253 = vpop.f32.mrf.mxu0
  %v2254 = vadd.f32 %v2180, %v2253
  %2255 = vmatprep.mubr.bf16.mxu0 0
  %2256 = vmatmul.mubr.bf16.gmra.mxu0 %v2199
  %v2257 = vpop.f32.mrf.mxu0
  %v2258 = vadd.f32 %v2185, %v2257
  %v2259 = vpop.f32.mrf.mxu0
  %v2260 = vadd.f32 %v2185, %v2259
  %v2261 = vpop.f32.mrf.mxu0
  %v2262 = vpop.f32.mrf.mxu0
  %2263 = vdwg.mxu0
  %2264 = vmatprep.subr.bf16.mxu0 0
  %2265 = vmatpush1.bf16.msra.mxu0 0
  %2266 = vmatprep.subr.bf16.mxu0 0
  %2267 = vmatpush1.bf16.msra.mxu0 0
  %2268 = vmatprep.subr.bf16.mxu0 0
  %2269 = vmatpush1.bf16.msra.mxu0 0
  %2270 = vmatprep.subr.bf16.mxu0 %v2211
  %2271 = vmatpush1.bf16.msra.mxu0 %v2208
  %2272 = vmatprep.subr.bf16.mxu0 %v2161
  %2273 = vmatpush1.bf16.msra.mxu0 %v2160
  %2274 = vmatprep.subr.bf16.mxu0 %v2157
  %2275 = vmatpush1.bf16.msra.mxu0 %v2156
  %2276 = vmatprep.subr.bf16.mxu0 %v2153
  %2277 = vmatpush1.bf16.msra.mxu0 %v2152
  %2278 = vmatprep.subr.bf16.mxu0 %v2149
  %2279 = vmatpush1.bf16.msra.mxu0 %v2148
  %2280 = vmatprep.subr.bf16.mxu0 0
  %2281 = vmatpush2.bf16.msra.mxu0 0
  %2282 = vmatprep.subr.bf16.mxu0 0
  %2283 = vmatpush2.bf16.msra.mxu0 0
  %2284 = vmatprep.subr.bf16.mxu0 0
  %2285 = vmatpush2.bf16.msra.mxu0 0
  %2286 = vmatprep.subr.bf16.mxu0 0
  %2287 = vmatpush2.bf16.msra.mxu0 0
  %2288 = vmatprep.subr.bf16.mxu0 0
  %2289 = vmatpush2.bf16.msra.mxu0 0
  %2290 = vmatprep.subr.bf16.mxu0 0
  %2291 = vmatpush2.bf16.msra.mxu0 0
  %2292 = vmatprep.subr.bf16.mxu0 0
  %2293 = vmatpush2.bf16.msra.mxu0 0
  %2294 = vmatprep.subr.bf16.mxu0 0
  %2295 = vmatpush2.bf16.msra.mxu0 0
  %2296 = vmatprep.mubr.bf16.mxu0 0
  %2297 = vmatmul.mubr.bf16.gmra.mxu0 %v2196
  %v2298 = vpop.f32.mrf.mxu0
  %v2299 = vadd.f32 %v2175, %v2298
  %v2300 = vpop.f32.mrf.mxu0
  %v2301 = vadd.f32 %v2175, %v2300
  %v2302 = vpop.f32.mrf.mxu0
  %v2303 = vadd.f32 %v2180, %v2302
  %v2304 = vpop.f32.mrf.mxu0
  %v2305 = vadd.f32 %v2180, %v2304
  %2306 = vmatprep.mubr.bf16.mxu0 0
  %2307 = vmatmul.mubr.bf16.gmra.mxu0 %v2199
  %v2308 = vpop.f32.mrf.mxu0
  %v2309 = vadd.f32 %v2185, %v2308
  %v2310 = vpop.f32.mrf.mxu0
  %v2311 = vadd.f32 %v2185, %v2310
  %v2312 = vpop.f32.mrf.mxu0
  %v2313 = vpop.f32.mrf.mxu0
  %2314 = vdwg.mxu0
  %v2315 = vadd.f32 %v2248, %v2250
  %v2316 = vadd.f32 %v2315, %v2252
  %v2317 = vadd.f32 %v2316, %v2254
  %v2318 = vadd.f32 %v2317, %v2258
  %v2319 = vadd.f32 %v2318, %v2260
  %2320 = vadd.xlane.f32.xlu0 %v2319
  %v2321 = vpop.xlane.xlu0 %2320
  %v2322 = vrot.slane %v2321, 4
  %v2323 = vadd.f32 %v2321, %v2322
  %v2324 = vrot.slane %v2323, 2
  %v2325 = vadd.f32 %v2323, %v2324
  %v2326 = vrot.slane %v2325, 1
  %v2327 = vadd.f32 %v2325, %v2326
  %s2328 = vtos %v2327
  %v2329 = vmul.f32 %v2248, %v2248
  %v2330 = vmul.f32 %v2250, %v2250
  %v2331 = vmul.f32 %v2252, %v2252
  %v2332 = vmul.f32 %v2254, %v2254
  %v2333 = vmul.f32 %v2258, %v2258
  %v2334 = vmul.f32 %v2260, %v2260
  %v2335 = vadd.f32 %v2329, %v2330
  %v2336 = vadd.f32 %v2335, %v2331
  %v2337 = vadd.f32 %v2336, %v2332
  %v2338 = vadd.f32 %v2337, %v2333
  %v2339 = vadd.f32 %v2338, %v2334
  %2340 = vadd.xlane.f32.xlu0 %v2339
  %v2341 = vpop.xlane.xlu0 %2340
  %v2342 = vrot.slane %v2341, 4
  %v2343 = vadd.f32 %v2341, %v2342
  %v2344 = vrot.slane %v2343, 2
  %v2345 = vadd.f32 %v2343, %v2344
  %v2346 = vrot.slane %v2345, 1
  %v2347 = vadd.f32 %v2345, %v2346
  %s2348 = vtos %v2347
  %s2349 = smul.f32 %s2328, 0.00016276042
  %s2350 = smul.f32 %s2348, 0.00016276042
  %s2351 = smul.f32 %s2349, %s2349
  %s2352 = ssub.f32 %s2350, %s2351
  %s2353 = sadd.f32 %s2352, 1e-05
  %v2354 = vstv %s2353
  %v2355 = vrsqrt.pop %v2354
  %s2356 = vtos %v2355
  %v2357 = vstv %s2349
  %v2358 = vsub.f32 %v2248, %v2357
  %v2359 = vsub.f32 %v2250, %v2357
  %v2360 = vsub.f32 %v2252, %v2357
  %v2361 = vsub.f32 %v2254, %v2357
  %v2362 = vsub.f32 %v2258, %v2357
  %v2363 = vsub.f32 %v2260, %v2357
  %v2364 = vstv %s2356
  %v2365 = vmul.f32 %v2358, %v2364
  %v2366 = vmul.f32 %v2359, %v2364
  %v2367 = vmul.f32 %v2360, %v2364
  %v2368 = vmul.f32 %v2361, %v2364
  %v2369 = vmul.f32 %v2362, %v2364
  %v2370 = vmul.f32 %v2363, %v2364
  %v2371 = vadd.f32 %v2299, %v2301
  %v2372 = vadd.f32 %v2371, %v2303
  %v2373 = vadd.f32 %v2372, %v2305
  %v2374 = vadd.f32 %v2373, %v2309
  %v2375 = vadd.f32 %v2374, %v2311
  %2376 = vadd.xlane.f32.xlu0 %v2375
  %v2377 = vpop.xlane.xlu0 %2376
  %v2378 = vrot.slane %v2377, 4
  %v2379 = vadd.f32 %v2377, %v2378
  %v2380 = vrot.slane %v2379, 2
  %v2381 = vadd.f32 %v2379, %v2380
  %v2382 = vrot.slane %v2381, 1
  %v2383 = vadd.f32 %v2381, %v2382
  %s2384 = vtos %v2383
  %v2385 = vmul.f32 %v2299, %v2299
  %v2386 = vmul.f32 %v2301, %v2301
  %v2387 = vmul.f32 %v2303, %v2303
  %v2388 = vmul.f32 %v2305, %v2305
  %v2389 = vmul.f32 %v2309, %v2309
  %v2390 = vmul.f32 %v2311, %v2311
  %v2391 = vadd.f32 %v2385, %v2386
  %v2392 = vadd.f32 %v2391, %v2387
  %v2393 = vadd.f32 %v2392, %v2388
  %v2394 = vadd.f32 %v2393, %v2389
  %v2395 = vadd.f32 %v2394, %v2390
  %2396 = vadd.xlane.f32.xlu0 %v2395
  %v2397 = vpop.xlane.xlu0 %2396
  %v2398 = vrot.slane %v2397, 4
  %v2399 = vadd.f32 %v2397, %v2398
  %v2400 = vrot.slane %v2399, 2
  %v2401 = vadd.f32 %v2399, %v2400
  %v2402 = vrot.slane %v2401, 1
  %v2403 = vadd.f32 %v2401, %v2402
  %s2404 = vtos %v2403
  %s2405 = smul.f32 %s2384, 0.00016276042
  %s2406 = smul.f32 %s2404, 0.00016276042
  %s2407 = smul.f32 %s2405, %s2405
  %s2408 = ssub.f32 %s2406, %s2407
  %s2409 = sadd.f32 %s2408, 1e-05
  %v2410 = vstv %s2409
  %v2411 = vrsqrt.pop %v2410
  %s2412 = vtos %v2411
  %v2413 = vstv %s2405
  %v2414 = vsub.f32 %v2299, %v2413
  %v2415 = vsub.f32 %v2301, %v2413
  %v2416 = vsub.f32 %v2303, %v2413
  %v2417 = vsub.f32 %v2305, %v2413
  %v2418 = vsub.f32 %v2309, %v2413
  %v2419 = vsub.f32 %v2311, %v2413
  %v2420 = vstv %s2412
  %v2421 = vmul.f32 %v2414, %v2420
  %v2422 = vmul.f32 %v2415, %v2420
  %v2423 = vmul.f32 %v2416, %v2420
  %v2424 = vmul.f32 %v2417, %v2420
  %v2425 = vmul.f32 %v2418, %v2420
  %v2426 = vmul.f32 %v2419, %v2420
  %v2427 = vld [vmem:[%s39] sm:$0xff]
  %v2428 = vld [vmem:[%s39 + $0x8] sm:$0xff]
  %v2429 = vld [vmem:[%s39 + $0x10] sm:$0xff]
  %v2430 = vld [vmem:[%s39 + $0x18] sm:$0xff]
  %v2431 = vld [vmem:[%s39 + $0x20] sm:$0xff]
  %v2432 = vld [vmem:[%s39 + $0x28] sm:$0xff]
  %v2433 = vld [vmem:[%s39 + $0x30] sm:$0xff]
  %v2434 = vld [vmem:[%s39 + $0x38] sm:$0xff]
  %v2435 = vld [vmem:[%s39 + $0x40] sm:$0xff]
  %v2436 = vld [vmem:[%s39 + $0x48] sm:$0xff]
  %v2437 = vld [vmem:[%s39 + $0x50] sm:$0xff]
  %v2438 = vld [vmem:[%s39 + $0x58] sm:$0xff]
  %v2439 = vmul.f32 %v2365, %v2427
  %v2440 = vmul.f32 %v2366, %v2428
  %v2441 = vmul.f32 %v2421, %v2429
  %v2442 = vmul.f32 %v2422, %v2430
  %v2443 = vmul.f32 %v2367, %v2431
  %v2444 = vmul.f32 %v2368, %v2432
  %v2445 = vmul.f32 %v2423, %v2433
  %v2446 = vmul.f32 %v2424, %v2434
  %v2447 = vmul.f32 %v2369, %v2435
  %v2448 = vmul.f32 %v2370, %v2436
  %v2449 = vmul.f32 %v2425, %v2437
  %v2450 = vmul.f32 %v2426, %v2438
  %v2451 = vld [vmem:[%s41] sm:$0xff]
  %v2452 = vld [vmem:[%s41 + $0x8] sm:$0xff]
  %v2453 = vld [vmem:[%s41 + $0x10] sm:$0xff]
  %v2454 = vld [vmem:[%s41 + $0x18] sm:$0xff]
  %v2455 = vld [vmem:[%s41 + $0x20] sm:$0xff]
  %v2456 = vld [vmem:[%s41 + $0x28] sm:$0xff]
  %v2457 = vld [vmem:[%s41 + $0x30] sm:$0xff]
  %v2458 = vld [vmem:[%s41 + $0x38] sm:$0xff]
  %v2459 = vld [vmem:[%s41 + $0x40] sm:$0xff]
  %v2460 = vld [vmem:[%s41 + $0x48] sm:$0xff]
  %v2461 = vld [vmem:[%s41 + $0x50] sm:$0xff]
  %v2462 = vld [vmem:[%s41 + $0x58] sm:$0xff]
  %v2463 = vadd.f32 %v2439, %v2451
  %v2464 = vadd.f32 %v2440, %v2452
  %v2465 = vadd.f32 %v2441, %v2453
  %v2466 = vadd.f32 %v2442, %v2454
  %v2467 = vadd.f32 %v2443, %v2455
  %v2468 = vadd.f32 %v2444, %v2456
  %v2469 = vadd.f32 %v2445, %v2457
  %v2470 = vadd.f32 %v2446, %v2458
  %v2471 = vadd.f32 %v2447, %v2459
  %v2472 = vadd.f32 %v2448, %v2460
  %v2473 = vadd.f32 %v2449, %v2461
  %v2474 = vadd.f32 %v2450, %v2462
  %v2475 = vadd.f32 %v1026, %v1500
  %v2476 = vadd.f32 %v1027, %v1501
  %v2477 = vadd.f32 %v1028, %v1502
  %v2478 = vadd.f32 %v1029, %v1503
  %v2479 = vadd.f32 %v2475, %v2463
  %v2480 = vadd.f32 %v2476, %v2464
  %v2481 = vadd.f32 %v2477, %v2465
  %v2482 = vadd.f32 %v2478, %v2466
  %v2483 = vmul.f32 %v2479, 0.5
  %v2484 = vmul.f32 %v2480, 0.5
  %v2485 = vmul.f32 %v2481, 0.5
  %v2486 = vmul.f32 %v2482, 0.5
  %v2487 = vtanh.pop %v2483
  %v2488 = vtanh.pop %v2484
  %v2489 = vtanh.pop %v2485
  %v2490 = vtanh.pop %v2486
  %v2491 = vmul.f32 %v2487, 0.5
  %v2492 = vmul.f32 %v2488, 0.5
  %v2493 = vmul.f32 %v2489, 0.5
  %v2494 = vmul.f32 %v2490, 0.5
  %v2495 = vadd.f32 %v2491, 0.5
  %v2496 = vadd.f32 %v2492, 0.5
  %v2497 = vadd.f32 %v2493, 0.5
  %v2498 = vadd.f32 %v2494, 0.5
  %v2499 = vadd.f32 %v1030, %v1504
  %v2500 = vadd.f32 %v1031, %v1505
  %v2501 = vadd.f32 %v1032, %v1506
  %v2502 = vadd.f32 %v1033, %v1507
  %v2503 = vadd.f32 %v2499, %v2467
  %v2504 = vadd.f32 %v2500, %v2468
  %v2505 = vadd.f32 %v2501, %v2469
  %v2506 = vadd.f32 %v2502, %v2470
  %v2507 = vmul.f32 %v2503, 0.5
  %v2508 = vmul.f32 %v2504, 0.5
  %v2509 = vmul.f32 %v2505, 0.5
  %v2510 = vmul.f32 %v2506, 0.5
  %v2511 = vtanh.pop %v2507
  %v2512 = vtanh.pop %v2508
  %v2513 = vtanh.pop %v2509
  %v2514 = vtanh.pop %v2510
  %v2515 = vmul.f32 %v2511, 0.5
  %v2516 = vmul.f32 %v2512, 0.5
  %v2517 = vmul.f32 %v2513, 0.5
  %v2518 = vmul.f32 %v2514, 0.5
  %v2519 = vadd.f32 %v2515, 0.5
  %v2520 = vadd.f32 %v2516, 0.5
  %v2521 = vadd.f32 %v2517, 0.5
  %v2522 = vadd.f32 %v2518, 0.5
  %v2523 = vadd.f32 %v1034, %v1508
  %v2524 = vadd.f32 %v1035, %v1509
  %v2525 = vadd.f32 %v1036, %v1510
  %v2526 = vadd.f32 %v1037, %v1511
  %v2527 = vadd.f32 %v2523, %v2471
  %v2528 = vadd.f32 %v2524, %v2472
  %v2529 = vadd.f32 %v2525, %v2473
  %v2530 = vadd.f32 %v2526, %v2474
  %v2531 = vtanh.pop %v2527
  %v2532 = vtanh.pop %v2528
  %v2533 = vtanh.pop %v2529
  %v2534 = vtanh.pop %v2530
  %v2535 = vmul.f32 %v2519, %v158
  %v2536 = vmul.f32 %v2520, %v159
  %v2537 = vmul.f32 %v2521, %v160
  %v2538 = vmul.f32 %v2522, %v161
  %v2539 = vmul.f32 %v2495, %v2531
  %v2540 = vmul.f32 %v2496, %v2532
  %v2541 = vmul.f32 %v2497, %v2533
  %v2542 = vmul.f32 %v2498, %v2534
  %v2543 = vadd.f32 %v2535, %v2539
  %v2544 = vadd.f32 %v2536, %v2540
  %v2545 = vadd.f32 %v2537, %v2541
  %v2546 = vadd.f32 %v2538, %v2542
  %2547 = vrot.lane.b32.xlu0 %v2543, 17
  %v2548 = vpop.permute.xlu0 %2547
  %2549 = vrot.lane.b32.xlu0 %v2544, 17
  %v2550 = vpop.permute.xlu0 %2549
  %2551 = vrot.lane.b32.xlu0 %v2545, 17
  %v2552 = vpop.permute.xlu0 %2551
  %2553 = vrot.lane.b32.xlu0 %v2546, 17
  %v2554 = vpop.permute.xlu0 %2553
  %v2555 = vsel %vm182, %v2552, %v2554
  %v2556 = vsel %vm182, %v2550, %v2552
  %v2557 = vsel %vm182, %v2548, %v2550
  %v2558 = vsel %vm182, %v2554, %v2548
  %v2559 = vmul.f32 %v2558, %v190
  %v2560 = vmul.f32 %v2557, %v194
  %v2561 = vmul.f32 %v2556, %v198
  %v2562 = vmul.f32 %v2555, %v202
  %2563 = vrot.lane.b32.xlu0 %v2543, 16
  %v2564 = vpop.permute.xlu0 %2563
  %2565 = vrot.lane.b32.xlu0 %v2544, 16
  %v2566 = vpop.permute.xlu0 %2565
  %2567 = vrot.lane.b32.xlu0 %v2545, 16
  %v2568 = vpop.permute.xlu0 %2567
  %2569 = vrot.lane.b32.xlu0 %v2546, 16
  %v2570 = vpop.permute.xlu0 %2569
  %v2571 = vsel %vm215, %v2568, %v2570
  %v2572 = vsel %vm215, %v2566, %v2568
  %v2573 = vsel %vm215, %v2564, %v2566
  %v2574 = vsel %vm215, %v2570, %v2564
  %v2575 = vmul.f32 %v2574, %v223
  %v2576 = vmul.f32 %v2573, %v227
  %v2577 = vmul.f32 %v2572, %v231
  %v2578 = vmul.f32 %v2571, %v235
  %2579 = vrot.lane.b32.xlu0 %v2543, 15
  %v2580 = vpop.permute.xlu0 %2579
  %2581 = vrot.lane.b32.xlu0 %v2544, 15
  %v2582 = vpop.permute.xlu0 %2581
  %2583 = vrot.lane.b32.xlu0 %v2545, 15
  %v2584 = vpop.permute.xlu0 %2583
  %2585 = vrot.lane.b32.xlu0 %v2546, 15
  %v2586 = vpop.permute.xlu0 %2585
  %v2587 = vsel %vm248, %v2584, %v2586
  %v2588 = vsel %vm248, %v2582, %v2584
  %v2589 = vsel %vm248, %v2580, %v2582
  %v2590 = vsel %vm248, %v2586, %v2580
  %v2591 = vmul.f32 %v2590, %v256
  %v2592 = vmul.f32 %v2589, %v260
  %v2593 = vmul.f32 %v2588, %v264
  %v2594 = vmul.f32 %v2587, %v268
  %2595 = vrot.lane.b32.xlu0 %v2543, 1
  %v2596 = vpop.permute.xlu0 %2595
  %2597 = vrot.lane.b32.xlu0 %v2544, 1
  %v2598 = vpop.permute.xlu0 %2597
  %2599 = vrot.lane.b32.xlu0 %v2545, 1
  %v2600 = vpop.permute.xlu0 %2599
  %2601 = vrot.lane.b32.xlu0 %v2546, 1
  %v2602 = vpop.permute.xlu0 %2601
  %v2603 = vsel %vm281, %v2600, %v2602
  %v2604 = vsel %vm281, %v2598, %v2600
  %v2605 = vsel %vm281, %v2596, %v2598
  %v2606 = vsel %vm281, %v2602, %v2596
  %v2607 = vmul.f32 %v2606, %v289
  %v2608 = vmul.f32 %v2605, %v293
  %v2609 = vmul.f32 %v2604, %v297
  %v2610 = vmul.f32 %v2603, %v301
  %2611 = vrot.lane.b32.xlu0 %v2543, 127
  %v2612 = vpop.permute.xlu0 %2611
  %2613 = vrot.lane.b32.xlu0 %v2544, 127
  %v2614 = vpop.permute.xlu0 %2613
  %2615 = vrot.lane.b32.xlu0 %v2545, 127
  %v2616 = vpop.permute.xlu0 %2615
  %2617 = vrot.lane.b32.xlu0 %v2546, 127
  %v2618 = vpop.permute.xlu0 %2617
  %v2619 = vsel %vm314, %v2616, %v2618
  %v2620 = vsel %vm314, %v2614, %v2616
  %v2621 = vsel %vm314, %v2612, %v2614
  %v2622 = vsel %vm314, %v2618, %v2612
  %v2623 = vmul.f32 %v2621, %v322
  %v2624 = vmul.f32 %v2620, %v326
  %v2625 = vmul.f32 %v2619, %v330
  %v2626 = vmul.f32 %v2622, %v334
  %2627 = vrot.lane.b32.xlu0 %v2543, 113
  %v2628 = vpop.permute.xlu0 %2627
  %2629 = vrot.lane.b32.xlu0 %v2544, 113
  %v2630 = vpop.permute.xlu0 %2629
  %2631 = vrot.lane.b32.xlu0 %v2545, 113
  %v2632 = vpop.permute.xlu0 %2631
  %2633 = vrot.lane.b32.xlu0 %v2546, 113
  %v2634 = vpop.permute.xlu0 %2633
  %v2635 = vsel %vm347, %v2632, %v2634
  %v2636 = vsel %vm347, %v2630, %v2632
  %v2637 = vsel %vm347, %v2628, %v2630
  %v2638 = vsel %vm347, %v2634, %v2628
  %v2639 = vmul.f32 %v2637, %v355
  %v2640 = vmul.f32 %v2636, %v359
  %v2641 = vmul.f32 %v2635, %v363
  %v2642 = vmul.f32 %v2638, %v367
  %2643 = vrot.lane.b32.xlu0 %v2543, 112
  %v2644 = vpop.permute.xlu0 %2643
  %2645 = vrot.lane.b32.xlu0 %v2544, 112
  %v2646 = vpop.permute.xlu0 %2645
  %2647 = vrot.lane.b32.xlu0 %v2545, 112
  %v2648 = vpop.permute.xlu0 %2647
  %2649 = vrot.lane.b32.xlu0 %v2546, 112
  %v2650 = vpop.permute.xlu0 %2649
  %v2651 = vsel %vm380, %v2648, %v2650
  %v2652 = vsel %vm380, %v2646, %v2648
  %v2653 = vsel %vm380, %v2644, %v2646
  %v2654 = vsel %vm380, %v2650, %v2644
  %v2655 = vmul.f32 %v2653, %v388
  %v2656 = vmul.f32 %v2652, %v392
  %v2657 = vmul.f32 %v2651, %v396
  %v2658 = vmul.f32 %v2654, %v400
  %2659 = vrot.lane.b32.xlu0 %v2543, 111
  %v2660 = vpop.permute.xlu0 %2659
  %2661 = vrot.lane.b32.xlu0 %v2544, 111
  %v2662 = vpop.permute.xlu0 %2661
  %2663 = vrot.lane.b32.xlu0 %v2545, 111
  %v2664 = vpop.permute.xlu0 %2663
  %2665 = vrot.lane.b32.xlu0 %v2546, 111
  %v2666 = vpop.permute.xlu0 %2665
  %v2667 = vsel %vm413, %v2664, %v2666
  %v2668 = vsel %vm413, %v2662, %v2664
  %v2669 = vsel %vm413, %v2660, %v2662
  %v2670 = vsel %vm413, %v2666, %v2660
  %v2671 = vmul.f32 %v2669, %v421
  %v2672 = vmul.f32 %v2668, %v425
  %v2673 = vmul.f32 %v2667, %v429
  %v2674 = vmul.f32 %v2670, %v433
  %v2675 = vpack.c.bf16 %v2575, %v2559
  %v2676 = vpack.c.bf16 %v2576, %v2560
  %v2677 = vpack.c.bf16 %v2577, %v2561
  %v2678 = vpack.c.bf16 %v2578, %v2562
  %v2679 = vpack.c.bf16 %v2607, %v2591
  %v2680 = vpack.c.bf16 %v2608, %v2592
  %v2681 = vpack.c.bf16 %v2609, %v2593
  %v2682 = vpack.c.bf16 %v2610, %v2594
  %v2683 = vpack.c.bf16 %v2623, %v2543
  %v2684 = vpack.c.bf16 %v2624, %v2544
  %v2685 = vpack.c.bf16 %v2625, %v2545
  %v2686 = vpack.c.bf16 %v2626, %v2546
  %v2687 = vpack.c.bf16 %v2655, %v2639
  %v2688 = vpack.c.bf16 %v2656, %v2640
  %v2689 = vpack.c.bf16 %v2657, %v2641
  %v2690 = vpack.c.bf16 %v2658, %v2642
  %v2691 = vpack.c.bf16 %v2671, %v2671
  %v2692 = vpack.c.bf16 %v2672, %v2672
  %v2693 = vpack.c.bf16 %v2673, %v2673
  %v2694 = vpack.c.bf16 %v2674, %v2674
  %v2695 = vld [vmem:[%s43] sm:$0xf]
  %v2696 = vld [vmem:[%s43 + $0x4] sm:$0xf]
  %v2697 = vld [vmem:[%s43 + $0x8] sm:$0xf]
  %v2698 = vld [vmem:[%s45] sm:$0xff]
  %v2699 = vld [vmem:[%s45 + $0x8] sm:$0xff]
  %v2700 = vld [vmem:[%s45 + $0x10] sm:$0xff]
  %2702 = vset.pattern.permute.xlu0 0
  %2703 = vperm.xlu0 %2702, %v2698
  %v2704 = vpop.permute.xlu0 %2703
  %2707 = vset.pattern.permute.xlu0 0
  %2708 = vperm.xlu0 %2707, %v2699
  %v2709 = vpop.permute.xlu0 %2708
  %2712 = vset.pattern.permute.xlu0 0
  %2713 = vperm.xlu0 %2712, %v2700
  %v2714 = vpop.permute.xlu0 %2713
  %v2719 = vunpack.c.l.b16 %v2695
  %v2720 = vunpack.c.l.b16 %v2696
  %v2721 = vunpack.c.l.b16 %v2697
  %v2722 = vpack.c.b16 %v2720, %v2719
  %v2723 = vpack.c.b16 %v2721, %v2721
  %v2725 = vsel %vm1231, %v2722, 0
  %v2728 = vsel %vm1231, %v2723, 0
  %v2731 = vsel %vm486, %v2691, 0
  %v2734 = vsel %vm486, %v2692, 0
  %v2737 = vsel %vm486, %v2693, 0
  %v2740 = vsel %vm486, %v2694, 0
  %2742 = vmatprep.subr.bf16.mxu0 0
  %2743 = vmatpush1.bf16.msra.mxu0 0
  %2744 = vmatprep.subr.bf16.mxu0 0
  %2745 = vmatpush1.bf16.msra.mxu0 0
  %2746 = vmatprep.subr.bf16.mxu0 0
  %2747 = vmatpush1.bf16.msra.mxu0 0
  %2748 = vmatprep.subr.bf16.mxu0 %v2734
  %2749 = vmatpush1.bf16.msra.mxu0 %v2731
  %2750 = vmatprep.subr.bf16.mxu0 %v2688
  %2751 = vmatpush1.bf16.msra.mxu0 %v2687
  %2752 = vmatprep.subr.bf16.mxu0 %v2684
  %2753 = vmatpush1.bf16.msra.mxu0 %v2683
  %2754 = vmatprep.subr.bf16.mxu0 %v2680
  %2755 = vmatpush1.bf16.msra.mxu0 %v2679
  %2756 = vmatprep.subr.bf16.mxu0 %v2676
  %2757 = vmatpush1.bf16.msra.mxu0 %v2675
  %2758 = vmatprep.subr.bf16.mxu0 0
  %2759 = vmatpush2.bf16.msra.mxu0 0
  %2760 = vmatprep.subr.bf16.mxu0 0
  %2761 = vmatpush2.bf16.msra.mxu0 0
  %2762 = vmatprep.subr.bf16.mxu0 0
  %2763 = vmatpush2.bf16.msra.mxu0 0
  %2764 = vmatprep.subr.bf16.mxu0 0
  %2765 = vmatpush2.bf16.msra.mxu0 0
  %2766 = vmatprep.subr.bf16.mxu0 0
  %2767 = vmatpush2.bf16.msra.mxu0 0
  %2768 = vmatprep.subr.bf16.mxu0 0
  %2769 = vmatpush2.bf16.msra.mxu0 0
  %2770 = vmatprep.subr.bf16.mxu0 0
  %2771 = vmatpush2.bf16.msra.mxu0 0
  %2772 = vmatprep.subr.bf16.mxu0 0
  %2773 = vmatpush2.bf16.msra.mxu0 0
  %2774 = vmatprep.mubr.bf16.mxu0 0
  %2775 = vmatmul.mubr.bf16.gmra.mxu0 %v2725
  %v2776 = vpop.f32.mrf.mxu0
  %v2777 = vadd.f32 %v2704, %v2776
  %v2778 = vpop.f32.mrf.mxu0
  %v2779 = vadd.f32 %v2704, %v2778
  %v2780 = vpop.f32.mrf.mxu0
  %v2781 = vadd.f32 %v2709, %v2780
  %v2782 = vpop.f32.mrf.mxu0
  %v2783 = vadd.f32 %v2709, %v2782
  %2784 = vmatprep.mubr.bf16.mxu0 0
  %2785 = vmatmul.mubr.bf16.gmra.mxu0 %v2728
  %v2786 = vpop.f32.mrf.mxu0
  %v2787 = vadd.f32 %v2714, %v2786
  %v2788 = vpop.f32.mrf.mxu0
  %v2789 = vadd.f32 %v2714, %v2788
  %v2790 = vpop.f32.mrf.mxu0
  %v2791 = vpop.f32.mrf.mxu0
  %2792 = vdwg.mxu0
  %2793 = vmatprep.subr.bf16.mxu0 0
  %2794 = vmatpush1.bf16.msra.mxu0 0
  %2795 = vmatprep.subr.bf16.mxu0 0
  %2796 = vmatpush1.bf16.msra.mxu0 0
  %2797 = vmatprep.subr.bf16.mxu0 0
  %2798 = vmatpush1.bf16.msra.mxu0 0
  %2799 = vmatprep.subr.bf16.mxu0 %v2740
  %2800 = vmatpush1.bf16.msra.mxu0 %v2737
  %2801 = vmatprep.subr.bf16.mxu0 %v2690
  %2802 = vmatpush1.bf16.msra.mxu0 %v2689
  %2803 = vmatprep.subr.bf16.mxu0 %v2686
  %2804 = vmatpush1.bf16.msra.mxu0 %v2685
  %2805 = vmatprep.subr.bf16.mxu0 %v2682
  %2806 = vmatpush1.bf16.msra.mxu0 %v2681
  %2807 = vmatprep.subr.bf16.mxu0 %v2678
  %2808 = vmatpush1.bf16.msra.mxu0 %v2677
  %2809 = vmatprep.subr.bf16.mxu0 0
  %2810 = vmatpush2.bf16.msra.mxu0 0
  %2811 = vmatprep.subr.bf16.mxu0 0
  %2812 = vmatpush2.bf16.msra.mxu0 0
  %2813 = vmatprep.subr.bf16.mxu0 0
  %2814 = vmatpush2.bf16.msra.mxu0 0
  %2815 = vmatprep.subr.bf16.mxu0 0
  %2816 = vmatpush2.bf16.msra.mxu0 0
  %2817 = vmatprep.subr.bf16.mxu0 0
  %2818 = vmatpush2.bf16.msra.mxu0 0
  %2819 = vmatprep.subr.bf16.mxu0 0
  %2820 = vmatpush2.bf16.msra.mxu0 0
  %2821 = vmatprep.subr.bf16.mxu0 0
  %2822 = vmatpush2.bf16.msra.mxu0 0
  %2823 = vmatprep.subr.bf16.mxu0 0
  %2824 = vmatpush2.bf16.msra.mxu0 0
  %2825 = vmatprep.mubr.bf16.mxu0 0
  %2826 = vmatmul.mubr.bf16.gmra.mxu0 %v2725
  %v2827 = vpop.f32.mrf.mxu0
  %v2828 = vadd.f32 %v2704, %v2827
  %v2829 = vpop.f32.mrf.mxu0
  %v2830 = vadd.f32 %v2704, %v2829
  %v2831 = vpop.f32.mrf.mxu0
  %v2832 = vadd.f32 %v2709, %v2831
  %v2833 = vpop.f32.mrf.mxu0
  %v2834 = vadd.f32 %v2709, %v2833
  %2835 = vmatprep.mubr.bf16.mxu0 0
  %2836 = vmatmul.mubr.bf16.gmra.mxu0 %v2728
  %v2837 = vpop.f32.mrf.mxu0
  %v2838 = vadd.f32 %v2714, %v2837
  %v2839 = vpop.f32.mrf.mxu0
  %v2840 = vadd.f32 %v2714, %v2839
  %v2841 = vpop.f32.mrf.mxu0
  %v2842 = vpop.f32.mrf.mxu0
  %2843 = vdwg.mxu0
  %v2844 = vadd.f32 %v2777, %v2779
  %v2845 = vadd.f32 %v2844, %v2781
  %v2846 = vadd.f32 %v2845, %v2783
  %v2847 = vadd.f32 %v2846, %v2787
  %v2848 = vadd.f32 %v2847, %v2789
  %2849 = vadd.xlane.f32.xlu0 %v2848
  %v2850 = vpop.xlane.xlu0 %2849
  %v2851 = vrot.slane %v2850, 4
  %v2852 = vadd.f32 %v2850, %v2851
  %v2853 = vrot.slane %v2852, 2
  %v2854 = vadd.f32 %v2852, %v2853
  %v2855 = vrot.slane %v2854, 1
  %v2856 = vadd.f32 %v2854, %v2855
  %s2857 = vtos %v2856
  %v2858 = vmul.f32 %v2777, %v2777
  %v2859 = vmul.f32 %v2779, %v2779
  %v2860 = vmul.f32 %v2781, %v2781
  %v2861 = vmul.f32 %v2783, %v2783
  %v2862 = vmul.f32 %v2787, %v2787
  %v2863 = vmul.f32 %v2789, %v2789
  %v2864 = vadd.f32 %v2858, %v2859
  %v2865 = vadd.f32 %v2864, %v2860
  %v2866 = vadd.f32 %v2865, %v2861
  %v2867 = vadd.f32 %v2866, %v2862
  %v2868 = vadd.f32 %v2867, %v2863
  %2869 = vadd.xlane.f32.xlu0 %v2868
  %v2870 = vpop.xlane.xlu0 %2869
  %v2871 = vrot.slane %v2870, 4
  %v2872 = vadd.f32 %v2870, %v2871
  %v2873 = vrot.slane %v2872, 2
  %v2874 = vadd.f32 %v2872, %v2873
  %v2875 = vrot.slane %v2874, 1
  %v2876 = vadd.f32 %v2874, %v2875
  %s2877 = vtos %v2876
  %s2878 = smul.f32 %s2857, 0.00016276042
  %s2879 = smul.f32 %s2877, 0.00016276042
  %s2880 = smul.f32 %s2878, %s2878
  %s2881 = ssub.f32 %s2879, %s2880
  %s2882 = sadd.f32 %s2881, 1e-05
  %v2883 = vstv %s2882
  %v2884 = vrsqrt.pop %v2883
  %s2885 = vtos %v2884
  %v2886 = vstv %s2878
  %v2887 = vsub.f32 %v2777, %v2886
  %v2888 = vsub.f32 %v2779, %v2886
  %v2889 = vsub.f32 %v2781, %v2886
  %v2890 = vsub.f32 %v2783, %v2886
  %v2891 = vsub.f32 %v2787, %v2886
  %v2892 = vsub.f32 %v2789, %v2886
  %v2893 = vstv %s2885
  %v2894 = vmul.f32 %v2887, %v2893
  %v2895 = vmul.f32 %v2888, %v2893
  %v2896 = vmul.f32 %v2889, %v2893
  %v2897 = vmul.f32 %v2890, %v2893
  %v2898 = vmul.f32 %v2891, %v2893
  %v2899 = vmul.f32 %v2892, %v2893
  %v2900 = vadd.f32 %v2828, %v2830
  %v2901 = vadd.f32 %v2900, %v2832
  %v2902 = vadd.f32 %v2901, %v2834
  %v2903 = vadd.f32 %v2902, %v2838
  %v2904 = vadd.f32 %v2903, %v2840
  %2905 = vadd.xlane.f32.xlu0 %v2904
  %v2906 = vpop.xlane.xlu0 %2905
  %v2907 = vrot.slane %v2906, 4
  %v2908 = vadd.f32 %v2906, %v2907
  %v2909 = vrot.slane %v2908, 2
  %v2910 = vadd.f32 %v2908, %v2909
  %v2911 = vrot.slane %v2910, 1
  %v2912 = vadd.f32 %v2910, %v2911
  %s2913 = vtos %v2912
  %v2914 = vmul.f32 %v2828, %v2828
  %v2915 = vmul.f32 %v2830, %v2830
  %v2916 = vmul.f32 %v2832, %v2832
  %v2917 = vmul.f32 %v2834, %v2834
  %v2918 = vmul.f32 %v2838, %v2838
  %v2919 = vmul.f32 %v2840, %v2840
  %v2920 = vadd.f32 %v2914, %v2915
  %v2921 = vadd.f32 %v2920, %v2916
  %v2922 = vadd.f32 %v2921, %v2917
  %v2923 = vadd.f32 %v2922, %v2918
  %v2924 = vadd.f32 %v2923, %v2919
  %2925 = vadd.xlane.f32.xlu0 %v2924
  %v2926 = vpop.xlane.xlu0 %2925
  %v2927 = vrot.slane %v2926, 4
  %v2928 = vadd.f32 %v2926, %v2927
  %v2929 = vrot.slane %v2928, 2
  %v2930 = vadd.f32 %v2928, %v2929
  %v2931 = vrot.slane %v2930, 1
  %v2932 = vadd.f32 %v2930, %v2931
  %s2933 = vtos %v2932
  %s2934 = smul.f32 %s2913, 0.00016276042
  %s2935 = smul.f32 %s2933, 0.00016276042
  %s2936 = smul.f32 %s2934, %s2934
  %s2937 = ssub.f32 %s2935, %s2936
  %s2938 = sadd.f32 %s2937, 1e-05
  %v2939 = vstv %s2938
  %v2940 = vrsqrt.pop %v2939
  %s2941 = vtos %v2940
  %v2942 = vstv %s2934
  %v2943 = vsub.f32 %v2828, %v2942
  %v2944 = vsub.f32 %v2830, %v2942
  %v2945 = vsub.f32 %v2832, %v2942
  %v2946 = vsub.f32 %v2834, %v2942
  %v2947 = vsub.f32 %v2838, %v2942
  %v2948 = vsub.f32 %v2840, %v2942
  %v2949 = vstv %s2941
  %v2950 = vmul.f32 %v2943, %v2949
  %v2951 = vmul.f32 %v2944, %v2949
  %v2952 = vmul.f32 %v2945, %v2949
  %v2953 = vmul.f32 %v2946, %v2949
  %v2954 = vmul.f32 %v2947, %v2949
  %v2955 = vmul.f32 %v2948, %v2949
  %v2956 = vld [vmem:[%s47] sm:$0xff]
  %v2957 = vld [vmem:[%s47 + $0x8] sm:$0xff]
  %v2958 = vld [vmem:[%s47 + $0x10] sm:$0xff]
  %v2959 = vld [vmem:[%s47 + $0x18] sm:$0xff]
  %v2960 = vld [vmem:[%s47 + $0x20] sm:$0xff]
  %v2961 = vld [vmem:[%s47 + $0x28] sm:$0xff]
  %v2962 = vld [vmem:[%s47 + $0x30] sm:$0xff]
  %v2963 = vld [vmem:[%s47 + $0x38] sm:$0xff]
  %v2964 = vld [vmem:[%s47 + $0x40] sm:$0xff]
  %v2965 = vld [vmem:[%s47 + $0x48] sm:$0xff]
  %v2966 = vld [vmem:[%s47 + $0x50] sm:$0xff]
  %v2967 = vld [vmem:[%s47 + $0x58] sm:$0xff]
  %v2968 = vmul.f32 %v2894, %v2956
  %v2969 = vmul.f32 %v2895, %v2957
  %v2970 = vmul.f32 %v2950, %v2958
  %v2971 = vmul.f32 %v2951, %v2959
  %v2972 = vmul.f32 %v2896, %v2960
  %v2973 = vmul.f32 %v2897, %v2961
  %v2974 = vmul.f32 %v2952, %v2962
  %v2975 = vmul.f32 %v2953, %v2963
  %v2976 = vmul.f32 %v2898, %v2964
  %v2977 = vmul.f32 %v2899, %v2965
  %v2978 = vmul.f32 %v2954, %v2966
  %v2979 = vmul.f32 %v2955, %v2967
  %v2980 = vld [vmem:[%s49] sm:$0xff]
  %v2981 = vld [vmem:[%s49 + $0x8] sm:$0xff]
  %v2982 = vld [vmem:[%s49 + $0x10] sm:$0xff]
  %v2983 = vld [vmem:[%s49 + $0x18] sm:$0xff]
  %v2984 = vld [vmem:[%s49 + $0x20] sm:$0xff]
  %v2985 = vld [vmem:[%s49 + $0x28] sm:$0xff]
  %v2986 = vld [vmem:[%s49 + $0x30] sm:$0xff]
  %v2987 = vld [vmem:[%s49 + $0x38] sm:$0xff]
  %v2988 = vld [vmem:[%s49 + $0x40] sm:$0xff]
  %v2989 = vld [vmem:[%s49 + $0x48] sm:$0xff]
  %v2990 = vld [vmem:[%s49 + $0x50] sm:$0xff]
  %v2991 = vld [vmem:[%s49 + $0x58] sm:$0xff]
  %v2992 = vadd.f32 %v2968, %v2980
  %v2993 = vadd.f32 %v2969, %v2981
  %v2994 = vadd.f32 %v2970, %v2982
  %v2995 = vadd.f32 %v2971, %v2983
  %v2996 = vadd.f32 %v2972, %v2984
  %v2997 = vadd.f32 %v2973, %v2985
  %v2998 = vadd.f32 %v2974, %v2986
  %v2999 = vadd.f32 %v2975, %v2987
  %v3000 = vadd.f32 %v2976, %v2988
  %v3001 = vadd.f32 %v2977, %v2989
  %v3002 = vadd.f32 %v2978, %v2990
  %v3003 = vadd.f32 %v2979, %v2991
  %v3004 = vadd.f32 %v1038, %v2002
  %v3005 = vadd.f32 %v1039, %v2003
  %v3006 = vadd.f32 %v1040, %v2004
  %v3007 = vadd.f32 %v1041, %v2005
  %v3008 = vadd.f32 %v3004, %v2992
  %v3009 = vadd.f32 %v3005, %v2993
  %v3010 = vadd.f32 %v3006, %v2994
  %v3011 = vadd.f32 %v3007, %v2995
  %v3012 = vmul.f32 %v3008, 0.5
  %v3013 = vmul.f32 %v3009, 0.5
  %v3014 = vmul.f32 %v3010, 0.5
  %v3015 = vmul.f32 %v3011, 0.5
  %v3016 = vtanh.pop %v3012
  %v3017 = vtanh.pop %v3013
  %v3018 = vtanh.pop %v3014
  %v3019 = vtanh.pop %v3015
  %v3020 = vmul.f32 %v3016, 0.5
  %v3021 = vmul.f32 %v3017, 0.5
  %v3022 = vmul.f32 %v3018, 0.5
  %v3023 = vmul.f32 %v3019, 0.5
  %v3024 = vadd.f32 %v3020, 0.5
  %v3025 = vadd.f32 %v3021, 0.5
  %v3026 = vadd.f32 %v3022, 0.5
  %v3027 = vadd.f32 %v3023, 0.5
  %v3028 = vadd.f32 %v1042, %v2006
  %v3029 = vadd.f32 %v1043, %v2007
  %v3030 = vadd.f32 %v1044, %v2008
  %v3031 = vadd.f32 %v1045, %v2009
  %v3032 = vadd.f32 %v3028, %v2996
  %v3033 = vadd.f32 %v3029, %v2997
  %v3034 = vadd.f32 %v3030, %v2998
  %v3035 = vadd.f32 %v3031, %v2999
  %v3036 = vmul.f32 %v3032, 0.5
  %v3037 = vmul.f32 %v3033, 0.5
  %v3038 = vmul.f32 %v3034, 0.5
  %v3039 = vmul.f32 %v3035, 0.5
  %v3040 = vtanh.pop %v3036
  %v3041 = vtanh.pop %v3037
  %v3042 = vtanh.pop %v3038
  %v3043 = vtanh.pop %v3039
  %v3044 = vmul.f32 %v3040, 0.5
  %v3045 = vmul.f32 %v3041, 0.5
  %v3046 = vmul.f32 %v3042, 0.5
  %v3047 = vmul.f32 %v3043, 0.5
  %v3048 = vadd.f32 %v3044, 0.5
  %v3049 = vadd.f32 %v3045, 0.5
  %v3050 = vadd.f32 %v3046, 0.5
  %v3051 = vadd.f32 %v3047, 0.5
  %v3052 = vadd.f32 %v1046, %v2010
  %v3053 = vadd.f32 %v1047, %v2011
  %v3054 = vadd.f32 %v1048, %v2012
  %v3055 = vadd.f32 %v1049, %v2013
  %v3056 = vadd.f32 %v3052, %v3000
  %v3057 = vadd.f32 %v3053, %v3001
  %v3058 = vadd.f32 %v3054, %v3002
  %v3059 = vadd.f32 %v3055, %v3003
  %v3060 = vtanh.pop %v3056
  %v3061 = vtanh.pop %v3057
  %v3062 = vtanh.pop %v3058
  %v3063 = vtanh.pop %v3059
  %v3064 = vtanh.pop %v2014
  %v3065 = vtanh.pop %v2015
  %v3066 = vtanh.pop %v2016
  %v3067 = vtanh.pop %v2017
  %v3068 = vmul.f32 %v3048, %v3064
  %v3069 = vmul.f32 %v3049, %v3065
  %v3070 = vmul.f32 %v3050, %v3066
  %v3071 = vmul.f32 %v3051, %v3067
  %v3072 = vmul.f32 %v3024, %v3060
  %v3073 = vmul.f32 %v3025, %v3061
  %v3074 = vmul.f32 %v3026, %v3062
  %v3075 = vmul.f32 %v3027, %v3063
  %v3076 = vadd.f32 %v3068, %v3072
  %v3077 = vadd.f32 %v3069, %v3073
  %v3078 = vadd.f32 %v3070, %v3074
  %v3079 = vadd.f32 %v3071, %v3075
  %3080 = vrot.lane.b32.xlu0 %v3076, 17
  %v3081 = vpop.permute.xlu0 %3080
  %3082 = vrot.lane.b32.xlu0 %v3077, 17
  %v3083 = vpop.permute.xlu0 %3082
  %3084 = vrot.lane.b32.xlu0 %v3078, 17
  %v3085 = vpop.permute.xlu0 %3084
  %3086 = vrot.lane.b32.xlu0 %v3079, 17
  %v3087 = vpop.permute.xlu0 %3086
  %v3088 = vsel %vm182, %v3085, %v3087
  %v3089 = vsel %vm182, %v3083, %v3085
  %v3090 = vsel %vm182, %v3081, %v3083
  %v3091 = vsel %vm182, %v3087, %v3081
  %v3092 = vmul.f32 %v3091, %v190
  %v3093 = vmul.f32 %v3090, %v194
  %v3094 = vmul.f32 %v3089, %v198
  %v3095 = vmul.f32 %v3088, %v202
  %3096 = vrot.lane.b32.xlu0 %v3076, 16
  %v3097 = vpop.permute.xlu0 %3096
  %3098 = vrot.lane.b32.xlu0 %v3077, 16
  %v3099 = vpop.permute.xlu0 %3098
  %3100 = vrot.lane.b32.xlu0 %v3078, 16
  %v3101 = vpop.permute.xlu0 %3100
  %3102 = vrot.lane.b32.xlu0 %v3079, 16
  %v3103 = vpop.permute.xlu0 %3102
  %v3104 = vsel %vm215, %v3101, %v3103
  %v3105 = vsel %vm215, %v3099, %v3101
  %v3106 = vsel %vm215, %v3097, %v3099
  %v3107 = vsel %vm215, %v3103, %v3097
  %v3108 = vmul.f32 %v3107, %v223
  %v3109 = vmul.f32 %v3106, %v227
  %v3110 = vmul.f32 %v3105, %v231
  %v3111 = vmul.f32 %v3104, %v235
  %3112 = vrot.lane.b32.xlu0 %v3076, 15
  %v3113 = vpop.permute.xlu0 %3112
  %3114 = vrot.lane.b32.xlu0 %v3077, 15
  %v3115 = vpop.permute.xlu0 %3114
  %3116 = vrot.lane.b32.xlu0 %v3078, 15
  %v3117 = vpop.permute.xlu0 %3116
  %3118 = vrot.lane.b32.xlu0 %v3079, 15
  %v3119 = vpop.permute.xlu0 %3118
  %v3120 = vsel %vm248, %v3117, %v3119
  %v3121 = vsel %vm248, %v3115, %v3117
  %v3122 = vsel %vm248, %v3113, %v3115
  %v3123 = vsel %vm248, %v3119, %v3113
  %v3124 = vmul.f32 %v3123, %v256
  %v3125 = vmul.f32 %v3122, %v260
  %v3126 = vmul.f32 %v3121, %v264
  %v3127 = vmul.f32 %v3120, %v268
  %3128 = vrot.lane.b32.xlu0 %v3076, 1
  %v3129 = vpop.permute.xlu0 %3128
  %3130 = vrot.lane.b32.xlu0 %v3077, 1
  %v3131 = vpop.permute.xlu0 %3130
  %3132 = vrot.lane.b32.xlu0 %v3078, 1
  %v3133 = vpop.permute.xlu0 %3132
  %3134 = vrot.lane.b32.xlu0 %v3079, 1
  %v3135 = vpop.permute.xlu0 %3134
  %v3136 = vsel %vm281, %v3133, %v3135
  %v3137 = vsel %vm281, %v3131, %v3133
  %v3138 = vsel %vm281, %v3129, %v3131
  %v3139 = vsel %vm281, %v3135, %v3129
  %v3140 = vmul.f32 %v3139, %v289
  %v3141 = vmul.f32 %v3138, %v293
  %v3142 = vmul.f32 %v3137, %v297
  %v3143 = vmul.f32 %v3136, %v301
  %3144 = vrot.lane.b32.xlu0 %v3076, 127
  %v3145 = vpop.permute.xlu0 %3144
  %3146 = vrot.lane.b32.xlu0 %v3077, 127
  %v3147 = vpop.permute.xlu0 %3146
  %3148 = vrot.lane.b32.xlu0 %v3078, 127
  %v3149 = vpop.permute.xlu0 %3148
  %3150 = vrot.lane.b32.xlu0 %v3079, 127
  %v3151 = vpop.permute.xlu0 %3150
  %v3152 = vsel %vm314, %v3149, %v3151
  %v3153 = vsel %vm314, %v3147, %v3149
  %v3154 = vsel %vm314, %v3145, %v3147
  %v3155 = vsel %vm314, %v3151, %v3145
  %v3156 = vmul.f32 %v3154, %v322
  %v3157 = vmul.f32 %v3153, %v326
  %v3158 = vmul.f32 %v3152, %v330
  %v3159 = vmul.f32 %v3155, %v334
  %3160 = vrot.lane.b32.xlu0 %v3076, 113
  %v3161 = vpop.permute.xlu0 %3160
  %3162 = vrot.lane.b32.xlu0 %v3077, 113
  %v3163 = vpop.permute.xlu0 %3162
  %3164 = vrot.lane.b32.xlu0 %v3078, 113
  %v3165 = vpop.permute.xlu0 %3164
  %3166 = vrot.lane.b32.xlu0 %v3079, 113
  %v3167 = vpop.permute.xlu0 %3166
  %v3168 = vsel %vm347, %v3165, %v3167
  %v3169 = vsel %vm347, %v3163, %v3165
  %v3170 = vsel %vm347, %v3161, %v3163
  %v3171 = vsel %vm347, %v3167, %v3161
  %v3172 = vmul.f32 %v3170, %v355
  %v3173 = vmul.f32 %v3169, %v359
  %v3174 = vmul.f32 %v3168, %v363
  %v3175 = vmul.f32 %v3171, %v367
  %3176 = vrot.lane.b32.xlu0 %v3076, 112
  %v3177 = vpop.permute.xlu0 %3176
  %3178 = vrot.lane.b32.xlu0 %v3077, 112
  %v3179 = vpop.permute.xlu0 %3178
  %3180 = vrot.lane.b32.xlu0 %v3078, 112
  %v3181 = vpop.permute.xlu0 %3180
  %3182 = vrot.lane.b32.xlu0 %v3079, 112
  %v3183 = vpop.permute.xlu0 %3182
  %v3184 = vsel %vm380, %v3181, %v3183
  %v3185 = vsel %vm380, %v3179, %v3181
  %v3186 = vsel %vm380, %v3177, %v3179
  %v3187 = vsel %vm380, %v3183, %v3177
  %v3188 = vmul.f32 %v3186, %v388
  %v3189 = vmul.f32 %v3185, %v392
  %v3190 = vmul.f32 %v3184, %v396
  %v3191 = vmul.f32 %v3187, %v400
  %3192 = vrot.lane.b32.xlu0 %v3076, 111
  %v3193 = vpop.permute.xlu0 %3192
  %3194 = vrot.lane.b32.xlu0 %v3077, 111
  %v3195 = vpop.permute.xlu0 %3194
  %3196 = vrot.lane.b32.xlu0 %v3078, 111
  %v3197 = vpop.permute.xlu0 %3196
  %3198 = vrot.lane.b32.xlu0 %v3079, 111
  %v3199 = vpop.permute.xlu0 %3198
  %v3200 = vsel %vm413, %v3197, %v3199
  %v3201 = vsel %vm413, %v3195, %v3197
  %v3202 = vsel %vm413, %v3193, %v3195
  %v3203 = vsel %vm413, %v3199, %v3193
  %v3204 = vmul.f32 %v3202, %v421
  %v3205 = vmul.f32 %v3201, %v425
  %v3206 = vmul.f32 %v3200, %v429
  %v3207 = vmul.f32 %v3203, %v433
  %v3208 = vpack.c.bf16 %v3108, %v3092
  %v3209 = vpack.c.bf16 %v3109, %v3093
  %v3210 = vpack.c.bf16 %v3110, %v3094
  %v3211 = vpack.c.bf16 %v3111, %v3095
  %v3212 = vpack.c.bf16 %v3140, %v3124
  %v3213 = vpack.c.bf16 %v3141, %v3125
  %v3214 = vpack.c.bf16 %v3142, %v3126
  %v3215 = vpack.c.bf16 %v3143, %v3127
  %v3216 = vpack.c.bf16 %v3156, %v3076
  %v3217 = vpack.c.bf16 %v3157, %v3077
  %v3218 = vpack.c.bf16 %v3158, %v3078
  %v3219 = vpack.c.bf16 %v3159, %v3079
  %v3220 = vpack.c.bf16 %v3188, %v3172
  %v3221 = vpack.c.bf16 %v3189, %v3173
  %v3222 = vpack.c.bf16 %v3190, %v3174
  %v3223 = vpack.c.bf16 %v3191, %v3175
  %v3224 = vpack.c.bf16 %v3204, %v3204
  %v3225 = vpack.c.bf16 %v3205, %v3205
  %v3226 = vpack.c.bf16 %v3206, %v3206
  %v3227 = vpack.c.bf16 %v3207, %v3207
  %v3228 = vld [vmem:[%s51] sm:$0xf]
  %v3229 = vld [vmem:[%s53] sm:$0xf]
  %v3231 = vsel %vm1231, %v3229, 0
  %v3234 = vsel %vm486, %v3224, 0
  %v3237 = vsel %vm486, %v3225, 0
  %v3240 = vsel %vm486, %v3226, 0
  %v3243 = vsel %vm486, %v3227, 0
  %3245 = vmatprep.subr.bf16.mxu0 0
  %3246 = vmatpush1.bf16.msra.mxu0 0
  %3247 = vmatprep.subr.bf16.mxu0 0
  %3248 = vmatpush1.bf16.msra.mxu0 0
  %3249 = vmatprep.subr.bf16.mxu0 0
  %3250 = vmatpush1.bf16.msra.mxu0 0
  %3251 = vmatprep.subr.bf16.mxu0 %v3237
  %3252 = vmatpush1.bf16.msra.mxu0 %v3234
  %3253 = vmatprep.subr.bf16.mxu0 %v3221
  %3254 = vmatpush1.bf16.msra.mxu0 %v3220
  %3255 = vmatprep.subr.bf16.mxu0 %v3217
  %3256 = vmatpush1.bf16.msra.mxu0 %v3216
  %3257 = vmatprep.subr.bf16.mxu0 %v3213
  %3258 = vmatpush1.bf16.msra.mxu0 %v3212
  %3259 = vmatprep.subr.bf16.mxu0 %v3209
  %3260 = vmatpush1.bf16.msra.mxu0 %v3208
  %3261 = vmatprep.subr.bf16.mxu0 0
  %3262 = vmatpush2.bf16.msra.mxu0 0
  %3263 = vmatprep.subr.bf16.mxu0 0
  %3264 = vmatpush2.bf16.msra.mxu0 0
  %3265 = vmatprep.subr.bf16.mxu0 0
  %3266 = vmatpush2.bf16.msra.mxu0 0
  %3267 = vmatprep.subr.bf16.mxu0 0
  %3268 = vmatpush2.bf16.msra.mxu0 0
  %3269 = vmatprep.subr.bf16.mxu0 0
  %3270 = vmatpush2.bf16.msra.mxu0 0
  %3271 = vmatprep.subr.bf16.mxu0 0
  %3272 = vmatpush2.bf16.msra.mxu0 0
  %3273 = vmatprep.subr.bf16.mxu0 0
  %3274 = vmatpush2.bf16.msra.mxu0 0
  %3275 = vmatprep.subr.bf16.mxu0 0
  %3276 = vmatpush2.bf16.msra.mxu0 0
  %3277 = vmatprep.mubr.bf16.mxu0 0
  %3278 = vmatmul.mubr.bf16.gmra.mxu0 %v3231
  %v3279 = vpop.f32.mrf.mxu0
  %v3280 = vadd.f32 0.0, %v3279
  %v3281 = vpop.f32.mrf.mxu0
  %v3282 = vadd.f32 0.0, %v3281
  %v3283 = vpop.f32.mrf.mxu0
  %v3284 = vpop.f32.mrf.mxu0
  %3285 = vdwg.mxu0
  %3286 = vmatprep.subr.bf16.mxu0 0
  %3287 = vmatpush1.bf16.msra.mxu0 0
  %3288 = vmatprep.subr.bf16.mxu0 0
  %3289 = vmatpush1.bf16.msra.mxu0 0
  %3290 = vmatprep.subr.bf16.mxu0 0
  %3291 = vmatpush1.bf16.msra.mxu0 0
  %3292 = vmatprep.subr.bf16.mxu0 %v3243
  %3293 = vmatpush1.bf16.msra.mxu0 %v3240
  %3294 = vmatprep.subr.bf16.mxu0 %v3223
  %3295 = vmatpush1.bf16.msra.mxu0 %v3222
  %3296 = vmatprep.subr.bf16.mxu0 %v3219
  %3297 = vmatpush1.bf16.msra.mxu0 %v3218
  %3298 = vmatprep.subr.bf16.mxu0 %v3215
  %3299 = vmatpush1.bf16.msra.mxu0 %v3214
  %3300 = vmatprep.subr.bf16.mxu0 %v3211
  %3301 = vmatpush1.bf16.msra.mxu0 %v3210
  %3302 = vmatprep.subr.bf16.mxu0 0
  %3303 = vmatpush2.bf16.msra.mxu0 0
  %3304 = vmatprep.subr.bf16.mxu0 0
  %3305 = vmatpush2.bf16.msra.mxu0 0
  %3306 = vmatprep.subr.bf16.mxu0 0
  %3307 = vmatpush2.bf16.msra.mxu0 0
  %3308 = vmatprep.subr.bf16.mxu0 0
  %3309 = vmatpush2.bf16.msra.mxu0 0
  %3310 = vmatprep.subr.bf16.mxu0 0
  %3311 = vmatpush2.bf16.msra.mxu0 0
  %3312 = vmatprep.subr.bf16.mxu0 0
  %3313 = vmatpush2.bf16.msra.mxu0 0
  %3314 = vmatprep.subr.bf16.mxu0 0
  %3315 = vmatpush2.bf16.msra.mxu0 0
  %3316 = vmatprep.subr.bf16.mxu0 0
  %3317 = vmatpush2.bf16.msra.mxu0 0
  %3318 = vmatprep.mubr.bf16.mxu0 0
  %3319 = vmatmul.mubr.bf16.gmra.mxu0 %v3231
  %v3320 = vpop.f32.mrf.mxu0
  %v3321 = vadd.f32 0.0, %v3320
  %v3322 = vpop.f32.mrf.mxu0
  %v3323 = vadd.f32 0.0, %v3322
  %v3324 = vpop.f32.mrf.mxu0
  %v3325 = vpop.f32.mrf.mxu0
  %3326 = vdwg.mxu0
  %v3328 = vsel %vm1231, %v3228, 0
  %3330 = vmatprep.subr.bf16.mxu0 0
  %3331 = vmatpush1.bf16.msra.mxu0 0
  %3332 = vmatprep.subr.bf16.mxu0 0
  %3333 = vmatpush1.bf16.msra.mxu0 0
  %3334 = vmatprep.subr.bf16.mxu0 0
  %3335 = vmatpush1.bf16.msra.mxu0 0
  %3336 = vmatprep.subr.bf16.mxu0 %v2734
  %3337 = vmatpush1.bf16.msra.mxu0 %v2731
  %3338 = vmatprep.subr.bf16.mxu0 %v2688
  %3339 = vmatpush1.bf16.msra.mxu0 %v2687
  %3340 = vmatprep.subr.bf16.mxu0 %v2684
  %3341 = vmatpush1.bf16.msra.mxu0 %v2683
  %3342 = vmatprep.subr.bf16.mxu0 %v2680
  %3343 = vmatpush1.bf16.msra.mxu0 %v2679
  %3344 = vmatprep.subr.bf16.mxu0 %v2676
  %3345 = vmatpush1.bf16.msra.mxu0 %v2675
  %3346 = vmatprep.subr.bf16.mxu0 0
  %3347 = vmatpush2.bf16.msra.mxu0 0
  %3348 = vmatprep.subr.bf16.mxu0 0
  %3349 = vmatpush2.bf16.msra.mxu0 0
  %3350 = vmatprep.subr.bf16.mxu0 0
  %3351 = vmatpush2.bf16.msra.mxu0 0
  %3352 = vmatprep.subr.bf16.mxu0 0
  %3353 = vmatpush2.bf16.msra.mxu0 0
  %3354 = vmatprep.subr.bf16.mxu0 0
  %3355 = vmatpush2.bf16.msra.mxu0 0
  %3356 = vmatprep.subr.bf16.mxu0 0
  %3357 = vmatpush2.bf16.msra.mxu0 0
  %3358 = vmatprep.subr.bf16.mxu0 0
  %3359 = vmatpush2.bf16.msra.mxu0 0
  %3360 = vmatprep.subr.bf16.mxu0 0
  %3361 = vmatpush2.bf16.msra.mxu0 0
  %3362 = vmatprep.mubr.bf16.mxu0 0
  %3363 = vmatmul.mubr.bf16.gmra.mxu0 %v3328
  %v3364 = vpop.f32.mrf.mxu0
  %v3365 = vadd.f32 %v3280, %v3364
  %v3366 = vpop.f32.mrf.mxu0
  %v3367 = vadd.f32 %v3282, %v3366
  %v3368 = vpop.f32.mrf.mxu0
  %v3369 = vpop.f32.mrf.mxu0
  %3370 = vdwg.mxu0
  %3371 = vmatprep.subr.bf16.mxu0 0
  %3372 = vmatpush1.bf16.msra.mxu0 0
  %3373 = vmatprep.subr.bf16.mxu0 0
  %3374 = vmatpush1.bf16.msra.mxu0 0
  %3375 = vmatprep.subr.bf16.mxu0 0
  %3376 = vmatpush1.bf16.msra.mxu0 0
  %3377 = vmatprep.subr.bf16.mxu0 %v2740
  %3378 = vmatpush1.bf16.msra.mxu0 %v2737
  %3379 = vmatprep.subr.bf16.mxu0 %v2690
  %3380 = vmatpush1.bf16.msra.mxu0 %v2689
  %3381 = vmatprep.subr.bf16.mxu0 %v2686
  %3382 = vmatpush1.bf16.msra.mxu0 %v2685
  %3383 = vmatprep.subr.bf16.mxu0 %v2682
  %3384 = vmatpush1.bf16.msra.mxu0 %v2681
  %3385 = vmatprep.subr.bf16.mxu0 %v2678
  %3386 = vmatpush1.bf16.msra.mxu0 %v2677
  %3387 = vmatprep.subr.bf16.mxu0 0
  %3388 = vmatpush2.bf16.msra.mxu0 0
  %3389 = vmatprep.subr.bf16.mxu0 0
  %3390 = vmatpush2.bf16.msra.mxu0 0
  %3391 = vmatprep.subr.bf16.mxu0 0
  %3392 = vmatpush2.bf16.msra.mxu0 0
  %3393 = vmatprep.subr.bf16.mxu0 0
  %3394 = vmatpush2.bf16.msra.mxu0 0
  %3395 = vmatprep.subr.bf16.mxu0 0
  %3396 = vmatpush2.bf16.msra.mxu0 0
  %3397 = vmatprep.subr.bf16.mxu0 0
  %3398 = vmatpush2.bf16.msra.mxu0 0
  %3399 = vmatprep.subr.bf16.mxu0 0
  %3400 = vmatpush2.bf16.msra.mxu0 0
  %3401 = vmatprep.subr.bf16.mxu0 0
  %3402 = vmatpush2.bf16.msra.mxu0 0
  %3403 = vmatprep.mubr.bf16.mxu0 0
  %3404 = vmatmul.mubr.bf16.gmra.mxu0 %v3328
  %v3405 = vpop.f32.mrf.mxu0
  %v3406 = vadd.f32 %v3321, %v3405
  %v3407 = vpop.f32.mrf.mxu0
  %v3408 = vadd.f32 %v3323, %v3407
  %v3409 = vpop.f32.mrf.mxu0
  %v3410 = vpop.f32.mrf.mxu0
  %3411 = vdwg.mxu0
  %v3412 = vld [vmem:[%s55] sm:$0xff]
  %3414 = vset.pattern.permute.xlu0 0
  %3415 = vperm.xlu0 %3414, %v3412
  %v3416 = vpop.permute.xlu0 %3415
  %v3418 = vadd.f32 %v3365, %v3416
  %v3419 = vadd.f32 %v3367, %v3416
  %v3420 = vadd.f32 %v3406, %v3416
  %v3421 = vadd.f32 %v3408, %v3416
  %v3422 = vadd.f32 %v3418, %v3419
  %3423 = vadd.xlane.f32.xlu0 %v3422
  %v3424 = vpop.xlane.xlu0 %3423
  %v3425 = vrot.slane %v3424, 4
  %v3426 = vadd.f32 %v3424, %v3425
  %v3427 = vrot.slane %v3426, 2
  %v3428 = vadd.f32 %v3426, %v3427
  %v3429 = vrot.slane %v3428, 1
  %v3430 = vadd.f32 %v3428, %v3429
  %s3431 = vtos %v3430
  %v3432 = vmul.f32 %v3418, %v3418
  %v3433 = vmul.f32 %v3419, %v3419
  %v3434 = vadd.f32 %v3432, %v3433
  %3435 = vadd.xlane.f32.xlu0 %v3434
  %v3436 = vpop.xlane.xlu0 %3435
  %v3437 = vrot.slane %v3436, 4
  %v3438 = vadd.f32 %v3436, %v3437
  %v3439 = vrot.slane %v3438, 2
  %v3440 = vadd.f32 %v3438, %v3439
  %v3441 = vrot.slane %v3440, 1
  %v3442 = vadd.f32 %v3440, %v3441
  %s3443 = vtos %v3442
  %s3444 = smul.f32 %s3431, 0.00048828125
  %s3445 = smul.f32 %s3443, 0.00048828125
  %s3446 = smul.f32 %s3444, %s3444
  %s3447 = ssub.f32 %s3445, %s3446
  %s3448 = sadd.f32 %s3447, 1e-05
  %v3449 = vstv %s3448
  %v3450 = vrsqrt.pop %v3449
  %s3451 = vtos %v3450
  %v3452 = vstv %s3444
  %v3453 = vsub.f32 %v3418, %v3452
  %v3454 = vsub.f32 %v3419, %v3452
  %v3455 = vstv %s3451
  %v3456 = vmul.f32 %v3453, %v3455
  %v3457 = vmul.f32 %v3454, %v3455
  %v3458 = vadd.f32 %v3420, %v3421
  %3459 = vadd.xlane.f32.xlu0 %v3458
  %v3460 = vpop.xlane.xlu0 %3459
  %v3461 = vrot.slane %v3460, 4
  %v3462 = vadd.f32 %v3460, %v3461
  %v3463 = vrot.slane %v3462, 2
  %v3464 = vadd.f32 %v3462, %v3463
  %v3465 = vrot.slane %v3464, 1
  %v3466 = vadd.f32 %v3464, %v3465
  %s3467 = vtos %v3466
  %v3468 = vmul.f32 %v3420, %v3420
  %v3469 = vmul.f32 %v3421, %v3421
  %v3470 = vadd.f32 %v3468, %v3469
  %3471 = vadd.xlane.f32.xlu0 %v3470
  %v3472 = vpop.xlane.xlu0 %3471
  %v3473 = vrot.slane %v3472, 4
  %v3474 = vadd.f32 %v3472, %v3473
  %v3475 = vrot.slane %v3474, 2
  %v3476 = vadd.f32 %v3474, %v3475
  %v3477 = vrot.slane %v3476, 1
  %v3478 = vadd.f32 %v3476, %v3477
  %s3479 = vtos %v3478
  %s3480 = smul.f32 %s3467, 0.00048828125
  %s3481 = smul.f32 %s3479, 0.00048828125
  %s3482 = smul.f32 %s3480, %s3480
  %s3483 = ssub.f32 %s3481, %s3482
  %s3484 = sadd.f32 %s3483, 1e-05
  %v3485 = vstv %s3484
  %v3486 = vrsqrt.pop %v3485
  %s3487 = vtos %v3486
  %v3488 = vstv %s3480
  %v3489 = vsub.f32 %v3420, %v3488
  %v3490 = vsub.f32 %v3421, %v3488
  %v3491 = vstv %s3487
  %v3492 = vmul.f32 %v3489, %v3491
  %v3493 = vmul.f32 %v3490, %v3491
  %v3494 = vld [vmem:[%s57] sm:$0xff]
  %v3495 = vld [vmem:[%s57 + $0x8] sm:$0xff]
  %v3496 = vld [vmem:[%s57 + $0x10] sm:$0xff]
  %v3497 = vld [vmem:[%s57 + $0x18] sm:$0xff]
  %v3498 = vmul.f32 %v3456, %v3494
  %v3499 = vmul.f32 %v3457, %v3495
  %v3500 = vmul.f32 %v3492, %v3496
  %v3501 = vmul.f32 %v3493, %v3497
  %v3502 = vld [vmem:[%s59] sm:$0xff]
  %v3503 = vld [vmem:[%s59 + $0x8] sm:$0xff]
  %v3504 = vld [vmem:[%s59 + $0x10] sm:$0xff]
  %v3505 = vld [vmem:[%s59 + $0x18] sm:$0xff]
  %v3506 = vadd.f32 %v3498, %v3502
  %v3507 = vadd.f32 %v3499, %v3503
  %v3508 = vadd.f32 %v3500, %v3504
  %v3509 = vadd.f32 %v3501, %v3505
  %v3510 = vadd.f32 %v1050, %v3506
  %v3511 = vadd.f32 %v1051, %v3507
  %v3512 = vadd.f32 %v1052, %v3508
  %v3513 = vadd.f32 %v1053, %v3509
  %v3514 = vtanh.pop %v3510
  %v3515 = vtanh.pop %v3511
  %v3516 = vtanh.pop %v3512
  %v3517 = vtanh.pop %v3513
  %v3518 = vld [vmem:[%s61] sm:$0xff]
  %v3519 = vld [vmem:[%s63] sm:$0xff]
  %vm3520 = vcmask 64512
  %v3522 = vsel %vm3520, %v3519, 0
  %3524 = vmatprep.subr.mxu0 0.0
  %3525 = vmatpush1.msra.mxu0 0.0
  %3526 = vmatprep.subr.mxu0 0.0
  %3527 = vmatpush1.msra.mxu0 0.0
  %3528 = vmatprep.subr.mxu0 0.0
  %3529 = vmatpush1.msra.mxu0 0.0
  %3530 = vmatprep.subr.mxu0 0.0
  %3531 = vmatpush1.msra.mxu0 0.0
  %3532 = vmatprep.subr.mxu0 0.0
  %3533 = vmatpush1.msra.mxu0 0.0
  %3534 = vmatprep.subr.mxu0 0.0
  %3535 = vmatpush1.msra.mxu0 0.0
  %3536 = vmatprep.subr.mxu0 0.0
  %3537 = vmatpush1.msra.mxu0 0.0
  %3538 = vmatprep.subr.mxu0 0.0
  %3539 = vmatpush1.msra.mxu0 0.0
  %3540 = vmatprep.subr.mxu0 0.0
  %3541 = vmatpush1.msra.mxu0 0.0
  %3542 = vmatprep.subr.mxu0 0.0
  %3543 = vmatpush1.msra.mxu0 0.0
  %3544 = vmatprep.subr.mxu0 0.0
  %3545 = vmatpush1.msra.mxu0 0.0
  %3546 = vmatprep.subr.mxu0 0.0
  %3547 = vmatpush1.msra.mxu0 0.0
  %3548 = vmatprep.subr.mxu0 0.0
  %3549 = vmatpush1.msra.mxu0 0.0
  %3550 = vmatprep.subr.mxu0 0.0
  %3551 = vmatpush1.msra.mxu0 0.0
  %3552 = vmatprep.subr.mxu0 0.0
  %3553 = vmatpush1.msra.mxu0 0.0
  %3554 = vmatprep.subr.mxu0 %v3077
  %3555 = vmatpush1.msra.mxu0 %v3076
  %3556 = vmatprep.subr.mxu0 0.0
  %3557 = vmatpush2.msra.mxu0 0.0
  %3558 = vmatprep.subr.mxu0 0.0
  %3559 = vmatpush2.msra.mxu0 0.0
  %3560 = vmatprep.subr.mxu0 0.0
  %3561 = vmatpush2.msra.mxu0 0.0
  %3562 = vmatprep.subr.mxu0 0.0
  %3563 = vmatpush2.msra.mxu0 0.0
  %3564 = vmatprep.subr.mxu0 0.0
  %3565 = vmatpush2.msra.mxu0 0.0
  %3566 = vmatprep.subr.mxu0 0.0
  %3567 = vmatpush2.msra.mxu0 0.0
  %3568 = vmatprep.subr.mxu0 0.0
  %3569 = vmatpush2.msra.mxu0 0.0
  %3570 = vmatprep.subr.mxu0 0.0
  %3571 = vmatpush2.msra.mxu0 0.0
  %3572 = vmatprep.subr.mxu0 0.0
  %3573 = vmatpush2.msra.mxu0 0.0
  %3574 = vmatprep.subr.mxu0 0.0
  %3575 = vmatpush2.msra.mxu0 0.0
  %3576 = vmatprep.subr.mxu0 0.0
  %3577 = vmatpush2.msra.mxu0 0.0
  %3578 = vmatprep.subr.mxu0 0.0
  %3579 = vmatpush2.msra.mxu0 0.0
  %3580 = vmatprep.subr.mxu0 0.0
  %3581 = vmatpush2.msra.mxu0 0.0
  %3582 = vmatprep.subr.mxu0 0.0
  %3583 = vmatpush2.msra.mxu0 0.0
  %3584 = vmatprep.subr.mxu0 0.0
  %3585 = vmatpush2.msra.mxu0 0.0
  %3586 = vmatprep.subr.mxu0 0.0
  %3587 = vmatpush2.msra.mxu0 0.0
  %3588 = vmatprep.mubr.f32.mxu0 0.0
  %3589 = vmatmul.mubr.f32.gmra.mxu0 %v3522
  %v3590 = vpop.f32.mrf.mxu0
  %v3591 = vadd.f32 0.0, %v3590
  %v3592 = vpop.f32.mrf.mxu0
  %v3593 = vadd.f32 0.0, %v3592
  %3594 = vdwg.mxu0
  %3595 = vmatprep.subr.mxu0 0.0
  %3596 = vmatpush1.msra.mxu0 0.0
  %3597 = vmatprep.subr.mxu0 0.0
  %3598 = vmatpush1.msra.mxu0 0.0
  %3599 = vmatprep.subr.mxu0 0.0
  %3600 = vmatpush1.msra.mxu0 0.0
  %3601 = vmatprep.subr.mxu0 0.0
  %3602 = vmatpush1.msra.mxu0 0.0
  %3603 = vmatprep.subr.mxu0 0.0
  %3604 = vmatpush1.msra.mxu0 0.0
  %3605 = vmatprep.subr.mxu0 0.0
  %3606 = vmatpush1.msra.mxu0 0.0
  %3607 = vmatprep.subr.mxu0 0.0
  %3608 = vmatpush1.msra.mxu0 0.0
  %3609 = vmatprep.subr.mxu0 0.0
  %3610 = vmatpush1.msra.mxu0 0.0
  %3611 = vmatprep.subr.mxu0 0.0
  %3612 = vmatpush1.msra.mxu0 0.0
  %3613 = vmatprep.subr.mxu0 0.0
  %3614 = vmatpush1.msra.mxu0 0.0
  %3615 = vmatprep.subr.mxu0 0.0
  %3616 = vmatpush1.msra.mxu0 0.0
  %3617 = vmatprep.subr.mxu0 0.0
  %3618 = vmatpush1.msra.mxu0 0.0
  %3619 = vmatprep.subr.mxu0 0.0
  %3620 = vmatpush1.msra.mxu0 0.0
  %3621 = vmatprep.subr.mxu0 0.0
  %3622 = vmatpush1.msra.mxu0 0.0
  %3623 = vmatprep.subr.mxu0 0.0
  %3624 = vmatpush1.msra.mxu0 0.0
  %3625 = vmatprep.subr.mxu0 %v3079
  %3626 = vmatpush1.msra.mxu0 %v3078
  %3627 = vmatprep.subr.mxu0 0.0
  %3628 = vmatpush2.msra.mxu0 0.0
  %3629 = vmatprep.subr.mxu0 0.0
  %3630 = vmatpush2.msra.mxu0 0.0
  %3631 = vmatprep.subr.mxu0 0.0
  %3632 = vmatpush2.msra.mxu0 0.0
  %3633 = vmatprep.subr.mxu0 0.0
  %3634 = vmatpush2.msra.mxu0 0.0
  %3635 = vmatprep.subr.mxu0 0.0
  %3636 = vmatpush2.msra.mxu0 0.0
  %3637 = vmatprep.subr.mxu0 0.0
  %3638 = vmatpush2.msra.mxu0 0.0
  %3639 = vmatprep.subr.mxu0 0.0
  %3640 = vmatpush2.msra.mxu0 0.0
  %3641 = vmatprep.subr.mxu0 0.0
  %3642 = vmatpush2.msra.mxu0 0.0
  %3643 = vmatprep.subr.mxu0 0.0
  %3644 = vmatpush2.msra.mxu0 0.0
  %3645 = vmatprep.subr.mxu0 0.0
  %3646 = vmatpush2.msra.mxu0 0.0
  %3647 = vmatprep.subr.mxu0 0.0
  %3648 = vmatpush2.msra.mxu0 0.0
  %3649 = vmatprep.subr.mxu0 0.0
  %3650 = vmatpush2.msra.mxu0 0.0
  %3651 = vmatprep.subr.mxu0 0.0
  %3652 = vmatpush2.msra.mxu0 0.0
  %3653 = vmatprep.subr.mxu0 0.0
  %3654 = vmatpush2.msra.mxu0 0.0
  %3655 = vmatprep.subr.mxu0 0.0
  %3656 = vmatpush2.msra.mxu0 0.0
  %3657 = vmatprep.subr.mxu0 0.0
  %3658 = vmatpush2.msra.mxu0 0.0
  %3659 = vmatprep.mubr.f32.mxu0 0.0
  %3660 = vmatmul.mubr.f32.gmra.mxu0 %v3522
  %v3661 = vpop.f32.mrf.mxu0
  %v3662 = vadd.f32 0.0, %v3661
  %v3663 = vpop.f32.mrf.mxu0
  %v3664 = vadd.f32 0.0, %v3663
  %3665 = vdwg.mxu0
  %v3667 = vsel %vm3520, %v3518, 0
  %3669 = vmatprep.subr.mxu0 0.0
  %3670 = vmatpush1.msra.mxu0 0.0
  %3671 = vmatprep.subr.mxu0 0.0
  %3672 = vmatpush1.msra.mxu0 0.0
  %3673 = vmatprep.subr.mxu0 0.0
  %3674 = vmatpush1.msra.mxu0 0.0
  %3675 = vmatprep.subr.mxu0 0.0
  %3676 = vmatpush1.msra.mxu0 0.0
  %3677 = vmatprep.subr.mxu0 0.0
  %3678 = vmatpush1.msra.mxu0 0.0
  %3679 = vmatprep.subr.mxu0 0.0
  %3680 = vmatpush1.msra.mxu0 0.0
  %3681 = vmatprep.subr.mxu0 0.0
  %3682 = vmatpush1.msra.mxu0 0.0
  %3683 = vmatprep.subr.mxu0 0.0
  %3684 = vmatpush1.msra.mxu0 0.0
  %3685 = vmatprep.subr.mxu0 0.0
  %3686 = vmatpush1.msra.mxu0 0.0
  %3687 = vmatprep.subr.mxu0 0.0
  %3688 = vmatpush1.msra.mxu0 0.0
  %3689 = vmatprep.subr.mxu0 0.0
  %3690 = vmatpush1.msra.mxu0 0.0
  %3691 = vmatprep.subr.mxu0 0.0
  %3692 = vmatpush1.msra.mxu0 0.0
  %3693 = vmatprep.subr.mxu0 0.0
  %3694 = vmatpush1.msra.mxu0 0.0
  %3695 = vmatprep.subr.mxu0 0.0
  %3696 = vmatpush1.msra.mxu0 0.0
  %3697 = vmatprep.subr.mxu0 0.0
  %3698 = vmatpush1.msra.mxu0 0.0
  %3699 = vmatprep.subr.mxu0 %v2544
  %3700 = vmatpush1.msra.mxu0 %v2543
  %3701 = vmatprep.subr.mxu0 0.0
  %3702 = vmatpush2.msra.mxu0 0.0
  %3703 = vmatprep.subr.mxu0 0.0
  %3704 = vmatpush2.msra.mxu0 0.0
  %3705 = vmatprep.subr.mxu0 0.0
  %3706 = vmatpush2.msra.mxu0 0.0
  %3707 = vmatprep.subr.mxu0 0.0
  %3708 = vmatpush2.msra.mxu0 0.0
  %3709 = vmatprep.subr.mxu0 0.0
  %3710 = vmatpush2.msra.mxu0 0.0
  %3711 = vmatprep.subr.mxu0 0.0
  %3712 = vmatpush2.msra.mxu0 0.0
  %3713 = vmatprep.subr.mxu0 0.0
  %3714 = vmatpush2.msra.mxu0 0.0
  %3715 = vmatprep.subr.mxu0 0.0
  %3716 = vmatpush2.msra.mxu0 0.0
  %3717 = vmatprep.subr.mxu0 0.0
  %3718 = vmatpush2.msra.mxu0 0.0
  %3719 = vmatprep.subr.mxu0 0.0
  %3720 = vmatpush2.msra.mxu0 0.0
  %3721 = vmatprep.subr.mxu0 0.0
  %3722 = vmatpush2.msra.mxu0 0.0
  %3723 = vmatprep.subr.mxu0 0.0
  %3724 = vmatpush2.msra.mxu0 0.0
  %3725 = vmatprep.subr.mxu0 0.0
  %3726 = vmatpush2.msra.mxu0 0.0
  %3727 = vmatprep.subr.mxu0 0.0
  %3728 = vmatpush2.msra.mxu0 0.0
  %3729 = vmatprep.subr.mxu0 0.0
  %3730 = vmatpush2.msra.mxu0 0.0
  %3731 = vmatprep.subr.mxu0 0.0
  %3732 = vmatpush2.msra.mxu0 0.0
  %3733 = vmatprep.mubr.f32.mxu0 0.0
  %3734 = vmatmul.mubr.f32.gmra.mxu0 %v3667
  %v3735 = vpop.f32.mrf.mxu0
  %v3736 = vadd.f32 %v3591, %v3735
  %v3737 = vpop.f32.mrf.mxu0
  %v3738 = vadd.f32 %v3593, %v3737
  %3739 = vdwg.mxu0
  %3740 = vmatprep.subr.mxu0 0.0
  %3741 = vmatpush1.msra.mxu0 0.0
  %3742 = vmatprep.subr.mxu0 0.0
  %3743 = vmatpush1.msra.mxu0 0.0
  %3744 = vmatprep.subr.mxu0 0.0
  %3745 = vmatpush1.msra.mxu0 0.0
  %3746 = vmatprep.subr.mxu0 0.0
  %3747 = vmatpush1.msra.mxu0 0.0
  %3748 = vmatprep.subr.mxu0 0.0
  %3749 = vmatpush1.msra.mxu0 0.0
  %3750 = vmatprep.subr.mxu0 0.0
  %3751 = vmatpush1.msra.mxu0 0.0
  %3752 = vmatprep.subr.mxu0 0.0
  %3753 = vmatpush1.msra.mxu0 0.0
  %3754 = vmatprep.subr.mxu0 0.0
  %3755 = vmatpush1.msra.mxu0 0.0
  %3756 = vmatprep.subr.mxu0 0.0
  %3757 = vmatpush1.msra.mxu0 0.0
  %3758 = vmatprep.subr.mxu0 0.0
  %3759 = vmatpush1.msra.mxu0 0.0
  %3760 = vmatprep.subr.mxu0 0.0
  %3761 = vmatpush1.msra.mxu0 0.0
  %3762 = vmatprep.subr.mxu0 0.0
  %3763 = vmatpush1.msra.mxu0 0.0
  %3764 = vmatprep.subr.mxu0 0.0
  %3765 = vmatpush1.msra.mxu0 0.0
  %3766 = vmatprep.subr.mxu0 0.0
  %3767 = vmatpush1.msra.mxu0 0.0
  %3768 = vmatprep.subr.mxu0 0.0
  %3769 = vmatpush1.msra.mxu0 0.0
  %3770 = vmatprep.subr.mxu0 %v2546
  %3771 = vmatpush1.msra.mxu0 %v2545
  %3772 = vmatprep.subr.mxu0 0.0
  %3773 = vmatpush2.msra.mxu0 0.0
  %3774 = vmatprep.subr.mxu0 0.0
  %3775 = vmatpush2.msra.mxu0 0.0
  %3776 = vmatprep.subr.mxu0 0.0
  %3777 = vmatpush2.msra.mxu0 0.0
  %3778 = vmatprep.subr.mxu0 0.0
  %3779 = vmatpush2.msra.mxu0 0.0
  %3780 = vmatprep.subr.mxu0 0.0
  %3781 = vmatpush2.msra.mxu0 0.0
  %3782 = vmatprep.subr.mxu0 0.0
  %3783 = vmatpush2.msra.mxu0 0.0
  %3784 = vmatprep.subr.mxu0 0.0
  %3785 = vmatpush2.msra.mxu0 0.0
  %3786 = vmatprep.subr.mxu0 0.0
  %3787 = vmatpush2.msra.mxu0 0.0
  %3788 = vmatprep.subr.mxu0 0.0
  %3789 = vmatpush2.msra.mxu0 0.0
  %3790 = vmatprep.subr.mxu0 0.0
  %3791 = vmatpush2.msra.mxu0 0.0
  %3792 = vmatprep.subr.mxu0 0.0
  %3793 = vmatpush2.msra.mxu0 0.0
  %3794 = vmatprep.subr.mxu0 0.0
  %3795 = vmatpush2.msra.mxu0 0.0
  %3796 = vmatprep.subr.mxu0 0.0
  %3797 = vmatpush2.msra.mxu0 0.0
  %3798 = vmatprep.subr.mxu0 0.0
  %3799 = vmatpush2.msra.mxu0 0.0
  %3800 = vmatprep.subr.mxu0 0.0
  %3801 = vmatpush2.msra.mxu0 0.0
  %3802 = vmatprep.subr.mxu0 0.0
  %3803 = vmatpush2.msra.mxu0 0.0
  %3804 = vmatprep.mubr.f32.mxu0 0.0
  %3805 = vmatmul.mubr.f32.gmra.mxu0 %v3667
  %v3806 = vpop.f32.mrf.mxu0
  %v3807 = vadd.f32 %v3662, %v3806
  %v3808 = vpop.f32.mrf.mxu0
  %v3809 = vadd.f32 %v3664, %v3808
  %3810 = vdwg.mxu0
  %v3811 = vld [vmem:[%s65] sm:$0xff]
  %3813 = vset.pattern.permute.xlu0 0
  %3814 = vperm.xlu0 %3813, %v3811
  %v3815 = vpop.permute.xlu0 %3814
  %v3817 = vadd.f32 %v3736, %v3815
  %v3818 = vadd.f32 %v3738, %v3815
  %v3819 = vadd.f32 %v3807, %v3815
  %v3820 = vadd.f32 %v3809, %v3815
  %v3821 = vtanh.pop %v3817
  %v3822 = vtanh.pop %v3818
  %v3823 = vtanh.pop %v3819
  %v3824 = vtanh.pop %v3820
  %v3825 = vmul.f32 %v3514, %v3821
  %v3826 = vmul.f32 %v3515, %v3822
  %v3827 = vmul.f32 %v3516, %v3823
  %v3828 = vmul.f32 %v3517, %v3824
  %3829 = vst [vmem:[%s67] sm:$0xff] %v3825
  %3830 = vst [vmem:[%s67 + $0x8] sm:$0xff] %v3826
  %3831 = vst [vmem:[%s67 + $0x10] sm:$0xff] %v3827
  %3832 = vst [vmem:[%s67 + $0x18] sm:$0xff] %v3828
  %3833 = vst [vmem:[%s69] sm:$0xff] %v2543
  %3834 = vst [vmem:[%s69 + $0x8] sm:$0xff] %v2544
  %3835 = vst [vmem:[%s69 + $0x10] sm:$0xff] %v2545
  %3836 = vst [vmem:[%s69 + $0x18] sm:$0xff] %v2546
  %3837 = vst [vmem:[%s71] sm:$0xff] %v3076
  %3838 = vst [vmem:[%s71 + $0x8] sm:$0xff] %v3077
  %3839 = vst [vmem:[%s71 + $0x10] sm:$0xff] %v3078
  %3840 = vst [vmem:[%s71 + $0x18] sm:$0xff] %v3079
  // Predicated region
  $region134: #{forward.1} parent=0 // pred_check
    _
  $region135: #{forward.1} parent=0 // pred_check_branch
    %3842 = sbr.rel (0) target = $region137
  $region136: #{forward.1} parent=0 // pred_region
    _
  $region137: #{forward.1} parent=0 // pred_fallthru
    _
  // Predicated region
  $region138: #{forward.1} parent=0 // pred_check
    _
  $region139: #{forward.1} parent=0 // pred_check_branch
    %3844 = sbr.rel (0) target = $region141
  $region140: #{forward.1} parent=0 // pred_region
    _
  $region141: #{forward.1} parent=0 // pred_fallthru
    _
  // Predicated region
  $region142: #{forward.1} parent=0 // pred_check
    _
  $region143: #{forward.1} parent=0 // pred_check_branch
    %3846 = sbr.rel (0) target = $region145
  $region144: #{forward.1} parent=0 // pred_region
    _
  $region145: #{forward.1} parent=0 // pred_fallthru
    _
  // Predicated region
  $region146: #{forward.1} parent=0 // pred_check
    _
  $region147: #{forward.1} parent=0 // pred_check_branch
    %3848 = sbr.rel (0) target = $region149
  $region148: #{forward.1} parent=0 // pred_region
    _
  $region149: #{forward.1} parent=0 // pred_fallthru
    _
  // Predicated region
  $region150: #{forward.1} parent=0 // pred_check
    _
  $region151: #{forward.1} parent=0 // pred_check_branch
    %3850 = sbr.rel (0) target = $region153
  $region152: #{forward.1} parent=0 // pred_region
    _
  $region153: #{forward.1} parent=0 // pred_fallthru
    _
  // Predicated region
  $region154: #{forward.1} parent=0 // pred_check
    _
  $region155: #{forward.1} parent=0 // pred_check_branch
    %3852 = sbr.rel (0) target = $region157
  $region156: #{forward.1} parent=0 // pred_region
    _
  $region157: #{forward.1} parent=0 // pred_fallthru
    _

</llo_original>
